<compile_context>
chip_gen: v7x
topology: tpu7x:2x2x1
jax: 0.10.0
libtpu: 0.0.40
codegen_flags: <defaults>
</compile_context>

<pallas_src>
import jax
import jax.numpy as jnp
from jax.experimental import pallas as pl
from jax.experimental.pallas import tpu as pltpu


# Layer sizes from the PyTorch module, and their 128-lane-padded versions.
DIMS = [1027, 800, 500, 200, 50, 24, 24]


def _round_up(n, m):
    return ((n + m - 1) // m) * m


PAD_DIMS = [_round_up(d, 128) for d in DIMS]   # [1152, 896, 512, 256, 128, 128, 128]


def _mlp_kernel(x_ref,
                w1_ref, b1_ref,
                w2_ref, b2_ref,
                w3_ref, b3_ref,
                w4_ref, b4_ref,
                w5_ref, b5_ref,
                w6_ref, b6_ref,
                o_ref):
    def linear(h, w_ref, b_ref):
        # bf16 x bf16 on the MXU with f32 accumulation, then f32 bias on the VPU.
        return jnp.dot(h.astype(jnp.bfloat16), w_ref[...],
                       preferred_element_type=jnp.float32) + b_ref[...]

    h = x_ref[...]                                   # bf16 [TILE_B, 1152]
    h = jnp.maximum(linear(h, w1_ref, b1_ref), 0.0)  # f32
    h = jnp.maximum(linear(h, w2_ref, b2_ref), 0.0)
    h = jnp.maximum(linear(h, w3_ref, b3_ref), 0.0)
    h = jnp.maximum(linear(h, w4_ref, b4_ref), 0.0)
    h = jnp.maximum(linear(h, w5_ref, b5_ref), 0.0)
    z = linear(h, w6_ref, b6_ref)
    # sigmoid: exp on the EUP, divide via EUP approximate reciprocal.
    o_ref[...] = pl.reciprocal(1.0 + jnp.exp(-z), approx=True)


def _pad_to(a, shape):
    pads = [(0, t - s) for s, t in zip(a.shape, shape)]
    return jnp.pad(a, pads)


def prepare_inputs(x, params):
    """Pad to lane-aligned shapes; weights -> (in_pad, out_pad) bf16, biases f32."""
    batch = x.shape[0]
    xp = _pad_to(x.astype(jnp.float32), (batch, PAD_DIMS[0])).astype(jnp.bfloat16)
    flat = []
    for i, (w, b) in enumerate(params):         # w: (out, in) f32, b: (out,) f32
        d_in_p, d_out_p = PAD_DIMS[i], PAD_DIMS[i + 1]
        w_t = _pad_to(w.T.astype(jnp.float32), (d_in_p, d_out_p)).astype(jnp.bfloat16)
        b_p = _pad_to(b.reshape(1, -1).astype(jnp.float32), (1, d_out_p))
        flat.append(w_t)
        flat.append(b_p)
    return xp, flat


def zander_zenith_forward(x, params):
    """x: [batch, 1027] f32. params: list of (w [out,in] f32, b [out] f32) per layer."""
    batch = x.shape[0]
    xp, flat = prepare_inputs(x, params)

    # Batch tiling: single tile for small batches, 256-row tiles for large ones.
    tile_b = 256 if batch >= 256 else _round_up(batch, 8)
    padded_batch = _round_up(batch, tile_b)
    if padded_batch != batch:
        xp = jnp.pad(xp, ((0, padded_batch - batch), (0, 0)))
    grid = (padded_batch // tile_b,)

    in_specs = [pl.BlockSpec((tile_b, PAD_DIMS[0]), lambda i: (i, 0))]
    for a in flat:
        # Same block every grid step -> weights/biases stay resident in VMEM.
        in_specs.append(pl.BlockSpec(a.shape, lambda i: (0, 0)))
    out_specs = pl.BlockSpec((tile_b, PAD_DIMS[-1]), lambda i: (i, 0))

    fn = pl.pallas_call(
        _mlp_kernel,
        out_shape=jax.ShapeDtypeStruct((padded_batch, PAD_DIMS[-1]), jnp.float32),
        grid=grid,
        in_specs=in_specs,
        out_specs=out_specs,
        compiler_params=pltpu.CompilerParams(
            dimension_semantics=("parallel",),
            vmem_limit_bytes=32 << 20,
        ),
    )
    out = fn(xp, *flat)
    return out[:batch, :DIMS[-1]]


def init_params(key):
    """Deterministic synthetic parameters in the PyTorch nn.Linear convention."""
    params = []
    for i in range(len(DIMS) - 1):
        d_in, d_out = DIMS[i], DIMS[i + 1]
        key, kw, kb = jax.random.split(key, 3)
        bound = 1.0 / jnp.sqrt(jnp.float32(d_in))
        w = jax.random.uniform(kw, (d_out, d_in), jnp.float32, -bound, bound)
        b = jax.random.uniform(kb, (d_out,), jnp.float32, -bound, bound)
        params.append((w, b))
    return params


def reference_forward_f32(x, params):
    """Pure f32 reference (exact module semantics)."""
    h = x
    n = len(params)
    for i, (w, b) in enumerate(params):
        z = h @ w.T + b
        h = jnp.maximum(z, 0.0) if i < n - 1 else jax.nn.sigmoid(z)
    return h


def reference_forward_bf16(x, params):
    """Reference using the same bf16/padded operands the kernel sees."""
    xp, flat = prepare_inputs(x, params)
    h = xp
    n = len(params)
    for i in range(n):
        w, b = flat[2 * i], flat[2 * i + 1]
        z = jnp.dot(h.astype(jnp.bfloat16), w, preferred_element_type=jnp.float32) + b
        h = jnp.maximum(z, 0.0) if i < n - 1 else jax.nn.sigmoid(z)
    return h[:, :DIMS[-1]]


if __name__ == "__main__":
    key = jax.random.PRNGKey(0)
    key, kx = jax.random.split(key)

    batch = 8
    x = jax.random.normal(kx, (batch, DIMS[0]), jnp.float32)
    params = init_params(key)

    out = zander_zenith_forward(x, params)
    out = jax.block_until_ready(out)

    ref_bf16 = reference_forward_bf16(x, params)
    ref_f32 = reference_forward_f32(x, params)

    assert out.shape == (batch, 24), out.shape
    # Tight check vs a reference on the same bf16 operands.
    assert jnp.allclose(out, ref_bf16, atol=5e-3, rtol=0.0), "mismatch vs bf16 reference"
    # Looser semantic check vs the exact f32 module math.
    assert jnp.allclose(out, ref_f32, atol=3e-2, rtol=0.0), "mismatch vs f32 reference"

    print("KERNEL_OK")
</pallas_src>

<mosaic_0001>
module attributes {stable_mosaic.version = 11 : i64} {
  func.func @_mlp_kernel(%arg0: i32, %arg1: memref<8x1152xbf16, #tpu.memory_space<vmem>>, %arg2: memref<1152x896xbf16, #tpu.memory_space<vmem>>, %arg3: memref<1x896xf32, #tpu.memory_space<vmem>>, %arg4: memref<896x512xbf16, #tpu.memory_space<vmem>>, %arg5: memref<1x512xf32, #tpu.memory_space<vmem>>, %arg6: memref<512x256xbf16, #tpu.memory_space<vmem>>, %arg7: memref<1x256xf32, #tpu.memory_space<vmem>>, %arg8: memref<256x128xbf16, #tpu.memory_space<vmem>>, %arg9: memref<1x128xf32, #tpu.memory_space<vmem>>, %arg10: memref<128x128xbf16, #tpu.memory_space<vmem>>, %arg11: memref<1x128xf32, #tpu.memory_space<vmem>>, %arg12: memref<128x128xbf16, #tpu.memory_space<vmem>>, %arg13: memref<1x128xf32, #tpu.memory_space<vmem>>, %arg14: memref<8x128xf32, #tpu.memory_space<vmem>>) attributes {dimension_semantics = [#tpu.dimension_semantics<parallel>], iteration_bounds = array<i64: 1>, scalar_prefetch = 0 : i64, scratch_operands = 0 : i64, tpu.core_type = #tpu.core_type<tc>, window_params = [{transform_indices = @transform_0, window_bounds = array<i64: 8, 1152>}, {pipeline_mode = #tpu.pipeline_mode<synchronous>, transform_indices = @transform_1, window_bounds = array<i64: 1152, 896>}, {pipeline_mode = #tpu.pipeline_mode<synchronous>, transform_indices = @transform_2, window_bounds = array<i64: 1, 896>}, {pipeline_mode = #tpu.pipeline_mode<synchronous>, transform_indices = @transform_3, window_bounds = array<i64: 896, 512>}, {pipeline_mode = #tpu.pipeline_mode<synchronous>, transform_indices = @transform_4, window_bounds = array<i64: 1, 512>}, {pipeline_mode = #tpu.pipeline_mode<synchronous>, transform_indices = @transform_5, window_bounds = array<i64: 512, 256>}, {pipeline_mode = #tpu.pipeline_mode<synchronous>, transform_indices = @transform_6, window_bounds = array<i64: 1, 256>}, {pipeline_mode = #tpu.pipeline_mode<synchronous>, transform_indices = @transform_7, window_bounds = array<i64: 256, 128>}, {pipeline_mode = #tpu.pipeline_mode<synchronous>, transform_indices = @transform_8, window_bounds = array<i64: 1, 128>}, {pipeline_mode = #tpu.pipeline_mode<synchronous>, transform_indices = @transform_9, window_bounds = array<i64: 128, 128>}, {pipeline_mode = #tpu.pipeline_mode<synchronous>, transform_indices = @transform_10, window_bounds = array<i64: 1, 128>}, {pipeline_mode = #tpu.pipeline_mode<synchronous>, transform_indices = @transform_11, window_bounds = array<i64: 128, 128>}, {pipeline_mode = #tpu.pipeline_mode<synchronous>, transform_indices = @transform_12, window_bounds = array<i64: 1, 128>}, {transform_indices = @transform_13, window_bounds = array<i64: 8, 128>}]} {
    %c0 = arith.constant 0 : index
    %c0_0 = arith.constant 0 : index
    %0 = vector.load %arg1[%c0, %c0_0] : memref<8x1152xbf16, #tpu.memory_space<vmem>>, vector<8x1152xbf16>
    %c0_1 = arith.constant 0 : index
    %c0_2 = arith.constant 0 : index
    %1 = vector.load %arg2[%c0_1, %c0_2] : memref<1152x896xbf16, #tpu.memory_space<vmem>>, vector<1152x896xbf16>
    %cst = arith.constant dense<0.000000e+00> : vector<8x896xf32>
    %2 = tpu.matmul %0, %1, %cst {dimension_numbers = #tpu.dot_dimension_numbers<[1], [0], [0], [1], [0, 0, 1, 1], [], []>} : vector<8x1152xbf16>, vector<1152x896xbf16>, vector<8x896xf32> -> vector<8x896xf32>
    %c0_3 = arith.constant 0 : index
    %c0_4 = arith.constant 0 : index
    %3 = vector.load %arg3[%c0_3, %c0_4] : memref<1x896xf32, #tpu.memory_space<vmem>>, vector<1x896xf32>
    %4 = vector.broadcast %3 : vector<1x896xf32> to vector<8x896xf32>
    %5 = arith.addf %2, %4 : vector<8x896xf32>
    %cst_5 = arith.constant 0.000000e+00 : f32
    %6 = vector.broadcast %cst_5 : f32 to vector<8x896xf32>
    %7 = arith.maximumf %5, %6 : vector<8x896xf32>
    %8 = arith.truncf %7 : vector<8x896xf32> to vector<8x896xbf16>
    %c0_6 = arith.constant 0 : index
    %c0_7 = arith.constant 0 : index
    %9 = vector.load %arg4[%c0_6, %c0_7] : memref<896x512xbf16, #tpu.memory_space<vmem>>, vector<896x512xbf16>
    %cst_8 = arith.constant dense<0.000000e+00> : vector<8x512xf32>
    %10 = tpu.matmul %8, %9, %cst_8 {dimension_numbers = #tpu.dot_dimension_numbers<[1], [0], [0], [1], [0, 0, 1, 1], [], []>} : vector<8x896xbf16>, vector<896x512xbf16>, vector<8x512xf32> -> vector<8x512xf32>
    %c0_9 = arith.constant 0 : index
    %c0_10 = arith.constant 0 : index
    %11 = vector.load %arg5[%c0_9, %c0_10] : memref<1x512xf32, #tpu.memory_space<vmem>>, vector<1x512xf32>
    %12 = vector.broadcast %11 : vector<1x512xf32> to vector<8x512xf32>
    %13 = arith.addf %10, %12 : vector<8x512xf32>
    %cst_11 = arith.constant 0.000000e+00 : f32
    %14 = vector.broadcast %cst_11 : f32 to vector<8x512xf32>
    %15 = arith.maximumf %13, %14 : vector<8x512xf32>
    %16 = arith.truncf %15 : vector<8x512xf32> to vector<8x512xbf16>
    %c0_12 = arith.constant 0 : index
    %c0_13 = arith.constant 0 : index
    %17 = vector.load %arg6[%c0_12, %c0_13] : memref<512x256xbf16, #tpu.memory_space<vmem>>, vector<512x256xbf16>
    %cst_14 = arith.constant dense<0.000000e+00> : vector<8x256xf32>
    %18 = tpu.matmul %16, %17, %cst_14 {dimension_numbers = #tpu.dot_dimension_numbers<[1], [0], [0], [1], [0, 0, 1, 1], [], []>} : vector<8x512xbf16>, vector<512x256xbf16>, vector<8x256xf32> -> vector<8x256xf32>
    %c0_15 = arith.constant 0 : index
    %c0_16 = arith.constant 0 : index
    %19 = vector.load %arg7[%c0_15, %c0_16] : memref<1x256xf32, #tpu.memory_space<vmem>>, vector<1x256xf32>
    %20 = vector.broadcast %19 : vector<1x256xf32> to vector<8x256xf32>
    %21 = arith.addf %18, %20 : vector<8x256xf32>
    %cst_17 = arith.constant 0.000000e+00 : f32
    %22 = vector.broadcast %cst_17 : f32 to vector<8x256xf32>
    %23 = arith.maximumf %21, %22 : vector<8x256xf32>
    %24 = arith.truncf %23 : vector<8x256xf32> to vector<8x256xbf16>
    %c0_18 = arith.constant 0 : index
    %c0_19 = arith.constant 0 : index
    %25 = vector.load %arg8[%c0_18, %c0_19] : memref<256x128xbf16, #tpu.memory_space<vmem>>, vector<256x128xbf16>
    %cst_20 = arith.constant dense<0.000000e+00> : vector<8x128xf32>
    %26 = tpu.matmul %24, %25, %cst_20 {dimension_numbers = #tpu.dot_dimension_numbers<[1], [0], [0], [1], [0, 0, 1, 1], [], []>} : vector<8x256xbf16>, vector<256x128xbf16>, vector<8x128xf32> -> vector<8x128xf32>
    %c0_21 = arith.constant 0 : index
    %c0_22 = arith.constant 0 : index
    %27 = vector.load %arg9[%c0_21, %c0_22] : memref<1x128xf32, #tpu.memory_space<vmem>>, vector<1x128xf32>
    %28 = vector.broadcast %27 : vector<1x128xf32> to vector<8x128xf32>
    %29 = arith.addf %26, %28 : vector<8x128xf32>
    %cst_23 = arith.constant 0.000000e+00 : f32
    %30 = vector.broadcast %cst_23 : f32 to vector<8x128xf32>
    %31 = arith.maximumf %29, %30 : vector<8x128xf32>
    %32 = arith.truncf %31 : vector<8x128xf32> to vector<8x128xbf16>
    %c0_24 = arith.constant 0 : index
    %c0_25 = arith.constant 0 : index
    %33 = vector.load %arg10[%c0_24, %c0_25] : memref<128x128xbf16, #tpu.memory_space<vmem>>, vector<128x128xbf16>
    %cst_26 = arith.constant dense<0.000000e+00> : vector<8x128xf32>
    %34 = tpu.matmul %32, %33, %cst_26 {dimension_numbers = #tpu.dot_dimension_numbers<[1], [0], [0], [1], [0, 0, 1, 1], [], []>} : vector<8x128xbf16>, vector<128x128xbf16>, vector<8x128xf32> -> vector<8x128xf32>
    %c0_27 = arith.constant 0 : index
    %c0_28 = arith.constant 0 : index
    %35 = vector.load %arg11[%c0_27, %c0_28] : memref<1x128xf32, #tpu.memory_space<vmem>>, vector<1x128xf32>
    %36 = vector.broadcast %35 : vector<1x128xf32> to vector<8x128xf32>
    %37 = arith.addf %34, %36 : vector<8x128xf32>
    %cst_29 = arith.constant 0.000000e+00 : f32
    %38 = vector.broadcast %cst_29 : f32 to vector<8x128xf32>
    %39 = arith.maximumf %37, %38 : vector<8x128xf32>
    %40 = arith.truncf %39 : vector<8x128xf32> to vector<8x128xbf16>
    %c0_30 = arith.constant 0 : index
    %c0_31 = arith.constant 0 : index
    %41 = vector.load %arg12[%c0_30, %c0_31] : memref<128x128xbf16, #tpu.memory_space<vmem>>, vector<128x128xbf16>
    %cst_32 = arith.constant dense<0.000000e+00> : vector<8x128xf32>
    %42 = tpu.matmul %40, %41, %cst_32 {dimension_numbers = #tpu.dot_dimension_numbers<[1], [0], [0], [1], [0, 0, 1, 1], [], []>} : vector<8x128xbf16>, vector<128x128xbf16>, vector<8x128xf32> -> vector<8x128xf32>
    %c0_33 = arith.constant 0 : index
    %c0_34 = arith.constant 0 : index
    %43 = vector.load %arg13[%c0_33, %c0_34] : memref<1x128xf32, #tpu.memory_space<vmem>>, vector<1x128xf32>
    %44 = vector.broadcast %43 : vector<1x128xf32> to vector<8x128xf32>
    %45 = arith.addf %42, %44 : vector<8x128xf32>
    %cst_35 = arith.constant 0.000000e+00 : f32
    %46 = vector.broadcast %cst_35 : f32 to vector<8x128xf32>
    %47 = arith.subf %46, %45 : vector<8x128xf32>
    %48 = math.exp %47 : vector<8x128xf32>
    %cst_36 = arith.constant 1.000000e+00 : f32
    %49 = vector.broadcast %cst_36 : f32 to vector<8x128xf32>
    %50 = arith.addf %49, %48 : vector<8x128xf32>
    %51 = tpu.reciprocal %50 {approx = true} : vector<8x128xf32> -> vector<8x128xf32>
    %c0_37 = arith.constant 0 : index
    %c0_38 = arith.constant 0 : index
    %52 = vector.load %arg14[%c0_37, %c0_38] : memref<8x128xf32, #tpu.memory_space<vmem>>, vector<8x128xf32>
    tpu.vector_store %arg14[%c0_37, %c0_38], %51 {strides = array<i32>} : memref<8x128xf32, #tpu.memory_space<vmem>>, vector<8x128xf32>,
    return
  }
  func.func @transform_0(%arg0: i32) -> (i32, i32) {
    %c0_i32 = arith.constant 0 : i32
    %c0_i32_0 = arith.constant 0 : i32
    return %arg0, %c0_i32 : i32, i32
  }
  func.func @transform_1(%arg0: i32) -> (i32, i32) {
    %c0_i32 = arith.constant 0 : i32
    %c0_i32_0 = arith.constant 0 : i32
    %c0_i32_1 = arith.constant 0 : i32
    return %c0_i32, %c0_i32_0 : i32, i32
  }
  func.func @transform_2(%arg0: i32) -> (i32, i32) {
    %c0_i32 = arith.constant 0 : i32
    %c0_i32_0 = arith.constant 0 : i32
    %c0_i32_1 = arith.constant 0 : i32
    return %c0_i32, %c0_i32_0 : i32, i32
  }
  func.func @transform_3(%arg0: i32) -> (i32, i32) {
    %c0_i32 = arith.constant 0 : i32
    %c0_i32_0 = arith.constant 0 : i32
    %c0_i32_1 = arith.constant 0 : i32
    return %c0_i32, %c0_i32_0 : i32, i32
  }
  func.func @transform_4(%arg0: i32) -> (i32, i32) {
    %c0_i32 = arith.constant 0 : i32
    %c0_i32_0 = arith.constant 0 : i32
    %c0_i32_1 = arith.constant 0 : i32
    return %c0_i32, %c0_i32_0 : i32, i32
  }
  func.func @transform_5(%arg0: i32) -> (i32, i32) {
    %c0_i32 = arith.constant 0 : i32
    %c0_i32_0 = arith.constant 0 : i32
    %c0_i32_1 = arith.constant 0 : i32
    return %c0_i32, %c0_i32_0 : i32, i32
  }
  func.func @transform_6(%arg0: i32) -> (i32, i32) {
    %c0_i32 = arith.constant 0 : i32
    %c0_i32_0 = arith.constant 0 : i32
    %c0_i32_1 = arith.constant 0 : i32
    return %c0_i32, %c0_i32_0 : i32, i32
  }
  func.func @transform_7(%arg0: i32) -> (i32, i32) {
    %c0_i32 = arith.constant 0 : i32
    %c0_i32_0 = arith.constant 0 : i32
    %c0_i32_1 = arith.constant 0 : i32
    return %c0_i32, %c0_i32_0 : i32, i32
  }
  func.func @transform_8(%arg0: i32) -> (i32, i32) {
    %c0_i32 = arith.constant 0 : i32
    %c0_i32_0 = arith.constant 0 : i32
    %c0_i32_1 = arith.constant 0 : i32
    return %c0_i32, %c0_i32_0 : i32, i32
  }
  func.func @transform_9(%arg0: i32) -> (i32, i32) {
    %c0_i32 = arith.constant 0 : i32
    %c0_i32_0 = arith.constant 0 : i32
    %c0_i32_1 = arith.constant 0 : i32
    return %c0_i32, %c0_i32_0 : i32, i32
  }
  func.func @transform_10(%arg0: i32) -> (i32, i32) {
    %c0_i32 = arith.constant 0 : i32
    %c0_i32_0 = arith.constant 0 : i32
    %c0_i32_1 = arith.constant 0 : i32
    return %c0_i32, %c0_i32_0 : i32, i32
  }
  func.func @transform_11(%arg0: i32) -> (i32, i32) {
    %c0_i32 = arith.constant 0 : i32
    %c0_i32_0 = arith.constant 0 : i32
    %c0_i32_1 = arith.constant 0 : i32
    return %c0_i32, %c0_i32_0 : i32, i32
  }
  func.func @transform_12(%arg0: i32) -> (i32, i32) {
    %c0_i32 = arith.constant 0 : i32
    %c0_i32_0 = arith.constant 0 : i32
    %c0_i32_1 = arith.constant 0 : i32
    return %c0_i32, %c0_i32_0 : i32, i32
  }
  func.func @transform_13(%arg0: i32) -> (i32, i32) {
    %c0_i32 = arith.constant 0 : i32
    %c0_i32_0 = arith.constant 0 : i32
    return %arg0, %c0_i32 : i32, i32
  }
}

</mosaic_0001>

<llo_original>
// kernel: tpu_custom_call.1
$region0: #{tpu_custom_call.1}
  #allocation0 [shape = 'u32[]', space=smem, size = 0x4, offset = 0x4, fixed_abs, tag = 'smem constant byte address 0x4 - core index']
  #allocation1 [shape = 'u32[144,128]{1,0:T(1,128)}', space=vmem, size = 0x12000, scoped, tag = 'internal scratch']
  %s0 = inlined_call_operand.hbm [shape: bf16[8,1152], index: 0, kind: input, shape index: {}]
  %s1 = inlined_call_operand.hbm [shape: bf16[1152,896], index: 1, kind: input, shape index: {}]
  %s2 = inlined_call_operand.hbm [shape: f32[1,896], index: 2, kind: input, shape index: {}]
  %s3 = inlined_call_operand.hbm [shape: bf16[896,512], index: 3, kind: input, shape index: {}]
  %s4 = inlined_call_operand.hbm [shape: f32[1,512], index: 4, kind: input, shape index: {}]
  %s5 = inlined_call_operand.hbm [shape: bf16[512,256], index: 5, kind: input, shape index: {}]
  %s6 = inlined_call_operand.hbm [shape: f32[1,256], index: 6, kind: input, shape index: {}]
  %s7 = inlined_call_operand.hbm [shape: bf16[256,128], index: 7, kind: input, shape index: {}]
  %s8 = inlined_call_operand.hbm [shape: f32[1,128], index: 8, kind: input, shape index: {}]
  %s9 = inlined_call_operand.hbm [shape: bf16[128,128], index: 9, kind: input, shape index: {}]
  %s10 = inlined_call_operand.hbm [shape: f32[1,128], index: 10, kind: input, shape index: {}]
  %s11 = inlined_call_operand.hbm [shape: bf16[128,128], index: 11, kind: input, shape index: {}]
  %s12 = inlined_call_operand.hbm [shape: f32[1,128], index: 12, kind: input, shape index: {}]
  %s13 = inlined_call_operand.hbm [shape: f32[8,128], index: 13, kind: output, shape index: {}]
  %s14 = sld [smem:[#allocation0]]
  $region114: #{tpu_custom_call.1} parent=0
    _
  %s16 = ssub.s32 1, %s14
  %s17 = scalar_select 0, %s16, %s14
  $region1: #{tpu_custom_call.1} parent=0
    #allocation2 [shape = 'u8[18432]{0}', space=vmem, size = 0x4800, scoped, tag = 'input window, operand 0, single buffered']
    #allocation3 [shape = 's32[1]{0}', space=sflag, size = 0x4, scoped, tag = 'scoped memory for tpu_custom_call.1']
    #allocation4 [shape = 's32[1]{0}', space=sflag, size = 0x4, scoped, tag = 'scoped memory for tpu_custom_call.1']
    #allocation5 [shape = 'u8[2064384]{0}', space=vmem, size = 0x1f8000, scoped, tag = 'input window, operand 1, single buffered']
    #allocation6 [shape = 's32[1]{0}', space=sflag, size = 0x4, scoped, tag = 'scoped memory for tpu_custom_call.1']
    #allocation7 [shape = 'u8[3584]{0}', space=vmem, size = 0x1000, scoped, tag = 'input window, operand 2, single buffered']
    #allocation8 [shape = 'u8[917504]{0}', space=vmem, size = 0xe0000, scoped, tag = 'input window, operand 3, single buffered']
    #allocation9 [shape = 's32[1]{0}', space=sflag, size = 0x4, scoped, tag = 'scoped memory for tpu_custom_call.1']
    #allocation10 [shape = 'u8[2048]{0}', space=vmem, size = 0x800, scoped, tag = 'input window, operand 4, single buffered']
    #allocation11 [shape = 'u8[262144]{0}', space=vmem, size = 0x40000, scoped, tag = 'input window, operand 5, single buffered']
    #allocation12 [shape = 's32[1]{0}', space=sflag, size = 0x4, scoped, tag = 'scoped memory for tpu_custom_call.1']
    #allocation13 [shape = 'u8[1024]{0}', space=vmem, size = 0x400, scoped, tag = 'input window, operand 6, single buffered']
    #allocation14 [shape = 'u8[65536]{0}', space=vmem, size = 0x10000, scoped, tag = 'input window, operand 7, single buffered']
    #allocation15 [shape = 's32[1]{0}', space=sflag, size = 0x4, scoped, tag = 'scoped memory for tpu_custom_call.1']
    #allocation16 [shape = 'u8[512]{0}', space=vmem, size = 0x400, scoped, tag = 'input window, operand 8, single buffered']
    #allocation17 [shape = 'u8[32768]{0}', space=vmem, size = 0x8000, scoped, tag = 'input window, operand 9, single buffered']
    #allocation18 [shape = 's32[1]{0}', space=sflag, size = 0x4, scoped, tag = 'scoped memory for tpu_custom_call.1']
    #allocation19 [shape = 'u8[512]{0}', space=vmem, size = 0x400, scoped, tag = 'input window, operand 10, single buffered']
    #allocation20 [shape = 'u8[32768]{0}', space=vmem, size = 0x8000, scoped, tag = 'input window, operand 11, single buffered']
    #allocation21 [shape = 's32[1]{0}', space=sflag, size = 0x4, scoped, tag = 'scoped memory for tpu_custom_call.1']
    #allocation22 [shape = 'u8[512]{0}', space=vmem, size = 0x400, scoped, tag = 'input window, operand 12, single buffered']
    #allocation23 [shape = 'u8[4096]{0}', space=vmem, size = 0x1000, scoped, tag = 'output window, operand 0, single buffered']
    %18 = vsyncpa [#allocation3], 0
    %19 = vsyncpa [#allocation6], 0
    %20 = vsyncpa [#allocation9], 0
    %21 = vsyncpa [#allocation12], 0
    %22 = vsyncpa [#allocation15], 0
    %23 = vsyncpa [#allocation18], 0
    %24 = vsyncpa [#allocation21], 0
    %25 = vsyncpa [#allocation4], 0
    // Predicated region
    $region2: #{tpu_custom_call.1} parent=1 // pred_check
      _
    $region3: #{tpu_custom_call.1} parent=1 // pred_check_branch
      %27 = sbr.rel (0) target = $region5
    $region4: #{tpu_custom_call.1} parent=1 // pred_region
      %s29 = ssub.s32 576, 576
      %30 = vsyncadd [#allocation3], %s29
      %s32 = sshll.u32 [#allocation2], 4
      %s33 = int_to_ptr.vmem [resolvable:$true] %s32
      %35 = dma.hbm_to_vmem [thread:$0]  %s0, 576, %s33, [#allocation3]
    $region5: #{tpu_custom_call.1} parent=1 // pred_fallthru
      _
    // Predicated region
    $region6: #{tpu_custom_call.1} parent=1 // pred_check
      _
    $region7: #{tpu_custom_call.1} parent=1 // pred_check_branch
      %37 = sbr.rel (0) target = $region9
    $region8: #{tpu_custom_call.1} parent=1 // pred_region
      %s39 = ssub.s32 64512, 64512
      %40 = vsyncadd [#allocation6], %s39
      %s41 = sshll.u32 [#allocation5], 4
      %s42 = int_to_ptr.vmem [resolvable:$true] %s41
      %47 = dma.hbm_to_vmem [thread:$0]  %s1, 64512, %s42, [#allocation6], 448, 448, 28
    $region9: #{tpu_custom_call.1} parent=1 // pred_fallthru
      _
    // Predicated region
    $region10: #{tpu_custom_call.1} parent=1 // pred_check
      _
    $region11: #{tpu_custom_call.1} parent=1 // pred_check_branch
      %49 = sbr.rel (0) target = $region13
    $region12: #{tpu_custom_call.1} parent=1 // pred_region
      %s51 = ssub.s32 112, 112
      %52 = vsyncadd [#allocation6], %s51
      %s54 = sshll.u32 [#allocation7], 4
      %s55 = int_to_ptr.vmem [resolvable:$true] %s54
      %57 = dma.hbm_to_vmem [thread:$0]  %s2, 112, %s55, [#allocation6]
    $region13: #{tpu_custom_call.1} parent=1 // pred_fallthru
      _
    // Predicated region
    $region14: #{tpu_custom_call.1} parent=1 // pred_check
      _
    $region15: #{tpu_custom_call.1} parent=1 // pred_check_branch
      %59 = sbr.rel (0) target = $region17
    $region16: #{tpu_custom_call.1} parent=1 // pred_region
      %s61 = ssub.s32 28672, 28672
      %62 = vsyncadd [#allocation9], %s61
      %s63 = sshll.u32 [#allocation8], 4
      %s64 = int_to_ptr.vmem [resolvable:$true] %s63
      %69 = dma.hbm_to_vmem [thread:$0]  %s3, 28672, %s64, [#allocation9], 256, 256, 16
    $region17: #{tpu_custom_call.1} parent=1 // pred_fallthru
      _
    // Predicated region
    $region18: #{tpu_custom_call.1} parent=1 // pred_check
      _
    $region19: #{tpu_custom_call.1} parent=1 // pred_check_branch
      %71 = sbr.rel (0) target = $region21
    $region20: #{tpu_custom_call.1} parent=1 // pred_region
      %s73 = ssub.s32 64, 64
      %74 = vsyncadd [#allocation9], %s73
      %s76 = sshll.u32 [#allocation10], 4
      %s77 = int_to_ptr.vmem [resolvable:$true] %s76
      %79 = dma.hbm_to_vmem [thread:$0]  %s4, 64, %s77, [#allocation9]
    $region21: #{tpu_custom_call.1} parent=1 // pred_fallthru
      _
    // Predicated region
    $region22: #{tpu_custom_call.1} parent=1 // pred_check
      _
    $region23: #{tpu_custom_call.1} parent=1 // pred_check_branch
      %81 = sbr.rel (0) target = $region25
    $region24: #{tpu_custom_call.1} parent=1 // pred_region
      %s83 = ssub.s32 8192, 8192
      %84 = vsyncadd [#allocation12], %s83
      %s85 = sshll.u32 [#allocation11], 4
      %s86 = int_to_ptr.vmem [resolvable:$true] %s85
      %91 = dma.hbm_to_vmem [thread:$0]  %s5, 8192, %s86, [#allocation12], 128, 128, 8
    $region25: #{tpu_custom_call.1} parent=1 // pred_fallthru
      _
    // Predicated region
    $region26: #{tpu_custom_call.1} parent=1 // pred_check
      _
    $region27: #{tpu_custom_call.1} parent=1 // pred_check_branch
      %93 = sbr.rel (0) target = $region29
    $region28: #{tpu_custom_call.1} parent=1 // pred_region
      %s95 = ssub.s32 32, 32
      %96 = vsyncadd [#allocation12], %s95
      %s98 = sshll.u32 [#allocation13], 4
      %s99 = int_to_ptr.vmem [resolvable:$true] %s98
      %101 = dma.hbm_to_vmem [thread:$0]  %s6, 32, %s99, [#allocation12]
    $region29: #{tpu_custom_call.1} parent=1 // pred_fallthru
      _
    // Predicated region
    $region30: #{tpu_custom_call.1} parent=1 // pred_check
      _
    $region31: #{tpu_custom_call.1} parent=1 // pred_check_branch
      %103 = sbr.rel (0) target = $region33
    $region32: #{tpu_custom_call.1} parent=1 // pred_region
      %s105 = ssub.s32 2048, 2048
      %106 = vsyncadd [#allocation15], %s105
      %s107 = sshll.u32 [#allocation14], 4
      %s108 = int_to_ptr.vmem [resolvable:$true] %s107
      %113 = dma.hbm_to_vmem [thread:$0]  %s7, 2048, %s108, [#allocation15], 64, 64, 4
    $region33: #{tpu_custom_call.1} parent=1 // pred_fallthru
      _
    // Predicated region
    $region34: #{tpu_custom_call.1} parent=1 // pred_check
      _
    $region35: #{tpu_custom_call.1} parent=1 // pred_check_branch
      %115 = sbr.rel (0) target = $region37
    $region36: #{tpu_custom_call.1} parent=1 // pred_region
      %s117 = ssub.s32 16, 16
      %118 = vsyncadd [#allocation15], %s117
      %s120 = sshll.u32 [#allocation16], 4
      %s121 = int_to_ptr.vmem [resolvable:$true] %s120
      %123 = dma.hbm_to_vmem [thread:$0]  %s8, 16, %s121, [#allocation15]
    $region37: #{tpu_custom_call.1} parent=1 // pred_fallthru
      _
    // Predicated region
    $region38: #{tpu_custom_call.1} parent=1 // pred_check
      _
    $region39: #{tpu_custom_call.1} parent=1 // pred_check_branch
      %125 = sbr.rel (0) target = $region41
    $region40: #{tpu_custom_call.1} parent=1 // pred_region
      %s127 = ssub.s32 1024, 1024
      %128 = vsyncadd [#allocation18], %s127
      %s129 = sshll.u32 [#allocation17], 4
      %s130 = int_to_ptr.vmem [resolvable:$true] %s129
      %135 = dma.hbm_to_vmem [thread:$0]  %s9, 1024, %s130, [#allocation18], 64, 64, 4
    $region41: #{tpu_custom_call.1} parent=1 // pred_fallthru
      _
    // Predicated region
    $region42: #{tpu_custom_call.1} parent=1 // pred_check
      _
    $region43: #{tpu_custom_call.1} parent=1 // pred_check_branch
      %137 = sbr.rel (0) target = $region45
    $region44: #{tpu_custom_call.1} parent=1 // pred_region
      %s139 = ssub.s32 16, 16
      %140 = vsyncadd [#allocation18], %s139
      %s142 = sshll.u32 [#allocation19], 4
      %s143 = int_to_ptr.vmem [resolvable:$true] %s142
      %145 = dma.hbm_to_vmem [thread:$0]  %s10, 16, %s143, [#allocation18]
    $region45: #{tpu_custom_call.1} parent=1 // pred_fallthru
      _
    // Predicated region
    $region46: #{tpu_custom_call.1} parent=1 // pred_check
      _
    $region47: #{tpu_custom_call.1} parent=1 // pred_check_branch
      %147 = sbr.rel (0) target = $region49
    $region48: #{tpu_custom_call.1} parent=1 // pred_region
      %s149 = ssub.s32 1024, 1024
      %150 = vsyncadd [#allocation21], %s149
      %s151 = sshll.u32 [#allocation20], 4
      %s152 = int_to_ptr.vmem [resolvable:$true] %s151
      %157 = dma.hbm_to_vmem [thread:$0]  %s11, 1024, %s152, [#allocation21], 64, 64, 4
    $region49: #{tpu_custom_call.1} parent=1 // pred_fallthru
      _
    // Predicated region
    $region50: #{tpu_custom_call.1} parent=1 // pred_check
      _
    $region51: #{tpu_custom_call.1} parent=1 // pred_check_branch
      %159 = sbr.rel (0) target = $region53
    $region52: #{tpu_custom_call.1} parent=1 // pred_region
      %s161 = ssub.s32 16, 16
      %162 = vsyncadd [#allocation21], %s161
      %s164 = sshll.u32 [#allocation22], 4
      %s165 = int_to_ptr.vmem [resolvable:$true] %s164
      %167 = dma.hbm_to_vmem [thread:$0]  %s12, 16, %s165, [#allocation21]
    $region53: #{tpu_custom_call.1} parent=1 // pred_fallthru
      _
    // Predicated region
    $region54: #{tpu_custom_call.1} parent=1 // pred_check
      _
    $region55: #{tpu_custom_call.1} parent=1 // pred_check_branch
      %169 = sbr.rel (0) target = $region57
    $region56: #{tpu_custom_call.1} parent=1 // pred_region
      %170 = dma.done [#allocation3], 576
    $region57: #{tpu_custom_call.1} parent=1 // pred_fallthru
      _
    // Predicated region
    $region58: #{tpu_custom_call.1} parent=1 // pred_check
      _
    $region59: #{tpu_custom_call.1} parent=1 // pred_check_branch
      %172 = sbr.rel (0) target = $region61
    $region60: #{tpu_custom_call.1} parent=1 // pred_region
      %173 = dma.done [#allocation6], 64512
    $region61: #{tpu_custom_call.1} parent=1 // pred_fallthru
      _
    // Predicated region
    $region62: #{tpu_custom_call.1} parent=1 // pred_check
      _
    $region63: #{tpu_custom_call.1} parent=1 // pred_check_branch
      %175 = sbr.rel (0) target = $region65
    $region64: #{tpu_custom_call.1} parent=1 // pred_region
      %176 = dma.done [#allocation6], 112
    $region65: #{tpu_custom_call.1} parent=1 // pred_fallthru
      _
    // Predicated region
    $region66: #{tpu_custom_call.1} parent=1 // pred_check
      _
    $region67: #{tpu_custom_call.1} parent=1 // pred_check_branch
      %178 = sbr.rel (0) target = $region69
    $region68: #{tpu_custom_call.1} parent=1 // pred_region
      %179 = dma.done [#allocation9], 28672
    $region69: #{tpu_custom_call.1} parent=1 // pred_fallthru
      _
    // Predicated region
    $region70: #{tpu_custom_call.1} parent=1 // pred_check
      _
    $region71: #{tpu_custom_call.1} parent=1 // pred_check_branch
      %181 = sbr.rel (0) target = $region73
    $region72: #{tpu_custom_call.1} parent=1 // pred_region
      %182 = dma.done [#allocation9], 64
    $region73: #{tpu_custom_call.1} parent=1 // pred_fallthru
      _
    // Predicated region
    $region74: #{tpu_custom_call.1} parent=1 // pred_check
      _
    $region75: #{tpu_custom_call.1} parent=1 // pred_check_branch
      %184 = sbr.rel (0) target = $region77
    $region76: #{tpu_custom_call.1} parent=1 // pred_region
      %185 = dma.done [#allocation12], 8192
    $region77: #{tpu_custom_call.1} parent=1 // pred_fallthru
      _
    // Predicated region
    $region78: #{tpu_custom_call.1} parent=1 // pred_check
      _
    $region79: #{tpu_custom_call.1} parent=1 // pred_check_branch
      %187 = sbr.rel (0) target = $region81
    $region80: #{tpu_custom_call.1} parent=1 // pred_region
      %188 = dma.done [#allocation12], 32
    $region81: #{tpu_custom_call.1} parent=1 // pred_fallthru
      _
    // Predicated region
    $region82: #{tpu_custom_call.1} parent=1 // pred_check
      _
    $region83: #{tpu_custom_call.1} parent=1 // pred_check_branch
      %190 = sbr.rel (0) target = $region85
    $region84: #{tpu_custom_call.1} parent=1 // pred_region
      %191 = dma.done [#allocation15], 2048
    $region85: #{tpu_custom_call.1} parent=1 // pred_fallthru
      _
    // Predicated region
    $region86: #{tpu_custom_call.1} parent=1 // pred_check
      _
    $region87: #{tpu_custom_call.1} parent=1 // pred_check_branch
      %193 = sbr.rel (0) target = $region89
    $region88: #{tpu_custom_call.1} parent=1 // pred_region
      %194 = dma.done [#allocation15], 16
    $region89: #{tpu_custom_call.1} parent=1 // pred_fallthru
      _
    // Predicated region
    $region90: #{tpu_custom_call.1} parent=1 // pred_check
      _
    $region91: #{tpu_custom_call.1} parent=1 // pred_check_branch
      %196 = sbr.rel (0) target = $region93
    $region92: #{tpu_custom_call.1} parent=1 // pred_region
      %197 = dma.done [#allocation18], 1024
    $region93: #{tpu_custom_call.1} parent=1 // pred_fallthru
      _
    // Predicated region
    $region94: #{tpu_custom_call.1} parent=1 // pred_check
      _
    $region95: #{tpu_custom_call.1} parent=1 // pred_check_branch
      %199 = sbr.rel (0) target = $region97
    $region96: #{tpu_custom_call.1} parent=1 // pred_region
      %200 = dma.done [#allocation18], 16
    $region97: #{tpu_custom_call.1} parent=1 // pred_fallthru
      _
    // Predicated region
    $region98: #{tpu_custom_call.1} parent=1 // pred_check
      _
    $region99: #{tpu_custom_call.1} parent=1 // pred_check_branch
      %202 = sbr.rel (0) target = $region101
    $region100: #{tpu_custom_call.1} parent=1 // pred_region
      %203 = dma.done [#allocation21], 1024
    $region101: #{tpu_custom_call.1} parent=1 // pred_fallthru
      _
    // Predicated region
    $region102: #{tpu_custom_call.1} parent=1 // pred_check
      _
    $region103: #{tpu_custom_call.1} parent=1 // pred_check_branch
      %205 = sbr.rel (0) target = $region105
    $region104: #{tpu_custom_call.1} parent=1 // pred_region
      %206 = dma.done [#allocation21], 16
    $region105: #{tpu_custom_call.1} parent=1 // pred_fallthru
      _
    %v208 = vld [vmem:[#allocation2] sm:$0xff]
    %v209 = vld [vmem:[#allocation2 + $0x8] sm:$0xff]
    %v210 = vld [vmem:[#allocation2 + $0x10] sm:$0xff]
    %v211 = vld [vmem:[#allocation2 + $0x18] sm:$0xff]
    %v212 = vld [vmem:[#allocation2 + $0x20] sm:$0xf]
    %v213 = vld [vmem:[#allocation5] sm:$0xff]
    %v214 = vld [vmem:[#allocation5 + $0x8] sm:$0xff]
    %v215 = vld [vmem:[#allocation5 + $0x10] sm:$0xff]
    %v216 = vld [vmem:[#allocation5 + $0x18] sm:$0xf]
    %v217 = vld [vmem:[#allocation5 + $0x1c] sm:$0xff]
    %v218 = vld [vmem:[#allocation5 + $0x24] sm:$0xff]
    %v219 = vld [vmem:[#allocation5 + $0x2c] sm:$0xff]
    %v220 = vld [vmem:[#allocation5 + $0x34] sm:$0xf]
    %v221 = vld [vmem:[#allocation5 + $0x38] sm:$0xff]
    %v222 = vld [vmem:[#allocation5 + $0x40] sm:$0xff]
    %v223 = vld [vmem:[#allocation5 + $0x48] sm:$0xff]
    %v224 = vld [vmem:[#allocation5 + $0x50] sm:$0xf]
    %v225 = vld [vmem:[#allocation5 + $0x54] sm:$0xff]
    %v226 = vld [vmem:[#allocation5 + $0x5c] sm:$0xff]
    %v227 = vld [vmem:[#allocation5 + $0x64] sm:$0xff]
    %v228 = vld [vmem:[#allocation5 + $0x6c] sm:$0xf]
    %v229 = vld [vmem:[#allocation5 + $0x70] sm:$0xff]
    %v230 = vld [vmem:[#allocation5 + $0x78] sm:$0xff]
    %v231 = vld [vmem:[#allocation5 + $0x80] sm:$0xff]
    %v232 = vld [vmem:[#allocation5 + $0x88] sm:$0xf]
    %v233 = vld [vmem:[#allocation5 + $0x8c] sm:$0xff]
    %v234 = vld [vmem:[#allocation5 + $0x94] sm:$0xff]
    %v235 = vld [vmem:[#allocation5 + $0x9c] sm:$0xff]
    %v236 = vld [vmem:[#allocation5 + $0xa4] sm:$0xf]
    %v237 = vld [vmem:[#allocation5 + $0xa8] sm:$0xff]
    %v238 = vld [vmem:[#allocation5 + $0xb0] sm:$0xff]
    %v239 = vld [vmem:[#allocation5 + $0xb8] sm:$0xff]
    %v240 = vld [vmem:[#allocation5 + $0xc0] sm:$0xf]
    %v241 = vld [vmem:[#allocation5 + $0xc4] sm:$0xff]
    %v242 = vld [vmem:[#allocation5 + $0xcc] sm:$0xff]
    %v243 = vld [vmem:[#allocation5 + $0xd4] sm:$0xff]
    %v244 = vld [vmem:[#allocation5 + $0xdc] sm:$0xf]
    %v245 = vld [vmem:[#allocation5 + $0xe0] sm:$0xff]
    %v246 = vld [vmem:[#allocation5 + $0xe8] sm:$0xff]
    %v247 = vld [vmem:[#allocation5 + $0xf0] sm:$0xff]
    %v248 = vld [vmem:[#allocation5 + $0xf8] sm:$0xf]
    %v249 = vld [vmem:[#allocation5 + $0xfc] sm:$0xff]
    %v250 = vld [vmem:[#allocation5 + $0x104] sm:$0xff]
    %v251 = vld [vmem:[#allocation5 + $0x10c] sm:$0xff]
    %v252 = vld [vmem:[#allocation5 + $0x114] sm:$0xf]
    %v253 = vld [vmem:[#allocation5 + $0x118] sm:$0xff]
    %v254 = vld [vmem:[#allocation5 + $0x120] sm:$0xff]
    %v255 = vld [vmem:[#allocation5 + $0x128] sm:$0xff]
    %v256 = vld [vmem:[#allocation5 + $0x130] sm:$0xf]
    %v257 = vld [vmem:[#allocation5 + $0x134] sm:$0xff]
    %v258 = vld [vmem:[#allocation5 + $0x13c] sm:$0xff]
    %v259 = vld [vmem:[#allocation5 + $0x144] sm:$0xff]
    %v260 = vld [vmem:[#allocation5 + $0x14c] sm:$0xf]
    %v261 = vld [vmem:[#allocation5 + $0x150] sm:$0xff]
    %v262 = vld [vmem:[#allocation5 + $0x158] sm:$0xff]
    %v263 = vld [vmem:[#allocation5 + $0x160] sm:$0xff]
    %v264 = vld [vmem:[#allocation5 + $0x168] sm:$0xf]
    %v265 = vld [vmem:[#allocation5 + $0x16c] sm:$0xff]
    %v266 = vld [vmem:[#allocation5 + $0x174] sm:$0xff]
    %v267 = vld [vmem:[#allocation5 + $0x17c] sm:$0xff]
    %v268 = vld [vmem:[#allocation5 + $0x184] sm:$0xf]
    %v269 = vld [vmem:[#allocation5 + $0x188] sm:$0xff]
    %v270 = vld [vmem:[#allocation5 + $0x190] sm:$0xff]
    %v271 = vld [vmem:[#allocation5 + $0x198] sm:$0xff]
    %v272 = vld [vmem:[#allocation5 + $0x1a0] sm:$0xf]
    %v273 = vld [vmem:[#allocation5 + $0x1a4] sm:$0xff]
    %v274 = vld [vmem:[#allocation5 + $0x1ac] sm:$0xff]
    %v275 = vld [vmem:[#allocation5 + $0x1b4] sm:$0xff]
    %v276 = vld [vmem:[#allocation5 + $0x1bc] sm:$0xf]
    %v277 = vld [vmem:[#allocation5 + $0x1c0] sm:$0xff]
    %v278 = vld [vmem:[#allocation5 + $0x1c8] sm:$0xff]
    %v279 = vld [vmem:[#allocation5 + $0x1d0] sm:$0xff]
    %v280 = vld [vmem:[#allocation5 + $0x1d8] sm:$0xf]
    %v281 = vld [vmem:[#allocation5 + $0x1dc] sm:$0xff]
    %v282 = vld [vmem:[#allocation5 + $0x1e4] sm:$0xff]
    %v283 = vld [vmem:[#allocation5 + $0x1ec] sm:$0xff]
    %v284 = vld [vmem:[#allocation5 + $0x1f4] sm:$0xf]
    %v285 = vld [vmem:[#allocation5 + $0x1f8] sm:$0xff]
    %v286 = vld [vmem:[#allocation5 + $0x200] sm:$0xff]
    %v287 = vld [vmem:[#allocation5 + $0x208] sm:$0xff]
    %v288 = vld [vmem:[#allocation5 + $0x210] sm:$0xf]
    %v289 = vld [vmem:[#allocation5 + $0x214] sm:$0xff]
    %v290 = vld [vmem:[#allocation5 + $0x21c] sm:$0xff]
    %v291 = vld [vmem:[#allocation5 + $0x224] sm:$0xff]
    %v292 = vld [vmem:[#allocation5 + $0x22c] sm:$0xf]
    %v293 = vld [vmem:[#allocation5 + $0x230] sm:$0xff]
    %v294 = vld [vmem:[#allocation5 + $0x238] sm:$0xff]
    %v295 = vld [vmem:[#allocation5 + $0x240] sm:$0xff]
    %v296 = vld [vmem:[#allocation5 + $0x248] sm:$0xf]
    %v297 = vld [vmem:[#allocation5 + $0x24c] sm:$0xff]
    %v298 = vld [vmem:[#allocation5 + $0x254] sm:$0xff]
    %v299 = vld [vmem:[#allocation5 + $0x25c] sm:$0xff]
    %v300 = vld [vmem:[#allocation5 + $0x264] sm:$0xf]
    %v301 = vld [vmem:[#allocation5 + $0x268] sm:$0xff]
    %v302 = vld [vmem:[#allocation5 + $0x270] sm:$0xff]
    %v303 = vld [vmem:[#allocation5 + $0x278] sm:$0xff]
    %v304 = vld [vmem:[#allocation5 + $0x280] sm:$0xf]
    %v305 = vld [vmem:[#allocation5 + $0x284] sm:$0xff]
    %v306 = vld [vmem:[#allocation5 + $0x28c] sm:$0xff]
    %v307 = vld [vmem:[#allocation5 + $0x294] sm:$0xff]
    %v308 = vld [vmem:[#allocation5 + $0x29c] sm:$0xf]
    %v309 = vld [vmem:[#allocation5 + $0x2a0] sm:$0xff]
    %v310 = vld [vmem:[#allocation5 + $0x2a8] sm:$0xff]
    %v311 = vld [vmem:[#allocation5 + $0x2b0] sm:$0xff]
    %v312 = vld [vmem:[#allocation5 + $0x2b8] sm:$0xf]
    %v313 = vld [vmem:[#allocation5 + $0x2bc] sm:$0xff]
    %v314 = vld [vmem:[#allocation5 + $0x2c4] sm:$0xff]
    %v315 = vld [vmem:[#allocation5 + $0x2cc] sm:$0xff]
    %v316 = vld [vmem:[#allocation5 + $0x2d4] sm:$0xf]
    %v317 = vld [vmem:[#allocation5 + $0x2d8] sm:$0xff]
    %v318 = vld [vmem:[#allocation5 + $0x2e0] sm:$0xff]
    %v319 = vld [vmem:[#allocation5 + $0x2e8] sm:$0xff]
    %v320 = vld [vmem:[#allocation5 + $0x2f0] sm:$0xf]
    %v321 = vld [vmem:[#allocation5 + $0x2f4] sm:$0xff]
    %v322 = vld [vmem:[#allocation5 + $0x2fc] sm:$0xff]
    %v323 = vld [vmem:[#allocation5 + $0x304] sm:$0xff]
    %v324 = vld [vmem:[#allocation5 + $0x30c] sm:$0xf]
    %v325 = vld [vmem:[#allocation5 + $0x310] sm:$0xff]
    %v326 = vld [vmem:[#allocation5 + $0x318] sm:$0xff]
    %v327 = vld [vmem:[#allocation5 + $0x320] sm:$0xff]
    %v328 = vld [vmem:[#allocation5 + $0x328] sm:$0xf]
    %v329 = vld [vmem:[#allocation5 + $0x32c] sm:$0xff]
    %v330 = vld [vmem:[#allocation5 + $0x334] sm:$0xff]
    %v331 = vld [vmem:[#allocation5 + $0x33c] sm:$0xff]
    %v332 = vld [vmem:[#allocation5 + $0x344] sm:$0xf]
    %v333 = vld [vmem:[#allocation5 + $0x348] sm:$0xff]
    %v334 = vld [vmem:[#allocation5 + $0x350] sm:$0xff]
    %v335 = vld [vmem:[#allocation5 + $0x358] sm:$0xff]
    %v336 = vld [vmem:[#allocation5 + $0x360] sm:$0xf]
    %v337 = vld [vmem:[#allocation5 + $0x364] sm:$0xff]
    %v338 = vld [vmem:[#allocation5 + $0x36c] sm:$0xff]
    %v339 = vld [vmem:[#allocation5 + $0x374] sm:$0xff]
    %v340 = vld [vmem:[#allocation5 + $0x37c] sm:$0xf]
    %v341 = vld [vmem:[#allocation5 + $0x380] sm:$0xff]
    %v342 = vld [vmem:[#allocation5 + $0x388] sm:$0xff]
    %v343 = vld [vmem:[#allocation5 + $0x390] sm:$0xff]
    %v344 = vld [vmem:[#allocation5 + $0x398] sm:$0xf]
    %v345 = vld [vmem:[#allocation5 + $0x39c] sm:$0xff]
    %v346 = vld [vmem:[#allocation5 + $0x3a4] sm:$0xff]
    %v347 = vld [vmem:[#allocation5 + $0x3ac] sm:$0xff]
    %v348 = vld [vmem:[#allocation5 + $0x3b4] sm:$0xf]
    %v349 = vld [vmem:[#allocation5 + $0x3b8] sm:$0xff]
    %v350 = vld [vmem:[#allocation5 + $0x3c0] sm:$0xff]
    %v351 = vld [vmem:[#allocation5 + $0x3c8] sm:$0xff]
    %v352 = vld [vmem:[#allocation5 + $0x3d0] sm:$0xf]
    %v353 = vld [vmem:[#allocation5 + $0x3d4] sm:$0xff]
    %v354 = vld [vmem:[#allocation5 + $0x3dc] sm:$0xff]
    %v355 = vld [vmem:[#allocation5 + $0x3e4] sm:$0xff]
    %v356 = vld [vmem:[#allocation5 + $0x3ec] sm:$0xf]
    %v357 = vld [vmem:[#allocation5 + $0x3f0] sm:$0xff]
    %v358 = vld [vmem:[#allocation5 + $0x3f8] sm:$0xff]
    %v359 = vld [vmem:[#allocation5 + $0x400] sm:$0xff]
    %v360 = vld [vmem:[#allocation5 + $0x408] sm:$0xf]
    %v361 = vld [vmem:[#allocation5 + $0x40c] sm:$0xff]
    %v362 = vld [vmem:[#allocation5 + $0x414] sm:$0xff]
    %v363 = vld [vmem:[#allocation5 + $0x41c] sm:$0xff]
    %v364 = vld [vmem:[#allocation5 + $0x424] sm:$0xf]
    %v365 = vld [vmem:[#allocation5 + $0x428] sm:$0xff]
    %v366 = vld [vmem:[#allocation5 + $0x430] sm:$0xff]
    %v367 = vld [vmem:[#allocation5 + $0x438] sm:$0xff]
    %v368 = vld [vmem:[#allocation5 + $0x440] sm:$0xf]
    %v369 = vld [vmem:[#allocation5 + $0x444] sm:$0xff]
    %v370 = vld [vmem:[#allocation5 + $0x44c] sm:$0xff]
    %v371 = vld [vmem:[#allocation5 + $0x454] sm:$0xff]
    %v372 = vld [vmem:[#allocation5 + $0x45c] sm:$0xf]
    %v373 = vld [vmem:[#allocation5 + $0x460] sm:$0xff]
    %v374 = vld [vmem:[#allocation5 + $0x468] sm:$0xff]
    %v375 = vld [vmem:[#allocation5 + $0x470] sm:$0xff]
    %v376 = vld [vmem:[#allocation5 + $0x478] sm:$0xf]
    %v377 = vld [vmem:[#allocation5 + $0x47c] sm:$0xff]
    %v378 = vld [vmem:[#allocation5 + $0x484] sm:$0xff]
    %v379 = vld [vmem:[#allocation5 + $0x48c] sm:$0xff]
    %v380 = vld [vmem:[#allocation5 + $0x494] sm:$0xf]
    %v381 = vld [vmem:[#allocation5 + $0x498] sm:$0xff]
    %v382 = vld [vmem:[#allocation5 + $0x4a0] sm:$0xff]
    %v383 = vld [vmem:[#allocation5 + $0x4a8] sm:$0xff]
    %v384 = vld [vmem:[#allocation5 + $0x4b0] sm:$0xf]
    %v385 = vld [vmem:[#allocation5 + $0x4b4] sm:$0xff]
    %v386 = vld [vmem:[#allocation5 + $0x4bc] sm:$0xff]
    %v387 = vld [vmem:[#allocation5 + $0x4c4] sm:$0xff]
    %v388 = vld [vmem:[#allocation5 + $0x4cc] sm:$0xf]
    %v389 = vld [vmem:[#allocation5 + $0x4d0] sm:$0xff]
    %v390 = vld [vmem:[#allocation5 + $0x4d8] sm:$0xff]
    %v391 = vld [vmem:[#allocation5 + $0x4e0] sm:$0xff]
    %v392 = vld [vmem:[#allocation5 + $0x4e8] sm:$0xf]
    %v393 = vld [vmem:[#allocation5 + $0x4ec] sm:$0xff]
    %v394 = vld [vmem:[#allocation5 + $0x4f4] sm:$0xff]
    %v395 = vld [vmem:[#allocation5 + $0x4fc] sm:$0xff]
    %v396 = vld [vmem:[#allocation5 + $0x504] sm:$0xf]
    %v397 = vld [vmem:[#allocation5 + $0x508] sm:$0xff]
    %v398 = vld [vmem:[#allocation5 + $0x510] sm:$0xff]
    %v399 = vld [vmem:[#allocation5 + $0x518] sm:$0xff]
    %v400 = vld [vmem:[#allocation5 + $0x520] sm:$0xf]
    %v401 = vld [vmem:[#allocation5 + $0x524] sm:$0xff]
    %v402 = vld [vmem:[#allocation5 + $0x52c] sm:$0xff]
    %v403 = vld [vmem:[#allocation5 + $0x534] sm:$0xff]
    %v404 = vld [vmem:[#allocation5 + $0x53c] sm:$0xf]
    %v405 = vld [vmem:[#allocation5 + $0x540] sm:$0xff]
    %v406 = vld [vmem:[#allocation5 + $0x548] sm:$0xff]
    %v407 = vld [vmem:[#allocation5 + $0x550] sm:$0xff]
    %v408 = vld [vmem:[#allocation5 + $0x558] sm:$0xf]
    %v409 = vld [vmem:[#allocation5 + $0x55c] sm:$0xff]
    %v410 = vld [vmem:[#allocation5 + $0x564] sm:$0xff]
    %v411 = vld [vmem:[#allocation5 + $0x56c] sm:$0xff]
    %v412 = vld [vmem:[#allocation5 + $0x574] sm:$0xf]
    %v413 = vld [vmem:[#allocation5 + $0x578] sm:$0xff]
    %v414 = vld [vmem:[#allocation5 + $0x580] sm:$0xff]
    %v415 = vld [vmem:[#allocation5 + $0x588] sm:$0xff]
    %v416 = vld [vmem:[#allocation5 + $0x590] sm:$0xf]
    %v417 = vld [vmem:[#allocation5 + $0x594] sm:$0xff]
    %v418 = vld [vmem:[#allocation5 + $0x59c] sm:$0xff]
    %v419 = vld [vmem:[#allocation5 + $0x5a4] sm:$0xff]
    %v420 = vld [vmem:[#allocation5 + $0x5ac] sm:$0xf]
    %v421 = vld [vmem:[#allocation5 + $0x5b0] sm:$0xff]
    %v422 = vld [vmem:[#allocation5 + $0x5b8] sm:$0xff]
    %v423 = vld [vmem:[#allocation5 + $0x5c0] sm:$0xff]
    %v424 = vld [vmem:[#allocation5 + $0x5c8] sm:$0xf]
    %v425 = vld [vmem:[#allocation5 + $0x5cc] sm:$0xff]
    %v426 = vld [vmem:[#allocation5 + $0x5d4] sm:$0xff]
    %v427 = vld [vmem:[#allocation5 + $0x5dc] sm:$0xff]
    %v428 = vld [vmem:[#allocation5 + $0x5e4] sm:$0xf]
    %v429 = vld [vmem:[#allocation5 + $0x5e8] sm:$0xff]
    %v430 = vld [vmem:[#allocation5 + $0x5f0] sm:$0xff]
    %v431 = vld [vmem:[#allocation5 + $0x5f8] sm:$0xff]
    %v432 = vld [vmem:[#allocation5 + $0x600] sm:$0xf]
    %v433 = vld [vmem:[#allocation5 + $0x604] sm:$0xff]
    %v434 = vld [vmem:[#allocation5 + $0x60c] sm:$0xff]
    %v435 = vld [vmem:[#allocation5 + $0x614] sm:$0xff]
    %v436 = vld [vmem:[#allocation5 + $0x61c] sm:$0xf]
    %v437 = vld [vmem:[#allocation5 + $0x620] sm:$0xff]
    %v438 = vld [vmem:[#allocation5 + $0x628] sm:$0xff]
    %v439 = vld [vmem:[#allocation5 + $0x630] sm:$0xff]
    %v440 = vld [vmem:[#allocation5 + $0x638] sm:$0xf]
    %v441 = vld [vmem:[#allocation5 + $0x63c] sm:$0xff]
    %v442 = vld [vmem:[#allocation5 + $0x644] sm:$0xff]
    %v443 = vld [vmem:[#allocation5 + $0x64c] sm:$0xff]
    %v444 = vld [vmem:[#allocation5 + $0x654] sm:$0xf]
    %v445 = vld [vmem:[#allocation5 + $0x658] sm:$0xff]
    %v446 = vld [vmem:[#allocation5 + $0x660] sm:$0xff]
    %v447 = vld [vmem:[#allocation5 + $0x668] sm:$0xff]
    %v448 = vld [vmem:[#allocation5 + $0x670] sm:$0xf]
    %v449 = vld [vmem:[#allocation5 + $0x674] sm:$0xff]
    %v450 = vld [vmem:[#allocation5 + $0x67c] sm:$0xff]
    %v451 = vld [vmem:[#allocation5 + $0x684] sm:$0xff]
    %v452 = vld [vmem:[#allocation5 + $0x68c] sm:$0xf]
    %v453 = vld [vmem:[#allocation5 + $0x690] sm:$0xff]
    %v454 = vld [vmem:[#allocation5 + $0x698] sm:$0xff]
    %v455 = vld [vmem:[#allocation5 + $0x6a0] sm:$0xff]
    %v456 = vld [vmem:[#allocation5 + $0x6a8] sm:$0xf]
    %v457 = vld [vmem:[#allocation5 + $0x6ac] sm:$0xff]
    %v458 = vld [vmem:[#allocation5 + $0x6b4] sm:$0xff]
    %v459 = vld [vmem:[#allocation5 + $0x6bc] sm:$0xff]
    %v460 = vld [vmem:[#allocation5 + $0x6c4] sm:$0xf]
    %v461 = vld [vmem:[#allocation5 + $0x6c8] sm:$0xff]
    %v462 = vld [vmem:[#allocation5 + $0x6d0] sm:$0xff]
    %v463 = vld [vmem:[#allocation5 + $0x6d8] sm:$0xff]
    %v464 = vld [vmem:[#allocation5 + $0x6e0] sm:$0xf]
    %v465 = vld [vmem:[#allocation5 + $0x6e4] sm:$0xff]
    %v466 = vld [vmem:[#allocation5 + $0x6ec] sm:$0xff]
    %v467 = vld [vmem:[#allocation5 + $0x6f4] sm:$0xff]
    %v468 = vld [vmem:[#allocation5 + $0x6fc] sm:$0xf]
    %v469 = vld [vmem:[#allocation5 + $0x700] sm:$0xff]
    %v470 = vld [vmem:[#allocation5 + $0x708] sm:$0xff]
    %v471 = vld [vmem:[#allocation5 + $0x710] sm:$0xff]
    %v472 = vld [vmem:[#allocation5 + $0x718] sm:$0xf]
    %v473 = vld [vmem:[#allocation5 + $0x71c] sm:$0xff]
    %v474 = vld [vmem:[#allocation5 + $0x724] sm:$0xff]
    %v475 = vld [vmem:[#allocation5 + $0x72c] sm:$0xff]
    %v476 = vld [vmem:[#allocation5 + $0x734] sm:$0xf]
    %v477 = vld [vmem:[#allocation5 + $0x738] sm:$0xff]
    %v478 = vld [vmem:[#allocation5 + $0x740] sm:$0xff]
    %v479 = vld [vmem:[#allocation5 + $0x748] sm:$0xff]
    %v480 = vld [vmem:[#allocation5 + $0x750] sm:$0xf]
    %v481 = vld [vmem:[#allocation5 + $0x754] sm:$0xff]
    %v482 = vld [vmem:[#allocation5 + $0x75c] sm:$0xff]
    %v483 = vld [vmem:[#allocation5 + $0x764] sm:$0xff]
    %v484 = vld [vmem:[#allocation5 + $0x76c] sm:$0xf]
    %v485 = vld [vmem:[#allocation5 + $0x770] sm:$0xff]
    %v486 = vld [vmem:[#allocation5 + $0x778] sm:$0xff]
    %v487 = vld [vmem:[#allocation5 + $0x780] sm:$0xff]
    %v488 = vld [vmem:[#allocation5 + $0x788] sm:$0xf]
    %v489 = vld [vmem:[#allocation5 + $0x78c] sm:$0xff]
    %v490 = vld [vmem:[#allocation5 + $0x794] sm:$0xff]
    %v491 = vld [vmem:[#allocation5 + $0x79c] sm:$0xff]
    %v492 = vld [vmem:[#allocation5 + $0x7a4] sm:$0xf]
    %v493 = vld [vmem:[#allocation5 + $0x7a8] sm:$0xff]
    %v494 = vld [vmem:[#allocation5 + $0x7b0] sm:$0xff]
    %v495 = vld [vmem:[#allocation5 + $0x7b8] sm:$0xff]
    %v496 = vld [vmem:[#allocation5 + $0x7c0] sm:$0xf]
    %v497 = vld [vmem:[#allocation5 + $0x7c4] sm:$0xff]
    %v498 = vld [vmem:[#allocation5 + $0x7cc] sm:$0xff]
    %v499 = vld [vmem:[#allocation5 + $0x7d4] sm:$0xff]
    %v500 = vld [vmem:[#allocation5 + $0x7dc] sm:$0xf]
    %v501 = vld [vmem:[#allocation5 + $0x7e0] sm:$0xff]
    %v502 = vld [vmem:[#allocation5 + $0x7e8] sm:$0xff]
    %v503 = vld [vmem:[#allocation5 + $0x7f0] sm:$0xff]
    %v504 = vld [vmem:[#allocation5 + $0x7f8] sm:$0xf]
    %v505 = vld [vmem:[#allocation5 + $0x7fc] sm:$0xff]
    %v506 = vld [vmem:[#allocation5 + $0x804] sm:$0xff]
    %v507 = vld [vmem:[#allocation5 + $0x80c] sm:$0xff]
    %v508 = vld [vmem:[#allocation5 + $0x814] sm:$0xf]
    %v509 = vld [vmem:[#allocation5 + $0x818] sm:$0xff]
    %v510 = vld [vmem:[#allocation5 + $0x820] sm:$0xff]
    %v511 = vld [vmem:[#allocation5 + $0x828] sm:$0xff]
    %v512 = vld [vmem:[#allocation5 + $0x830] sm:$0xf]
    %v513 = vld [vmem:[#allocation5 + $0x834] sm:$0xff]
    %v514 = vld [vmem:[#allocation5 + $0x83c] sm:$0xff]
    %v515 = vld [vmem:[#allocation5 + $0x844] sm:$0xff]
    %v516 = vld [vmem:[#allocation5 + $0x84c] sm:$0xf]
    %v517 = vld [vmem:[#allocation5 + $0x850] sm:$0xff]
    %v518 = vld [vmem:[#allocation5 + $0x858] sm:$0xff]
    %v519 = vld [vmem:[#allocation5 + $0x860] sm:$0xff]
    %v520 = vld [vmem:[#allocation5 + $0x868] sm:$0xf]
    %v521 = vld [vmem:[#allocation5 + $0x86c] sm:$0xff]
    %v522 = vld [vmem:[#allocation5 + $0x874] sm:$0xff]
    %v523 = vld [vmem:[#allocation5 + $0x87c] sm:$0xff]
    %v524 = vld [vmem:[#allocation5 + $0x884] sm:$0xf]
    %v525 = vld [vmem:[#allocation5 + $0x888] sm:$0xff]
    %v526 = vld [vmem:[#allocation5 + $0x890] sm:$0xff]
    %v527 = vld [vmem:[#allocation5 + $0x898] sm:$0xff]
    %v528 = vld [vmem:[#allocation5 + $0x8a0] sm:$0xf]
    %v529 = vld [vmem:[#allocation5 + $0x8a4] sm:$0xff]
    %v530 = vld [vmem:[#allocation5 + $0x8ac] sm:$0xff]
    %v531 = vld [vmem:[#allocation5 + $0x8b4] sm:$0xff]
    %v532 = vld [vmem:[#allocation5 + $0x8bc] sm:$0xf]
    %v533 = vld [vmem:[#allocation5 + $0x8c0] sm:$0xff]
    %v534 = vld [vmem:[#allocation5 + $0x8c8] sm:$0xff]
    %v535 = vld [vmem:[#allocation5 + $0x8d0] sm:$0xff]
    %v536 = vld [vmem:[#allocation5 + $0x8d8] sm:$0xf]
    %v537 = vld [vmem:[#allocation5 + $0x8dc] sm:$0xff]
    %v538 = vld [vmem:[#allocation5 + $0x8e4] sm:$0xff]
    %v539 = vld [vmem:[#allocation5 + $0x8ec] sm:$0xff]
    %v540 = vld [vmem:[#allocation5 + $0x8f4] sm:$0xf]
    %v541 = vld [vmem:[#allocation5 + $0x8f8] sm:$0xff]
    %v542 = vld [vmem:[#allocation5 + $0x900] sm:$0xff]
    %v543 = vld [vmem:[#allocation5 + $0x908] sm:$0xff]
    %v544 = vld [vmem:[#allocation5 + $0x910] sm:$0xf]
    %v545 = vld [vmem:[#allocation5 + $0x914] sm:$0xff]
    %v546 = vld [vmem:[#allocation5 + $0x91c] sm:$0xff]
    %v547 = vld [vmem:[#allocation5 + $0x924] sm:$0xff]
    %v548 = vld [vmem:[#allocation5 + $0x92c] sm:$0xf]
    %v549 = vld [vmem:[#allocation5 + $0x930] sm:$0xff]
    %v550 = vld [vmem:[#allocation5 + $0x938] sm:$0xff]
    %v551 = vld [vmem:[#allocation5 + $0x940] sm:$0xff]
    %v552 = vld [vmem:[#allocation5 + $0x948] sm:$0xf]
    %v553 = vld [vmem:[#allocation5 + $0x94c] sm:$0xff]
    %v554 = vld [vmem:[#allocation5 + $0x954] sm:$0xff]
    %v555 = vld [vmem:[#allocation5 + $0x95c] sm:$0xff]
    %v556 = vld [vmem:[#allocation5 + $0x964] sm:$0xf]
    %v557 = vld [vmem:[#allocation5 + $0x968] sm:$0xff]
    %v558 = vld [vmem:[#allocation5 + $0x970] sm:$0xff]
    %v559 = vld [vmem:[#allocation5 + $0x978] sm:$0xff]
    %v560 = vld [vmem:[#allocation5 + $0x980] sm:$0xf]
    %v561 = vld [vmem:[#allocation5 + $0x984] sm:$0xff]
    %v562 = vld [vmem:[#allocation5 + $0x98c] sm:$0xff]
    %v563 = vld [vmem:[#allocation5 + $0x994] sm:$0xff]
    %v564 = vld [vmem:[#allocation5 + $0x99c] sm:$0xf]
    %v565 = vld [vmem:[#allocation5 + $0x9a0] sm:$0xff]
    %v566 = vld [vmem:[#allocation5 + $0x9a8] sm:$0xff]
    %v567 = vld [vmem:[#allocation5 + $0x9b0] sm:$0xff]
    %v568 = vld [vmem:[#allocation5 + $0x9b8] sm:$0xf]
    %v569 = vld [vmem:[#allocation5 + $0x9bc] sm:$0xff]
    %v570 = vld [vmem:[#allocation5 + $0x9c4] sm:$0xff]
    %v571 = vld [vmem:[#allocation5 + $0x9cc] sm:$0xff]
    %v572 = vld [vmem:[#allocation5 + $0x9d4] sm:$0xf]
    %v573 = vld [vmem:[#allocation5 + $0x9d8] sm:$0xff]
    %v574 = vld [vmem:[#allocation5 + $0x9e0] sm:$0xff]
    %v575 = vld [vmem:[#allocation5 + $0x9e8] sm:$0xff]
    %v576 = vld [vmem:[#allocation5 + $0x9f0] sm:$0xf]
    %v577 = vld [vmem:[#allocation5 + $0x9f4] sm:$0xff]
    %v578 = vld [vmem:[#allocation5 + $0x9fc] sm:$0xff]
    %v579 = vld [vmem:[#allocation5 + $0xa04] sm:$0xff]
    %v580 = vld [vmem:[#allocation5 + $0xa0c] sm:$0xf]
    %v581 = vld [vmem:[#allocation5 + $0xa10] sm:$0xff]
    %v582 = vld [vmem:[#allocation5 + $0xa18] sm:$0xff]
    %v583 = vld [vmem:[#allocation5 + $0xa20] sm:$0xff]
    %v584 = vld [vmem:[#allocation5 + $0xa28] sm:$0xf]
    %v585 = vld [vmem:[#allocation5 + $0xa2c] sm:$0xff]
    %v586 = vld [vmem:[#allocation5 + $0xa34] sm:$0xff]
    %v587 = vld [vmem:[#allocation5 + $0xa3c] sm:$0xff]
    %v588 = vld [vmem:[#allocation5 + $0xa44] sm:$0xf]
    %v589 = vld [vmem:[#allocation5 + $0xa48] sm:$0xff]
    %v590 = vld [vmem:[#allocation5 + $0xa50] sm:$0xff]
    %v591 = vld [vmem:[#allocation5 + $0xa58] sm:$0xff]
    %v592 = vld [vmem:[#allocation5 + $0xa60] sm:$0xf]
    %v593 = vld [vmem:[#allocation5 + $0xa64] sm:$0xff]
    %v594 = vld [vmem:[#allocation5 + $0xa6c] sm:$0xff]
    %v595 = vld [vmem:[#allocation5 + $0xa74] sm:$0xff]
    %v596 = vld [vmem:[#allocation5 + $0xa7c] sm:$0xf]
    %v597 = vld [vmem:[#allocation5 + $0xa80] sm:$0xff]
    %v598 = vld [vmem:[#allocation5 + $0xa88] sm:$0xff]
    %v599 = vld [vmem:[#allocation5 + $0xa90] sm:$0xff]
    %v600 = vld [vmem:[#allocation5 + $0xa98] sm:$0xf]
    %v601 = vld [vmem:[#allocation5 + $0xa9c] sm:$0xff]
    %v602 = vld [vmem:[#allocation5 + $0xaa4] sm:$0xff]
    %v603 = vld [vmem:[#allocation5 + $0xaac] sm:$0xff]
    %v604 = vld [vmem:[#allocation5 + $0xab4] sm:$0xf]
    %v605 = vld [vmem:[#allocation5 + $0xab8] sm:$0xff]
    %v606 = vld [vmem:[#allocation5 + $0xac0] sm:$0xff]
    %v607 = vld [vmem:[#allocation5 + $0xac8] sm:$0xff]
    %v608 = vld [vmem:[#allocation5 + $0xad0] sm:$0xf]
    %v609 = vld [vmem:[#allocation5 + $0xad4] sm:$0xff]
    %v610 = vld [vmem:[#allocation5 + $0xadc] sm:$0xff]
    %v611 = vld [vmem:[#allocation5 + $0xae4] sm:$0xff]
    %v612 = vld [vmem:[#allocation5 + $0xaec] sm:$0xf]
    %v613 = vld [vmem:[#allocation5 + $0xaf0] sm:$0xff]
    %v614 = vld [vmem:[#allocation5 + $0xaf8] sm:$0xff]
    %v615 = vld [vmem:[#allocation5 + $0xb00] sm:$0xff]
    %v616 = vld [vmem:[#allocation5 + $0xb08] sm:$0xf]
    %v617 = vld [vmem:[#allocation5 + $0xb0c] sm:$0xff]
    %v618 = vld [vmem:[#allocation5 + $0xb14] sm:$0xff]
    %v619 = vld [vmem:[#allocation5 + $0xb1c] sm:$0xff]
    %v620 = vld [vmem:[#allocation5 + $0xb24] sm:$0xf]
    %v621 = vld [vmem:[#allocation5 + $0xb28] sm:$0xff]
    %v622 = vld [vmem:[#allocation5 + $0xb30] sm:$0xff]
    %v623 = vld [vmem:[#allocation5 + $0xb38] sm:$0xff]
    %v624 = vld [vmem:[#allocation5 + $0xb40] sm:$0xf]
    %v625 = vld [vmem:[#allocation5 + $0xb44] sm:$0xff]
    %v626 = vld [vmem:[#allocation5 + $0xb4c] sm:$0xff]
    %v627 = vld [vmem:[#allocation5 + $0xb54] sm:$0xff]
    %v628 = vld [vmem:[#allocation5 + $0xb5c] sm:$0xf]
    %v629 = vld [vmem:[#allocation5 + $0xb60] sm:$0xff]
    %v630 = vld [vmem:[#allocation5 + $0xb68] sm:$0xff]
    %v631 = vld [vmem:[#allocation5 + $0xb70] sm:$0xff]
    %v632 = vld [vmem:[#allocation5 + $0xb78] sm:$0xf]
    %v633 = vld [vmem:[#allocation5 + $0xb7c] sm:$0xff]
    %v634 = vld [vmem:[#allocation5 + $0xb84] sm:$0xff]
    %v635 = vld [vmem:[#allocation5 + $0xb8c] sm:$0xff]
    %v636 = vld [vmem:[#allocation5 + $0xb94] sm:$0xf]
    %v637 = vld [vmem:[#allocation5 + $0xb98] sm:$0xff]
    %v638 = vld [vmem:[#allocation5 + $0xba0] sm:$0xff]
    %v639 = vld [vmem:[#allocation5 + $0xba8] sm:$0xff]
    %v640 = vld [vmem:[#allocation5 + $0xbb0] sm:$0xf]
    %v641 = vld [vmem:[#allocation5 + $0xbb4] sm:$0xff]
    %v642 = vld [vmem:[#allocation5 + $0xbbc] sm:$0xff]
    %v643 = vld [vmem:[#allocation5 + $0xbc4] sm:$0xff]
    %v644 = vld [vmem:[#allocation5 + $0xbcc] sm:$0xf]
    %v645 = vld [vmem:[#allocation5 + $0xbd0] sm:$0xff]
    %v646 = vld [vmem:[#allocation5 + $0xbd8] sm:$0xff]
    %v647 = vld [vmem:[#allocation5 + $0xbe0] sm:$0xff]
    %v648 = vld [vmem:[#allocation5 + $0xbe8] sm:$0xf]
    %v649 = vld [vmem:[#allocation5 + $0xbec] sm:$0xff]
    %v650 = vld [vmem:[#allocation5 + $0xbf4] sm:$0xff]
    %v651 = vld [vmem:[#allocation5 + $0xbfc] sm:$0xff]
    %v652 = vld [vmem:[#allocation5 + $0xc04] sm:$0xf]
    %v653 = vld [vmem:[#allocation5 + $0xc08] sm:$0xff]
    %v654 = vld [vmem:[#allocation5 + $0xc10] sm:$0xff]
    %v655 = vld [vmem:[#allocation5 + $0xc18] sm:$0xff]
    %v656 = vld [vmem:[#allocation5 + $0xc20] sm:$0xf]
    %v657 = vld [vmem:[#allocation5 + $0xc24] sm:$0xff]
    %v658 = vld [vmem:[#allocation5 + $0xc2c] sm:$0xff]
    %v659 = vld [vmem:[#allocation5 + $0xc34] sm:$0xff]
    %v660 = vld [vmem:[#allocation5 + $0xc3c] sm:$0xf]
    %v661 = vld [vmem:[#allocation5 + $0xc40] sm:$0xff]
    %v662 = vld [vmem:[#allocation5 + $0xc48] sm:$0xff]
    %v663 = vld [vmem:[#allocation5 + $0xc50] sm:$0xff]
    %v664 = vld [vmem:[#allocation5 + $0xc58] sm:$0xf]
    %v665 = vld [vmem:[#allocation5 + $0xc5c] sm:$0xff]
    %v666 = vld [vmem:[#allocation5 + $0xc64] sm:$0xff]
    %v667 = vld [vmem:[#allocation5 + $0xc6c] sm:$0xff]
    %v668 = vld [vmem:[#allocation5 + $0xc74] sm:$0xf]
    %v669 = vld [vmem:[#allocation5 + $0xc78] sm:$0xff]
    %v670 = vld [vmem:[#allocation5 + $0xc80] sm:$0xff]
    %v671 = vld [vmem:[#allocation5 + $0xc88] sm:$0xff]
    %v672 = vld [vmem:[#allocation5 + $0xc90] sm:$0xf]
    %v673 = vld [vmem:[#allocation5 + $0xc94] sm:$0xff]
    %v674 = vld [vmem:[#allocation5 + $0xc9c] sm:$0xff]
    %v675 = vld [vmem:[#allocation5 + $0xca4] sm:$0xff]
    %v676 = vld [vmem:[#allocation5 + $0xcac] sm:$0xf]
    %v677 = vld [vmem:[#allocation5 + $0xcb0] sm:$0xff]
    %v678 = vld [vmem:[#allocation5 + $0xcb8] sm:$0xff]
    %v679 = vld [vmem:[#allocation5 + $0xcc0] sm:$0xff]
    %v680 = vld [vmem:[#allocation5 + $0xcc8] sm:$0xf]
    %v681 = vld [vmem:[#allocation5 + $0xccc] sm:$0xff]
    %v682 = vld [vmem:[#allocation5 + $0xcd4] sm:$0xff]
    %v683 = vld [vmem:[#allocation5 + $0xcdc] sm:$0xff]
    %v684 = vld [vmem:[#allocation5 + $0xce4] sm:$0xf]
    %v685 = vld [vmem:[#allocation5 + $0xce8] sm:$0xff]
    %v686 = vld [vmem:[#allocation5 + $0xcf0] sm:$0xff]
    %v687 = vld [vmem:[#allocation5 + $0xcf8] sm:$0xff]
    %v688 = vld [vmem:[#allocation5 + $0xd00] sm:$0xf]
    %v689 = vld [vmem:[#allocation5 + $0xd04] sm:$0xff]
    %v690 = vld [vmem:[#allocation5 + $0xd0c] sm:$0xff]
    %v691 = vld [vmem:[#allocation5 + $0xd14] sm:$0xff]
    %v692 = vld [vmem:[#allocation5 + $0xd1c] sm:$0xf]
    %v693 = vld [vmem:[#allocation5 + $0xd20] sm:$0xff]
    %v694 = vld [vmem:[#allocation5 + $0xd28] sm:$0xff]
    %v695 = vld [vmem:[#allocation5 + $0xd30] sm:$0xff]
    %v696 = vld [vmem:[#allocation5 + $0xd38] sm:$0xf]
    %v697 = vld [vmem:[#allocation5 + $0xd3c] sm:$0xff]
    %v698 = vld [vmem:[#allocation5 + $0xd44] sm:$0xff]
    %v699 = vld [vmem:[#allocation5 + $0xd4c] sm:$0xff]
    %v700 = vld [vmem:[#allocation5 + $0xd54] sm:$0xf]
    %v701 = vld [vmem:[#allocation5 + $0xd58] sm:$0xff]
    %v702 = vld [vmem:[#allocation5 + $0xd60] sm:$0xff]
    %v703 = vld [vmem:[#allocation5 + $0xd68] sm:$0xff]
    %v704 = vld [vmem:[#allocation5 + $0xd70] sm:$0xf]
    %v705 = vld [vmem:[#allocation5 + $0xd74] sm:$0xff]
    %v706 = vld [vmem:[#allocation5 + $0xd7c] sm:$0xff]
    %v707 = vld [vmem:[#allocation5 + $0xd84] sm:$0xff]
    %v708 = vld [vmem:[#allocation5 + $0xd8c] sm:$0xf]
    %v709 = vld [vmem:[#allocation5 + $0xd90] sm:$0xff]
    %v710 = vld [vmem:[#allocation5 + $0xd98] sm:$0xff]
    %v711 = vld [vmem:[#allocation5 + $0xda0] sm:$0xff]
    %v712 = vld [vmem:[#allocation5 + $0xda8] sm:$0xf]
    %v713 = vld [vmem:[#allocation5 + $0xdac] sm:$0xff]
    %v714 = vld [vmem:[#allocation5 + $0xdb4] sm:$0xff]
    %v715 = vld [vmem:[#allocation5 + $0xdbc] sm:$0xff]
    %v716 = vld [vmem:[#allocation5 + $0xdc4] sm:$0xf]
    %v717 = vld [vmem:[#allocation5 + $0xdc8] sm:$0xff]
    %v718 = vld [vmem:[#allocation5 + $0xdd0] sm:$0xff]
    %v719 = vld [vmem:[#allocation5 + $0xdd8] sm:$0xff]
    %v720 = vld [vmem:[#allocation5 + $0xde0] sm:$0xf]
    %v721 = vld [vmem:[#allocation5 + $0xde4] sm:$0xff]
    %v722 = vld [vmem:[#allocation5 + $0xdec] sm:$0xff]
    %v723 = vld [vmem:[#allocation5 + $0xdf4] sm:$0xff]
    %v724 = vld [vmem:[#allocation5 + $0xdfc] sm:$0xf]
    %v725 = vld [vmem:[#allocation5 + $0xe00] sm:$0xff]
    %v726 = vld [vmem:[#allocation5 + $0xe08] sm:$0xff]
    %v727 = vld [vmem:[#allocation5 + $0xe10] sm:$0xff]
    %v728 = vld [vmem:[#allocation5 + $0xe18] sm:$0xf]
    %v729 = vld [vmem:[#allocation5 + $0xe1c] sm:$0xff]
    %v730 = vld [vmem:[#allocation5 + $0xe24] sm:$0xff]
    %v731 = vld [vmem:[#allocation5 + $0xe2c] sm:$0xff]
    %v732 = vld [vmem:[#allocation5 + $0xe34] sm:$0xf]
    %v733 = vld [vmem:[#allocation5 + $0xe38] sm:$0xff]
    %v734 = vld [vmem:[#allocation5 + $0xe40] sm:$0xff]
    %v735 = vld [vmem:[#allocation5 + $0xe48] sm:$0xff]
    %v736 = vld [vmem:[#allocation5 + $0xe50] sm:$0xf]
    %v737 = vld [vmem:[#allocation5 + $0xe54] sm:$0xff]
    %v738 = vld [vmem:[#allocation5 + $0xe5c] sm:$0xff]
    %v739 = vld [vmem:[#allocation5 + $0xe64] sm:$0xff]
    %v740 = vld [vmem:[#allocation5 + $0xe6c] sm:$0xf]
    %v741 = vld [vmem:[#allocation5 + $0xe70] sm:$0xff]
    %v742 = vld [vmem:[#allocation5 + $0xe78] sm:$0xff]
    %v743 = vld [vmem:[#allocation5 + $0xe80] sm:$0xff]
    %v744 = vld [vmem:[#allocation5 + $0xe88] sm:$0xf]
    %v745 = vld [vmem:[#allocation5 + $0xe8c] sm:$0xff]
    %v746 = vld [vmem:[#allocation5 + $0xe94] sm:$0xff]
    %v747 = vld [vmem:[#allocation5 + $0xe9c] sm:$0xff]
    %v748 = vld [vmem:[#allocation5 + $0xea4] sm:$0xf]
    %v749 = vld [vmem:[#allocation5 + $0xea8] sm:$0xff]
    %v750 = vld [vmem:[#allocation5 + $0xeb0] sm:$0xff]
    %v751 = vld [vmem:[#allocation5 + $0xeb8] sm:$0xff]
    %v752 = vld [vmem:[#allocation5 + $0xec0] sm:$0xf]
    %v753 = vld [vmem:[#allocation5 + $0xec4] sm:$0xff]
    %v754 = vld [vmem:[#allocation5 + $0xecc] sm:$0xff]
    %v755 = vld [vmem:[#allocation5 + $0xed4] sm:$0xff]
    %v756 = vld [vmem:[#allocation5 + $0xedc] sm:$0xf]
    %v757 = vld [vmem:[#allocation5 + $0xee0] sm:$0xff]
    %v758 = vld [vmem:[#allocation5 + $0xee8] sm:$0xff]
    %v759 = vld [vmem:[#allocation5 + $0xef0] sm:$0xff]
    %v760 = vld [vmem:[#allocation5 + $0xef8] sm:$0xf]
    %v761 = vld [vmem:[#allocation5 + $0xefc] sm:$0xff]
    %v762 = vld [vmem:[#allocation5 + $0xf04] sm:$0xff]
    %v763 = vld [vmem:[#allocation5 + $0xf0c] sm:$0xff]
    %v764 = vld [vmem:[#allocation5 + $0xf14] sm:$0xf]
    %v765 = vld [vmem:[#allocation5 + $0xf18] sm:$0xff]
    %v766 = vld [vmem:[#allocation5 + $0xf20] sm:$0xff]
    %v767 = vld [vmem:[#allocation5 + $0xf28] sm:$0xff]
    %v768 = vld [vmem:[#allocation5 + $0xf30] sm:$0xf]
    %v769 = vld [vmem:[#allocation5 + $0xf34] sm:$0xff]
    %v770 = vld [vmem:[#allocation5 + $0xf3c] sm:$0xff]
    %v771 = vld [vmem:[#allocation5 + $0xf44] sm:$0xff]
    %v772 = vld [vmem:[#allocation5 + $0xf4c] sm:$0xf]
    %v773 = vld [vmem:[#allocation5 + $0xf50] sm:$0xff]
    %v774 = vld [vmem:[#allocation5 + $0xf58] sm:$0xff]
    %v775 = vld [vmem:[#allocation5 + $0xf60] sm:$0xff]
    %v776 = vld [vmem:[#allocation5 + $0xf68] sm:$0xf]
    %v777 = vld [vmem:[#allocation5 + $0xf6c] sm:$0xff]
    %v778 = vld [vmem:[#allocation5 + $0xf74] sm:$0xff]
    %v779 = vld [vmem:[#allocation5 + $0xf7c] sm:$0xff]
    %v780 = vld [vmem:[#allocation5 + $0xf84] sm:$0xf]
    %v781 = vld [vmem:[#allocation5 + $0xf88] sm:$0xff]
    %v782 = vld [vmem:[#allocation5 + $0xf90] sm:$0xff]
    %v783 = vld [vmem:[#allocation5 + $0xf98] sm:$0xff]
    %v784 = vld [vmem:[#allocation5 + $0xfa0] sm:$0xf]
    %v785 = vld [vmem:[#allocation5 + $0xfa4] sm:$0xff]
    %v786 = vld [vmem:[#allocation5 + $0xfac] sm:$0xff]
    %v787 = vld [vmem:[#allocation5 + $0xfb4] sm:$0xff]
    %v788 = vld [vmem:[#allocation5 + $0xfbc] sm:$0xf]
    %v789 = vld [vmem:[#allocation7] sm:$0xff]
    %v791 = vlaneseq
    %v792 = vshrl.u32 %v791, 7
    %v793 = vsub.s32 0, %v792
    %v794 = vrot.slane %v789, %v793
    %v795 = vlaneseq
    %v796 = vshrl.u32 %v795, 7
    %v797 = vsub.s32 1, %v796
    %v798 = vrot.slane %v789, %v797
    %v799 = vlaneseq
    %v800 = vshrl.u32 %v799, 7
    %v801 = vsub.s32 2, %v800
    %v802 = vrot.slane %v789, %v801
    %v803 = vlaneseq
    %v804 = vshrl.u32 %v803, 7
    %v805 = vsub.s32 3, %v804
    %v806 = vrot.slane %v789, %v805
    %v807 = vlaneseq
    %v808 = vshrl.u32 %v807, 7
    %v809 = vsub.s32 4, %v808
    %v810 = vrot.slane %v789, %v809
    %v811 = vlaneseq
    %v812 = vshrl.u32 %v811, 7
    %v813 = vsub.s32 5, %v812
    %v814 = vrot.slane %v789, %v813
    %v815 = vlaneseq
    %v816 = vshrl.u32 %v815, 7
    %v817 = vsub.s32 6, %v816
    %v818 = vrot.slane %v789, %v817
    %v831 = vunpack.c.l.b16 %v208
    %v832 = vunpack.c.h.b16 %v208
    %v833 = vunpack.c.l.b16 %v209
    %v834 = vunpack.c.h.b16 %v209
    %v835 = vunpack.c.l.b16 %v210
    %v836 = vunpack.c.h.b16 %v210
    %v837 = vunpack.c.l.b16 %v211
    %v838 = vunpack.c.h.b16 %v211
    %v839 = vunpack.c.l.b16 %v212
    %v840 = vpack.c.b16 %v831, %v831
    %v841 = vpack.c.b16 %v832, %v832
    %v842 = vpack.c.b16 %v833, %v833
    %v843 = vpack.c.b16 %v834, %v834
    %v844 = vpack.c.b16 %v835, %v835
    %v845 = vpack.c.b16 %v836, %v836
    %v846 = vpack.c.b16 %v837, %v837
    %v847 = vpack.c.b16 %v838, %v838
    %v848 = vpack.c.b16 %v839, %v839
    %v1434 = vunpack.c.l.b16 %v213
    %v1435 = vunpack.c.h.b16 %v213
    %v1436 = vunpack.c.l.b16 %v214
    %v1437 = vunpack.c.h.b16 %v214
    %v1438 = vunpack.c.l.b16 %v215
    %v1439 = vunpack.c.h.b16 %v215
    %v1440 = vunpack.c.l.b16 %v216
    %v1441 = vunpack.c.l.b16 %v217
    %v1442 = vunpack.c.h.b16 %v217
    %v1443 = vunpack.c.l.b16 %v218
    %v1444 = vunpack.c.h.b16 %v218
    %v1445 = vunpack.c.l.b16 %v219
    %v1446 = vunpack.c.h.b16 %v219
    %v1447 = vunpack.c.l.b16 %v220
    %v1448 = vunpack.c.l.b16 %v221
    %v1449 = vunpack.c.h.b16 %v221
    %v1450 = vunpack.c.l.b16 %v222
    %v1451 = vunpack.c.h.b16 %v222
    %v1452 = vunpack.c.l.b16 %v223
    %v1453 = vunpack.c.h.b16 %v223
    %v1454 = vunpack.c.l.b16 %v224
    %v1455 = vunpack.c.l.b16 %v225
    %v1456 = vunpack.c.h.b16 %v225
    %v1457 = vunpack.c.l.b16 %v226
    %v1458 = vunpack.c.h.b16 %v226
    %v1459 = vunpack.c.l.b16 %v227
    %v1460 = vunpack.c.h.b16 %v227
    %v1461 = vunpack.c.l.b16 %v228
    %v1462 = vunpack.c.l.b16 %v229
    %v1463 = vunpack.c.h.b16 %v229
    %v1464 = vunpack.c.l.b16 %v230
    %v1465 = vunpack.c.h.b16 %v230
    %v1466 = vunpack.c.l.b16 %v231
    %v1467 = vunpack.c.h.b16 %v231
    %v1468 = vunpack.c.l.b16 %v232
    %v1469 = vunpack.c.l.b16 %v233
    %v1470 = vunpack.c.h.b16 %v233
    %v1471 = vunpack.c.l.b16 %v234
    %v1472 = vunpack.c.h.b16 %v234
    %v1473 = vunpack.c.l.b16 %v235
    %v1474 = vunpack.c.h.b16 %v235
    %v1475 = vunpack.c.l.b16 %v236
    %v1476 = vunpack.c.l.b16 %v237
    %v1477 = vunpack.c.h.b16 %v237
    %v1478 = vunpack.c.l.b16 %v238
    %v1479 = vunpack.c.h.b16 %v238
    %v1480 = vunpack.c.l.b16 %v239
    %v1481 = vunpack.c.h.b16 %v239
    %v1482 = vunpack.c.l.b16 %v240
    %v1483 = vunpack.c.l.b16 %v241
    %v1484 = vunpack.c.h.b16 %v241
    %v1485 = vunpack.c.l.b16 %v242
    %v1486 = vunpack.c.h.b16 %v242
    %v1487 = vunpack.c.l.b16 %v243
    %v1488 = vunpack.c.h.b16 %v243
    %v1489 = vunpack.c.l.b16 %v244
    %v1490 = vunpack.c.l.b16 %v245
    %v1491 = vunpack.c.h.b16 %v245
    %v1492 = vunpack.c.l.b16 %v246
    %v1493 = vunpack.c.h.b16 %v246
    %v1494 = vunpack.c.l.b16 %v247
    %v1495 = vunpack.c.h.b16 %v247
    %v1496 = vunpack.c.l.b16 %v248
    %v1497 = vunpack.c.l.b16 %v249
    %v1498 = vunpack.c.h.b16 %v249
    %v1499 = vunpack.c.l.b16 %v250
    %v1500 = vunpack.c.h.b16 %v250
    %v1501 = vunpack.c.l.b16 %v251
    %v1502 = vunpack.c.h.b16 %v251
    %v1503 = vunpack.c.l.b16 %v252
    %v1504 = vunpack.c.l.b16 %v253
    %v1505 = vunpack.c.h.b16 %v253
    %v1506 = vunpack.c.l.b16 %v254
    %v1507 = vunpack.c.h.b16 %v254
    %v1508 = vunpack.c.l.b16 %v255
    %v1509 = vunpack.c.h.b16 %v255
    %v1510 = vunpack.c.l.b16 %v256
    %v1511 = vunpack.c.l.b16 %v257
    %v1512 = vunpack.c.h.b16 %v257
    %v1513 = vunpack.c.l.b16 %v258
    %v1514 = vunpack.c.h.b16 %v258
    %v1515 = vunpack.c.l.b16 %v259
    %v1516 = vunpack.c.h.b16 %v259
    %v1517 = vunpack.c.l.b16 %v260
    %v1518 = vunpack.c.l.b16 %v261
    %v1519 = vunpack.c.h.b16 %v261
    %v1520 = vunpack.c.l.b16 %v262
    %v1521 = vunpack.c.h.b16 %v262
    %v1522 = vunpack.c.l.b16 %v263
    %v1523 = vunpack.c.h.b16 %v263
    %v1524 = vunpack.c.l.b16 %v264
    %v1525 = vunpack.c.l.b16 %v265
    %v1526 = vunpack.c.h.b16 %v265
    %v1527 = vunpack.c.l.b16 %v266
    %v1528 = vunpack.c.h.b16 %v266
    %v1529 = vunpack.c.l.b16 %v267
    %v1530 = vunpack.c.h.b16 %v267
    %v1531 = vunpack.c.l.b16 %v268
    %v1532 = vunpack.c.l.b16 %v269
    %v1533 = vunpack.c.h.b16 %v269
    %v1534 = vunpack.c.l.b16 %v270
    %v1535 = vunpack.c.h.b16 %v270
    %v1536 = vunpack.c.l.b16 %v271
    %v1537 = vunpack.c.h.b16 %v271
    %v1538 = vunpack.c.l.b16 %v272
    %v1539 = vunpack.c.l.b16 %v273
    %v1540 = vunpack.c.h.b16 %v273
    %v1541 = vunpack.c.l.b16 %v274
    %v1542 = vunpack.c.h.b16 %v274
    %v1543 = vunpack.c.l.b16 %v275
    %v1544 = vunpack.c.h.b16 %v275
    %v1545 = vunpack.c.l.b16 %v276
    %v1546 = vunpack.c.l.b16 %v277
    %v1547 = vunpack.c.h.b16 %v277
    %v1548 = vunpack.c.l.b16 %v278
    %v1549 = vunpack.c.h.b16 %v278
    %v1550 = vunpack.c.l.b16 %v279
    %v1551 = vunpack.c.h.b16 %v279
    %v1552 = vunpack.c.l.b16 %v280
    %v1553 = vunpack.c.l.b16 %v281
    %v1554 = vunpack.c.h.b16 %v281
    %v1555 = vunpack.c.l.b16 %v282
    %v1556 = vunpack.c.h.b16 %v282
    %v1557 = vunpack.c.l.b16 %v283
    %v1558 = vunpack.c.h.b16 %v283
    %v1559 = vunpack.c.l.b16 %v284
    %v1560 = vunpack.c.l.b16 %v285
    %v1561 = vunpack.c.h.b16 %v285
    %v1562 = vunpack.c.l.b16 %v286
    %v1563 = vunpack.c.h.b16 %v286
    %v1564 = vunpack.c.l.b16 %v287
    %v1565 = vunpack.c.h.b16 %v287
    %v1566 = vunpack.c.l.b16 %v288
    %v1567 = vunpack.c.l.b16 %v289
    %v1568 = vunpack.c.h.b16 %v289
    %v1569 = vunpack.c.l.b16 %v290
    %v1570 = vunpack.c.h.b16 %v290
    %v1571 = vunpack.c.l.b16 %v291
    %v1572 = vunpack.c.h.b16 %v291
    %v1573 = vunpack.c.l.b16 %v292
    %v1574 = vunpack.c.l.b16 %v293
    %v1575 = vunpack.c.h.b16 %v293
    %v1576 = vunpack.c.l.b16 %v294
    %v1577 = vunpack.c.h.b16 %v294
    %v1578 = vunpack.c.l.b16 %v295
    %v1579 = vunpack.c.h.b16 %v295
    %v1580 = vunpack.c.l.b16 %v296
    %v1581 = vunpack.c.l.b16 %v297
    %v1582 = vunpack.c.h.b16 %v297
    %v1583 = vunpack.c.l.b16 %v298
    %v1584 = vunpack.c.h.b16 %v298
    %v1585 = vunpack.c.l.b16 %v299
    %v1586 = vunpack.c.h.b16 %v299
    %v1587 = vunpack.c.l.b16 %v300
    %v1588 = vunpack.c.l.b16 %v301
    %v1589 = vunpack.c.h.b16 %v301
    %v1590 = vunpack.c.l.b16 %v302
    %v1591 = vunpack.c.h.b16 %v302
    %v1592 = vunpack.c.l.b16 %v303
    %v1593 = vunpack.c.h.b16 %v303
    %v1594 = vunpack.c.l.b16 %v304
    %v1595 = vunpack.c.l.b16 %v305
    %v1596 = vunpack.c.h.b16 %v305
    %v1597 = vunpack.c.l.b16 %v306
    %v1598 = vunpack.c.h.b16 %v306
    %v1599 = vunpack.c.l.b16 %v307
    %v1600 = vunpack.c.h.b16 %v307
    %v1601 = vunpack.c.l.b16 %v308
    %v1602 = vunpack.c.l.b16 %v309
    %v1603 = vunpack.c.h.b16 %v309
    %v1604 = vunpack.c.l.b16 %v310
    %v1605 = vunpack.c.h.b16 %v310
    %v1606 = vunpack.c.l.b16 %v311
    %v1607 = vunpack.c.h.b16 %v311
    %v1608 = vunpack.c.l.b16 %v312
    %v1609 = vunpack.c.l.b16 %v313
    %v1610 = vunpack.c.h.b16 %v313
    %v1611 = vunpack.c.l.b16 %v314
    %v1612 = vunpack.c.h.b16 %v314
    %v1613 = vunpack.c.l.b16 %v315
    %v1614 = vunpack.c.h.b16 %v315
    %v1615 = vunpack.c.l.b16 %v316
    %v1616 = vunpack.c.l.b16 %v317
    %v1617 = vunpack.c.h.b16 %v317
    %v1618 = vunpack.c.l.b16 %v318
    %v1619 = vunpack.c.h.b16 %v318
    %v1620 = vunpack.c.l.b16 %v319
    %v1621 = vunpack.c.h.b16 %v319
    %v1622 = vunpack.c.l.b16 %v320
    %v1623 = vunpack.c.l.b16 %v321
    %v1624 = vunpack.c.h.b16 %v321
    %v1625 = vunpack.c.l.b16 %v322
    %v1626 = vunpack.c.h.b16 %v322
    %v1627 = vunpack.c.l.b16 %v323
    %v1628 = vunpack.c.h.b16 %v323
    %v1629 = vunpack.c.l.b16 %v324
    %v1630 = vunpack.c.l.b16 %v325
    %v1631 = vunpack.c.h.b16 %v325
    %v1632 = vunpack.c.l.b16 %v326
    %v1633 = vunpack.c.h.b16 %v326
    %v1634 = vunpack.c.l.b16 %v327
    %v1635 = vunpack.c.h.b16 %v327
    %v1636 = vunpack.c.l.b16 %v328
    %v1637 = vunpack.c.l.b16 %v329
    %v1638 = vunpack.c.h.b16 %v329
    %v1639 = vunpack.c.l.b16 %v330
    %v1640 = vunpack.c.h.b16 %v330
    %v1641 = vunpack.c.l.b16 %v331
    %v1642 = vunpack.c.h.b16 %v331
    %v1643 = vunpack.c.l.b16 %v332
    %v1644 = vunpack.c.l.b16 %v333
    %v1645 = vunpack.c.h.b16 %v333
    %v1646 = vunpack.c.l.b16 %v334
    %v1647 = vunpack.c.h.b16 %v334
    %v1648 = vunpack.c.l.b16 %v335
    %v1649 = vunpack.c.h.b16 %v335
    %v1650 = vunpack.c.l.b16 %v336
    %v1651 = vunpack.c.l.b16 %v337
    %v1652 = vunpack.c.h.b16 %v337
    %v1653 = vunpack.c.l.b16 %v338
    %v1654 = vunpack.c.h.b16 %v338
    %v1655 = vunpack.c.l.b16 %v339
    %v1656 = vunpack.c.h.b16 %v339
    %v1657 = vunpack.c.l.b16 %v340
    %v1658 = vunpack.c.l.b16 %v341
    %v1659 = vunpack.c.h.b16 %v341
    %v1660 = vunpack.c.l.b16 %v342
    %v1661 = vunpack.c.h.b16 %v342
    %v1662 = vunpack.c.l.b16 %v343
    %v1663 = vunpack.c.h.b16 %v343
    %v1664 = vunpack.c.l.b16 %v344
    %v1665 = vunpack.c.l.b16 %v345
    %v1666 = vunpack.c.h.b16 %v345
    %v1667 = vunpack.c.l.b16 %v346
    %v1668 = vunpack.c.h.b16 %v346
    %v1669 = vunpack.c.l.b16 %v347
    %v1670 = vunpack.c.h.b16 %v347
    %v1671 = vunpack.c.l.b16 %v348
    %v1672 = vunpack.c.l.b16 %v349
    %v1673 = vunpack.c.h.b16 %v349
    %v1674 = vunpack.c.l.b16 %v350
    %v1675 = vunpack.c.h.b16 %v350
    %v1676 = vunpack.c.l.b16 %v351
    %v1677 = vunpack.c.h.b16 %v351
    %v1678 = vunpack.c.l.b16 %v352
    %v1679 = vunpack.c.l.b16 %v353
    %v1680 = vunpack.c.h.b16 %v353
    %v1681 = vunpack.c.l.b16 %v354
    %v1682 = vunpack.c.h.b16 %v354
    %v1683 = vunpack.c.l.b16 %v355
    %v1684 = vunpack.c.h.b16 %v355
    %v1685 = vunpack.c.l.b16 %v356
    %v1686 = vunpack.c.l.b16 %v357
    %v1687 = vunpack.c.h.b16 %v357
    %v1688 = vunpack.c.l.b16 %v358
    %v1689 = vunpack.c.h.b16 %v358
    %v1690 = vunpack.c.l.b16 %v359
    %v1691 = vunpack.c.h.b16 %v359
    %v1692 = vunpack.c.l.b16 %v360
    %v1693 = vunpack.c.l.b16 %v361
    %v1694 = vunpack.c.h.b16 %v361
    %v1695 = vunpack.c.l.b16 %v362
    %v1696 = vunpack.c.h.b16 %v362
    %v1697 = vunpack.c.l.b16 %v363
    %v1698 = vunpack.c.h.b16 %v363
    %v1699 = vunpack.c.l.b16 %v364
    %v1700 = vunpack.c.l.b16 %v365
    %v1701 = vunpack.c.h.b16 %v365
    %v1702 = vunpack.c.l.b16 %v366
    %v1703 = vunpack.c.h.b16 %v366
    %v1704 = vunpack.c.l.b16 %v367
    %v1705 = vunpack.c.h.b16 %v367
    %v1706 = vunpack.c.l.b16 %v368
    %v1707 = vunpack.c.l.b16 %v369
    %v1708 = vunpack.c.h.b16 %v369
    %v1709 = vunpack.c.l.b16 %v370
    %v1710 = vunpack.c.h.b16 %v370
    %v1711 = vunpack.c.l.b16 %v371
    %v1712 = vunpack.c.h.b16 %v371
    %v1713 = vunpack.c.l.b16 %v372
    %v1714 = vunpack.c.l.b16 %v373
    %v1715 = vunpack.c.h.b16 %v373
    %v1716 = vunpack.c.l.b16 %v374
    %v1717 = vunpack.c.h.b16 %v374
    %v1718 = vunpack.c.l.b16 %v375
    %v1719 = vunpack.c.h.b16 %v375
    %v1720 = vunpack.c.l.b16 %v376
    %v1721 = vunpack.c.l.b16 %v377
    %v1722 = vunpack.c.h.b16 %v377
    %v1723 = vunpack.c.l.b16 %v378
    %v1724 = vunpack.c.h.b16 %v378
    %v1725 = vunpack.c.l.b16 %v379
    %v1726 = vunpack.c.h.b16 %v379
    %v1727 = vunpack.c.l.b16 %v380
    %v1728 = vunpack.c.l.b16 %v381
    %v1729 = vunpack.c.h.b16 %v381
    %v1730 = vunpack.c.l.b16 %v382
    %v1731 = vunpack.c.h.b16 %v382
    %v1732 = vunpack.c.l.b16 %v383
    %v1733 = vunpack.c.h.b16 %v383
    %v1734 = vunpack.c.l.b16 %v384
    %v1735 = vunpack.c.l.b16 %v385
    %v1736 = vunpack.c.h.b16 %v385
    %v1737 = vunpack.c.l.b16 %v386
    %v1738 = vunpack.c.h.b16 %v386
    %v1739 = vunpack.c.l.b16 %v387
    %v1740 = vunpack.c.h.b16 %v387
    %v1741 = vunpack.c.l.b16 %v388
    %v1742 = vunpack.c.l.b16 %v389
    %v1743 = vunpack.c.h.b16 %v389
    %v1744 = vunpack.c.l.b16 %v390
    %v1745 = vunpack.c.h.b16 %v390
    %v1746 = vunpack.c.l.b16 %v391
    %v1747 = vunpack.c.h.b16 %v391
    %v1748 = vunpack.c.l.b16 %v392
    %v1749 = vunpack.c.l.b16 %v393
    %v1750 = vunpack.c.h.b16 %v393
    %v1751 = vunpack.c.l.b16 %v394
    %v1752 = vunpack.c.h.b16 %v394
    %v1753 = vunpack.c.l.b16 %v395
    %v1754 = vunpack.c.h.b16 %v395
    %v1755 = vunpack.c.l.b16 %v396
    %v1756 = vunpack.c.l.b16 %v397
    %v1757 = vunpack.c.h.b16 %v397
    %v1758 = vunpack.c.l.b16 %v398
    %v1759 = vunpack.c.h.b16 %v398
    %v1760 = vunpack.c.l.b16 %v399
    %v1761 = vunpack.c.h.b16 %v399
    %v1762 = vunpack.c.l.b16 %v400
    %v1763 = vunpack.c.l.b16 %v401
    %v1764 = vunpack.c.h.b16 %v401
    %v1765 = vunpack.c.l.b16 %v402
    %v1766 = vunpack.c.h.b16 %v402
    %v1767 = vunpack.c.l.b16 %v403
    %v1768 = vunpack.c.h.b16 %v403
    %v1769 = vunpack.c.l.b16 %v404
    %v1770 = vunpack.c.l.b16 %v405
    %v1771 = vunpack.c.h.b16 %v405
    %v1772 = vunpack.c.l.b16 %v406
    %v1773 = vunpack.c.h.b16 %v406
    %v1774 = vunpack.c.l.b16 %v407
    %v1775 = vunpack.c.h.b16 %v407
    %v1776 = vunpack.c.l.b16 %v408
    %v1777 = vunpack.c.l.b16 %v409
    %v1778 = vunpack.c.h.b16 %v409
    %v1779 = vunpack.c.l.b16 %v410
    %v1780 = vunpack.c.h.b16 %v410
    %v1781 = vunpack.c.l.b16 %v411
    %v1782 = vunpack.c.h.b16 %v411
    %v1783 = vunpack.c.l.b16 %v412
    %v1784 = vunpack.c.l.b16 %v413
    %v1785 = vunpack.c.h.b16 %v413
    %v1786 = vunpack.c.l.b16 %v414
    %v1787 = vunpack.c.h.b16 %v414
    %v1788 = vunpack.c.l.b16 %v415
    %v1789 = vunpack.c.h.b16 %v415
    %v1790 = vunpack.c.l.b16 %v416
    %v1791 = vunpack.c.l.b16 %v417
    %v1792 = vunpack.c.h.b16 %v417
    %v1793 = vunpack.c.l.b16 %v418
    %v1794 = vunpack.c.h.b16 %v418
    %v1795 = vunpack.c.l.b16 %v419
    %v1796 = vunpack.c.h.b16 %v419
    %v1797 = vunpack.c.l.b16 %v420
    %v1798 = vunpack.c.l.b16 %v421
    %v1799 = vunpack.c.h.b16 %v421
    %v1800 = vunpack.c.l.b16 %v422
    %v1801 = vunpack.c.h.b16 %v422
    %v1802 = vunpack.c.l.b16 %v423
    %v1803 = vunpack.c.h.b16 %v423
    %v1804 = vunpack.c.l.b16 %v424
    %v1805 = vunpack.c.l.b16 %v425
    %v1806 = vunpack.c.h.b16 %v425
    %v1807 = vunpack.c.l.b16 %v426
    %v1808 = vunpack.c.h.b16 %v426
    %v1809 = vunpack.c.l.b16 %v427
    %v1810 = vunpack.c.h.b16 %v427
    %v1811 = vunpack.c.l.b16 %v428
    %v1812 = vunpack.c.l.b16 %v429
    %v1813 = vunpack.c.h.b16 %v429
    %v1814 = vunpack.c.l.b16 %v430
    %v1815 = vunpack.c.h.b16 %v430
    %v1816 = vunpack.c.l.b16 %v431
    %v1817 = vunpack.c.h.b16 %v431
    %v1818 = vunpack.c.l.b16 %v432
    %v1819 = vunpack.c.l.b16 %v433
    %v1820 = vunpack.c.h.b16 %v433
    %v1821 = vunpack.c.l.b16 %v434
    %v1822 = vunpack.c.h.b16 %v434
    %v1823 = vunpack.c.l.b16 %v435
    %v1824 = vunpack.c.h.b16 %v435
    %v1825 = vunpack.c.l.b16 %v436
    %v1826 = vunpack.c.l.b16 %v437
    %v1827 = vunpack.c.h.b16 %v437
    %v1828 = vunpack.c.l.b16 %v438
    %v1829 = vunpack.c.h.b16 %v438
    %v1830 = vunpack.c.l.b16 %v439
    %v1831 = vunpack.c.h.b16 %v439
    %v1832 = vunpack.c.l.b16 %v440
    %v1833 = vunpack.c.l.b16 %v441
    %v1834 = vunpack.c.h.b16 %v441
    %v1835 = vunpack.c.l.b16 %v442
    %v1836 = vunpack.c.h.b16 %v442
    %v1837 = vunpack.c.l.b16 %v443
    %v1838 = vunpack.c.h.b16 %v443
    %v1839 = vunpack.c.l.b16 %v444
    %v1840 = vunpack.c.l.b16 %v445
    %v1841 = vunpack.c.h.b16 %v445
    %v1842 = vunpack.c.l.b16 %v446
    %v1843 = vunpack.c.h.b16 %v446
    %v1844 = vunpack.c.l.b16 %v447
    %v1845 = vunpack.c.h.b16 %v447
    %v1846 = vunpack.c.l.b16 %v448
    %v1847 = vunpack.c.l.b16 %v449
    %v1848 = vunpack.c.h.b16 %v449
    %v1849 = vunpack.c.l.b16 %v450
    %v1850 = vunpack.c.h.b16 %v450
    %v1851 = vunpack.c.l.b16 %v451
    %v1852 = vunpack.c.h.b16 %v451
    %v1853 = vunpack.c.l.b16 %v452
    %v1854 = vunpack.c.l.b16 %v453
    %v1855 = vunpack.c.h.b16 %v453
    %v1856 = vunpack.c.l.b16 %v454
    %v1857 = vunpack.c.h.b16 %v454
    %v1858 = vunpack.c.l.b16 %v455
    %v1859 = vunpack.c.h.b16 %v455
    %v1860 = vunpack.c.l.b16 %v456
    %v1861 = vunpack.c.l.b16 %v457
    %v1862 = vunpack.c.h.b16 %v457
    %v1863 = vunpack.c.l.b16 %v458
    %v1864 = vunpack.c.h.b16 %v458
    %v1865 = vunpack.c.l.b16 %v459
    %v1866 = vunpack.c.h.b16 %v459
    %v1867 = vunpack.c.l.b16 %v460
    %v1868 = vunpack.c.l.b16 %v461
    %v1869 = vunpack.c.h.b16 %v461
    %v1870 = vunpack.c.l.b16 %v462
    %v1871 = vunpack.c.h.b16 %v462
    %v1872 = vunpack.c.l.b16 %v463
    %v1873 = vunpack.c.h.b16 %v463
    %v1874 = vunpack.c.l.b16 %v464
    %v1875 = vunpack.c.l.b16 %v465
    %v1876 = vunpack.c.h.b16 %v465
    %v1877 = vunpack.c.l.b16 %v466
    %v1878 = vunpack.c.h.b16 %v466
    %v1879 = vunpack.c.l.b16 %v467
    %v1880 = vunpack.c.h.b16 %v467
    %v1881 = vunpack.c.l.b16 %v468
    %v1882 = vunpack.c.l.b16 %v469
    %v1883 = vunpack.c.h.b16 %v469
    %v1884 = vunpack.c.l.b16 %v470
    %v1885 = vunpack.c.h.b16 %v470
    %v1886 = vunpack.c.l.b16 %v471
    %v1887 = vunpack.c.h.b16 %v471
    %v1888 = vunpack.c.l.b16 %v472
    %v1889 = vunpack.c.l.b16 %v473
    %v1890 = vunpack.c.h.b16 %v473
    %v1891 = vunpack.c.l.b16 %v474
    %v1892 = vunpack.c.h.b16 %v474
    %v1893 = vunpack.c.l.b16 %v475
    %v1894 = vunpack.c.h.b16 %v475
    %v1895 = vunpack.c.l.b16 %v476
    %v1896 = vunpack.c.l.b16 %v477
    %v1897 = vunpack.c.h.b16 %v477
    %v1898 = vunpack.c.l.b16 %v478
    %v1899 = vunpack.c.h.b16 %v478
    %v1900 = vunpack.c.l.b16 %v479
    %v1901 = vunpack.c.h.b16 %v479
    %v1902 = vunpack.c.l.b16 %v480
    %v1903 = vunpack.c.l.b16 %v481
    %v1904 = vunpack.c.h.b16 %v481
    %v1905 = vunpack.c.l.b16 %v482
    %v1906 = vunpack.c.h.b16 %v482
    %v1907 = vunpack.c.l.b16 %v483
    %v1908 = vunpack.c.h.b16 %v483
    %v1909 = vunpack.c.l.b16 %v484
    %v1910 = vunpack.c.l.b16 %v485
    %v1911 = vunpack.c.h.b16 %v485
    %v1912 = vunpack.c.l.b16 %v486
    %v1913 = vunpack.c.h.b16 %v486
    %v1914 = vunpack.c.l.b16 %v487
    %v1915 = vunpack.c.h.b16 %v487
    %v1916 = vunpack.c.l.b16 %v488
    %v1917 = vunpack.c.l.b16 %v489
    %v1918 = vunpack.c.h.b16 %v489
    %v1919 = vunpack.c.l.b16 %v490
    %v1920 = vunpack.c.h.b16 %v490
    %v1921 = vunpack.c.l.b16 %v491
    %v1922 = vunpack.c.h.b16 %v491
    %v1923 = vunpack.c.l.b16 %v492
    %v1924 = vunpack.c.l.b16 %v493
    %v1925 = vunpack.c.h.b16 %v493
    %v1926 = vunpack.c.l.b16 %v494
    %v1927 = vunpack.c.h.b16 %v494
    %v1928 = vunpack.c.l.b16 %v495
    %v1929 = vunpack.c.h.b16 %v495
    %v1930 = vunpack.c.l.b16 %v496
    %v1931 = vunpack.c.l.b16 %v497
    %v1932 = vunpack.c.h.b16 %v497
    %v1933 = vunpack.c.l.b16 %v498
    %v1934 = vunpack.c.h.b16 %v498
    %v1935 = vunpack.c.l.b16 %v499
    %v1936 = vunpack.c.h.b16 %v499
    %v1937 = vunpack.c.l.b16 %v500
    %v1938 = vunpack.c.l.b16 %v501
    %v1939 = vunpack.c.h.b16 %v501
    %v1940 = vunpack.c.l.b16 %v502
    %v1941 = vunpack.c.h.b16 %v502
    %v1942 = vunpack.c.l.b16 %v503
    %v1943 = vunpack.c.h.b16 %v503
    %v1944 = vunpack.c.l.b16 %v504
    %v1945 = vunpack.c.l.b16 %v505
    %v1946 = vunpack.c.h.b16 %v505
    %v1947 = vunpack.c.l.b16 %v506
    %v1948 = vunpack.c.h.b16 %v506
    %v1949 = vunpack.c.l.b16 %v507
    %v1950 = vunpack.c.h.b16 %v507
    %v1951 = vunpack.c.l.b16 %v508
    %v1952 = vunpack.c.l.b16 %v509
    %v1953 = vunpack.c.h.b16 %v509
    %v1954 = vunpack.c.l.b16 %v510
    %v1955 = vunpack.c.h.b16 %v510
    %v1956 = vunpack.c.l.b16 %v511
    %v1957 = vunpack.c.h.b16 %v511
    %v1958 = vunpack.c.l.b16 %v512
    %v1959 = vunpack.c.l.b16 %v513
    %v1960 = vunpack.c.h.b16 %v513
    %v1961 = vunpack.c.l.b16 %v514
    %v1962 = vunpack.c.h.b16 %v514
    %v1963 = vunpack.c.l.b16 %v515
    %v1964 = vunpack.c.h.b16 %v515
    %v1965 = vunpack.c.l.b16 %v516
    %v1966 = vunpack.c.l.b16 %v517
    %v1967 = vunpack.c.h.b16 %v517
    %v1968 = vunpack.c.l.b16 %v518
    %v1969 = vunpack.c.h.b16 %v518
    %v1970 = vunpack.c.l.b16 %v519
    %v1971 = vunpack.c.h.b16 %v519
    %v1972 = vunpack.c.l.b16 %v520
    %v1973 = vunpack.c.l.b16 %v521
    %v1974 = vunpack.c.h.b16 %v521
    %v1975 = vunpack.c.l.b16 %v522
    %v1976 = vunpack.c.h.b16 %v522
    %v1977 = vunpack.c.l.b16 %v523
    %v1978 = vunpack.c.h.b16 %v523
    %v1979 = vunpack.c.l.b16 %v524
    %v1980 = vunpack.c.l.b16 %v525
    %v1981 = vunpack.c.h.b16 %v525
    %v1982 = vunpack.c.l.b16 %v526
    %v1983 = vunpack.c.h.b16 %v526
    %v1984 = vunpack.c.l.b16 %v527
    %v1985 = vunpack.c.h.b16 %v527
    %v1986 = vunpack.c.l.b16 %v528
    %v1987 = vunpack.c.l.b16 %v529
    %v1988 = vunpack.c.h.b16 %v529
    %v1989 = vunpack.c.l.b16 %v530
    %v1990 = vunpack.c.h.b16 %v530
    %v1991 = vunpack.c.l.b16 %v531
    %v1992 = vunpack.c.h.b16 %v531
    %v1993 = vunpack.c.l.b16 %v532
    %v1994 = vunpack.c.l.b16 %v533
    %v1995 = vunpack.c.h.b16 %v533
    %v1996 = vunpack.c.l.b16 %v534
    %v1997 = vunpack.c.h.b16 %v534
    %v1998 = vunpack.c.l.b16 %v535
    %v1999 = vunpack.c.h.b16 %v535
    %v2000 = vunpack.c.l.b16 %v536
    %v2001 = vunpack.c.l.b16 %v537
    %v2002 = vunpack.c.h.b16 %v537
    %v2003 = vunpack.c.l.b16 %v538
    %v2004 = vunpack.c.h.b16 %v538
    %v2005 = vunpack.c.l.b16 %v539
    %v2006 = vunpack.c.h.b16 %v539
    %v2007 = vunpack.c.l.b16 %v540
    %v2008 = vunpack.c.l.b16 %v541
    %v2009 = vunpack.c.h.b16 %v541
    %v2010 = vunpack.c.l.b16 %v542
    %v2011 = vunpack.c.h.b16 %v542
    %v2012 = vunpack.c.l.b16 %v543
    %v2013 = vunpack.c.h.b16 %v543
    %v2014 = vunpack.c.l.b16 %v544
    %v2015 = vunpack.c.l.b16 %v545
    %v2016 = vunpack.c.h.b16 %v545
    %v2017 = vunpack.c.l.b16 %v546
    %v2018 = vunpack.c.h.b16 %v546
    %v2019 = vunpack.c.l.b16 %v547
    %v2020 = vunpack.c.h.b16 %v547
    %v2021 = vunpack.c.l.b16 %v548
    %v2022 = vunpack.c.l.b16 %v549
    %v2023 = vunpack.c.h.b16 %v549
    %v2024 = vunpack.c.l.b16 %v550
    %v2025 = vunpack.c.h.b16 %v550
    %v2026 = vunpack.c.l.b16 %v551
    %v2027 = vunpack.c.h.b16 %v551
    %v2028 = vunpack.c.l.b16 %v552
    %v2029 = vunpack.c.l.b16 %v553
    %v2030 = vunpack.c.h.b16 %v553
    %v2031 = vunpack.c.l.b16 %v554
    %v2032 = vunpack.c.h.b16 %v554
    %v2033 = vunpack.c.l.b16 %v555
    %v2034 = vunpack.c.h.b16 %v555
    %v2035 = vunpack.c.l.b16 %v556
    %v2036 = vunpack.c.l.b16 %v557
    %v2037 = vunpack.c.h.b16 %v557
    %v2038 = vunpack.c.l.b16 %v558
    %v2039 = vunpack.c.h.b16 %v558
    %v2040 = vunpack.c.l.b16 %v559
    %v2041 = vunpack.c.h.b16 %v559
    %v2042 = vunpack.c.l.b16 %v560
    %v2043 = vunpack.c.l.b16 %v561
    %v2044 = vunpack.c.h.b16 %v561
    %v2045 = vunpack.c.l.b16 %v562
    %v2046 = vunpack.c.h.b16 %v562
    %v2047 = vunpack.c.l.b16 %v563
    %v2048 = vunpack.c.h.b16 %v563
    %v2049 = vunpack.c.l.b16 %v564
    %v2050 = vunpack.c.l.b16 %v565
    %v2051 = vunpack.c.h.b16 %v565
    %v2052 = vunpack.c.l.b16 %v566
    %v2053 = vunpack.c.h.b16 %v566
    %v2054 = vunpack.c.l.b16 %v567
    %v2055 = vunpack.c.h.b16 %v567
    %v2056 = vunpack.c.l.b16 %v568
    %v2057 = vunpack.c.l.b16 %v569
    %v2058 = vunpack.c.h.b16 %v569
    %v2059 = vunpack.c.l.b16 %v570
    %v2060 = vunpack.c.h.b16 %v570
    %v2061 = vunpack.c.l.b16 %v571
    %v2062 = vunpack.c.h.b16 %v571
    %v2063 = vunpack.c.l.b16 %v572
    %v2064 = vunpack.c.l.b16 %v573
    %v2065 = vunpack.c.h.b16 %v573
    %v2066 = vunpack.c.l.b16 %v574
    %v2067 = vunpack.c.h.b16 %v574
    %v2068 = vunpack.c.l.b16 %v575
    %v2069 = vunpack.c.h.b16 %v575
    %v2070 = vunpack.c.l.b16 %v576
    %v2071 = vunpack.c.l.b16 %v577
    %v2072 = vunpack.c.h.b16 %v577
    %v2073 = vunpack.c.l.b16 %v578
    %v2074 = vunpack.c.h.b16 %v578
    %v2075 = vunpack.c.l.b16 %v579
    %v2076 = vunpack.c.h.b16 %v579
    %v2077 = vunpack.c.l.b16 %v580
    %v2078 = vunpack.c.l.b16 %v581
    %v2079 = vunpack.c.h.b16 %v581
    %v2080 = vunpack.c.l.b16 %v582
    %v2081 = vunpack.c.h.b16 %v582
    %v2082 = vunpack.c.l.b16 %v583
    %v2083 = vunpack.c.h.b16 %v583
    %v2084 = vunpack.c.l.b16 %v584
    %v2085 = vunpack.c.l.b16 %v585
    %v2086 = vunpack.c.h.b16 %v585
    %v2087 = vunpack.c.l.b16 %v586
    %v2088 = vunpack.c.h.b16 %v586
    %v2089 = vunpack.c.l.b16 %v587
    %v2090 = vunpack.c.h.b16 %v587
    %v2091 = vunpack.c.l.b16 %v588
    %v2092 = vunpack.c.l.b16 %v589
    %v2093 = vunpack.c.h.b16 %v589
    %v2094 = vunpack.c.l.b16 %v590
    %v2095 = vunpack.c.h.b16 %v590
    %v2096 = vunpack.c.l.b16 %v591
    %v2097 = vunpack.c.h.b16 %v591
    %v2098 = vunpack.c.l.b16 %v592
    %v2099 = vunpack.c.l.b16 %v593
    %v2100 = vunpack.c.h.b16 %v593
    %v2101 = vunpack.c.l.b16 %v594
    %v2102 = vunpack.c.h.b16 %v594
    %v2103 = vunpack.c.l.b16 %v595
    %v2104 = vunpack.c.h.b16 %v595
    %v2105 = vunpack.c.l.b16 %v596
    %v2106 = vunpack.c.l.b16 %v597
    %v2107 = vunpack.c.h.b16 %v597
    %v2108 = vunpack.c.l.b16 %v598
    %v2109 = vunpack.c.h.b16 %v598
    %v2110 = vunpack.c.l.b16 %v599
    %v2111 = vunpack.c.h.b16 %v599
    %v2112 = vunpack.c.l.b16 %v600
    %v2113 = vunpack.c.l.b16 %v601
    %v2114 = vunpack.c.h.b16 %v601
    %v2115 = vunpack.c.l.b16 %v602
    %v2116 = vunpack.c.h.b16 %v602
    %v2117 = vunpack.c.l.b16 %v603
    %v2118 = vunpack.c.h.b16 %v603
    %v2119 = vunpack.c.l.b16 %v604
    %v2120 = vunpack.c.l.b16 %v605
    %v2121 = vunpack.c.h.b16 %v605
    %v2122 = vunpack.c.l.b16 %v606
    %v2123 = vunpack.c.h.b16 %v606
    %v2124 = vunpack.c.l.b16 %v607
    %v2125 = vunpack.c.h.b16 %v607
    %v2126 = vunpack.c.l.b16 %v608
    %v2127 = vunpack.c.l.b16 %v609
    %v2128 = vunpack.c.h.b16 %v609
    %v2129 = vunpack.c.l.b16 %v610
    %v2130 = vunpack.c.h.b16 %v610
    %v2131 = vunpack.c.l.b16 %v611
    %v2132 = vunpack.c.h.b16 %v611
    %v2133 = vunpack.c.l.b16 %v612
    %v2134 = vunpack.c.l.b16 %v613
    %v2135 = vunpack.c.h.b16 %v613
    %v2136 = vunpack.c.l.b16 %v614
    %v2137 = vunpack.c.h.b16 %v614
    %v2138 = vunpack.c.l.b16 %v615
    %v2139 = vunpack.c.h.b16 %v615
    %v2140 = vunpack.c.l.b16 %v616
    %v2141 = vunpack.c.l.b16 %v617
    %v2142 = vunpack.c.h.b16 %v617
    %v2143 = vunpack.c.l.b16 %v618
    %v2144 = vunpack.c.h.b16 %v618
    %v2145 = vunpack.c.l.b16 %v619
    %v2146 = vunpack.c.h.b16 %v619
    %v2147 = vunpack.c.l.b16 %v620
    %v2148 = vunpack.c.l.b16 %v621
    %v2149 = vunpack.c.h.b16 %v621
    %v2150 = vunpack.c.l.b16 %v622
    %v2151 = vunpack.c.h.b16 %v622
    %v2152 = vunpack.c.l.b16 %v623
    %v2153 = vunpack.c.h.b16 %v623
    %v2154 = vunpack.c.l.b16 %v624
    %v2155 = vunpack.c.l.b16 %v625
    %v2156 = vunpack.c.h.b16 %v625
    %v2157 = vunpack.c.l.b16 %v626
    %v2158 = vunpack.c.h.b16 %v626
    %v2159 = vunpack.c.l.b16 %v627
    %v2160 = vunpack.c.h.b16 %v627
    %v2161 = vunpack.c.l.b16 %v628
    %v2162 = vunpack.c.l.b16 %v629
    %v2163 = vunpack.c.h.b16 %v629
    %v2164 = vunpack.c.l.b16 %v630
    %v2165 = vunpack.c.h.b16 %v630
    %v2166 = vunpack.c.l.b16 %v631
    %v2167 = vunpack.c.h.b16 %v631
    %v2168 = vunpack.c.l.b16 %v632
    %v2169 = vunpack.c.l.b16 %v633
    %v2170 = vunpack.c.h.b16 %v633
    %v2171 = vunpack.c.l.b16 %v634
    %v2172 = vunpack.c.h.b16 %v634
    %v2173 = vunpack.c.l.b16 %v635
    %v2174 = vunpack.c.h.b16 %v635
    %v2175 = vunpack.c.l.b16 %v636
    %v2176 = vunpack.c.l.b16 %v637
    %v2177 = vunpack.c.h.b16 %v637
    %v2178 = vunpack.c.l.b16 %v638
    %v2179 = vunpack.c.h.b16 %v638
    %v2180 = vunpack.c.l.b16 %v639
    %v2181 = vunpack.c.h.b16 %v639
    %v2182 = vunpack.c.l.b16 %v640
    %v2183 = vunpack.c.l.b16 %v641
    %v2184 = vunpack.c.h.b16 %v641
    %v2185 = vunpack.c.l.b16 %v642
    %v2186 = vunpack.c.h.b16 %v642
    %v2187 = vunpack.c.l.b16 %v643
    %v2188 = vunpack.c.h.b16 %v643
    %v2189 = vunpack.c.l.b16 %v644
    %v2190 = vunpack.c.l.b16 %v645
    %v2191 = vunpack.c.h.b16 %v645
    %v2192 = vunpack.c.l.b16 %v646
    %v2193 = vunpack.c.h.b16 %v646
    %v2194 = vunpack.c.l.b16 %v647
    %v2195 = vunpack.c.h.b16 %v647
    %v2196 = vunpack.c.l.b16 %v648
    %v2197 = vunpack.c.l.b16 %v649
    %v2198 = vunpack.c.h.b16 %v649
    %v2199 = vunpack.c.l.b16 %v650
    %v2200 = vunpack.c.h.b16 %v650
    %v2201 = vunpack.c.l.b16 %v651
    %v2202 = vunpack.c.h.b16 %v651
    %v2203 = vunpack.c.l.b16 %v652
    %v2204 = vunpack.c.l.b16 %v653
    %v2205 = vunpack.c.h.b16 %v653
    %v2206 = vunpack.c.l.b16 %v654
    %v2207 = vunpack.c.h.b16 %v654
    %v2208 = vunpack.c.l.b16 %v655
    %v2209 = vunpack.c.h.b16 %v655
    %v2210 = vunpack.c.l.b16 %v656
    %v2211 = vunpack.c.l.b16 %v657
    %v2212 = vunpack.c.h.b16 %v657
    %v2213 = vunpack.c.l.b16 %v658
    %v2214 = vunpack.c.h.b16 %v658
    %v2215 = vunpack.c.l.b16 %v659
    %v2216 = vunpack.c.h.b16 %v659
    %v2217 = vunpack.c.l.b16 %v660
    %v2218 = vunpack.c.l.b16 %v661
    %v2219 = vunpack.c.h.b16 %v661
    %v2220 = vunpack.c.l.b16 %v662
    %v2221 = vunpack.c.h.b16 %v662
    %v2222 = vunpack.c.l.b16 %v663
    %v2223 = vunpack.c.h.b16 %v663
    %v2224 = vunpack.c.l.b16 %v664
    %v2225 = vunpack.c.l.b16 %v665
    %v2226 = vunpack.c.h.b16 %v665
    %v2227 = vunpack.c.l.b16 %v666
    %v2228 = vunpack.c.h.b16 %v666
    %v2229 = vunpack.c.l.b16 %v667
    %v2230 = vunpack.c.h.b16 %v667
    %v2231 = vunpack.c.l.b16 %v668
    %v2232 = vunpack.c.l.b16 %v669
    %v2233 = vunpack.c.h.b16 %v669
    %v2234 = vunpack.c.l.b16 %v670
    %v2235 = vunpack.c.h.b16 %v670
    %v2236 = vunpack.c.l.b16 %v671
    %v2237 = vunpack.c.h.b16 %v671
    %v2238 = vunpack.c.l.b16 %v672
    %v2239 = vunpack.c.l.b16 %v673
    %v2240 = vunpack.c.h.b16 %v673
    %v2241 = vunpack.c.l.b16 %v674
    %v2242 = vunpack.c.h.b16 %v674
    %v2243 = vunpack.c.l.b16 %v675
    %v2244 = vunpack.c.h.b16 %v675
    %v2245 = vunpack.c.l.b16 %v676
    %v2246 = vunpack.c.l.b16 %v677
    %v2247 = vunpack.c.h.b16 %v677
    %v2248 = vunpack.c.l.b16 %v678
    %v2249 = vunpack.c.h.b16 %v678
    %v2250 = vunpack.c.l.b16 %v679
    %v2251 = vunpack.c.h.b16 %v679
    %v2252 = vunpack.c.l.b16 %v680
    %v2253 = vunpack.c.l.b16 %v681
    %v2254 = vunpack.c.h.b16 %v681
    %v2255 = vunpack.c.l.b16 %v682
    %v2256 = vunpack.c.h.b16 %v682
    %v2257 = vunpack.c.l.b16 %v683
    %v2258 = vunpack.c.h.b16 %v683
    %v2259 = vunpack.c.l.b16 %v684
    %v2260 = vunpack.c.l.b16 %v685
    %v2261 = vunpack.c.h.b16 %v685
    %v2262 = vunpack.c.l.b16 %v686
    %v2263 = vunpack.c.h.b16 %v686
    %v2264 = vunpack.c.l.b16 %v687
    %v2265 = vunpack.c.h.b16 %v687
    %v2266 = vunpack.c.l.b16 %v688
    %v2267 = vunpack.c.l.b16 %v689
    %v2268 = vunpack.c.h.b16 %v689
    %v2269 = vunpack.c.l.b16 %v690
    %v2270 = vunpack.c.h.b16 %v690
    %v2271 = vunpack.c.l.b16 %v691
    %v2272 = vunpack.c.h.b16 %v691
    %v2273 = vunpack.c.l.b16 %v692
    %v2274 = vunpack.c.l.b16 %v693
    %v2275 = vunpack.c.h.b16 %v693
    %v2276 = vunpack.c.l.b16 %v694
    %v2277 = vunpack.c.h.b16 %v694
    %v2278 = vunpack.c.l.b16 %v695
    %v2279 = vunpack.c.h.b16 %v695
    %v2280 = vunpack.c.l.b16 %v696
    %v2281 = vunpack.c.l.b16 %v697
    %v2282 = vunpack.c.h.b16 %v697
    %v2283 = vunpack.c.l.b16 %v698
    %v2284 = vunpack.c.h.b16 %v698
    %v2285 = vunpack.c.l.b16 %v699
    %v2286 = vunpack.c.h.b16 %v699
    %v2287 = vunpack.c.l.b16 %v700
    %v2288 = vunpack.c.l.b16 %v701
    %v2289 = vunpack.c.h.b16 %v701
    %v2290 = vunpack.c.l.b16 %v702
    %v2291 = vunpack.c.h.b16 %v702
    %v2292 = vunpack.c.l.b16 %v703
    %v2293 = vunpack.c.h.b16 %v703
    %v2294 = vunpack.c.l.b16 %v704
    %v2295 = vunpack.c.l.b16 %v705
    %v2296 = vunpack.c.h.b16 %v705
    %v2297 = vunpack.c.l.b16 %v706
    %v2298 = vunpack.c.h.b16 %v706
    %v2299 = vunpack.c.l.b16 %v707
    %v2300 = vunpack.c.h.b16 %v707
    %v2301 = vunpack.c.l.b16 %v708
    %v2302 = vunpack.c.l.b16 %v709
    %v2303 = vunpack.c.h.b16 %v709
    %v2304 = vunpack.c.l.b16 %v710
    %v2305 = vunpack.c.h.b16 %v710
    %v2306 = vunpack.c.l.b16 %v711
    %v2307 = vunpack.c.h.b16 %v711
    %v2308 = vunpack.c.l.b16 %v712
    %v2309 = vunpack.c.l.b16 %v713
    %v2310 = vunpack.c.h.b16 %v713
    %v2311 = vunpack.c.l.b16 %v714
    %v2312 = vunpack.c.h.b16 %v714
    %v2313 = vunpack.c.l.b16 %v715
    %v2314 = vunpack.c.h.b16 %v715
    %v2315 = vunpack.c.l.b16 %v716
    %v2316 = vunpack.c.l.b16 %v717
    %v2317 = vunpack.c.h.b16 %v717
    %v2318 = vunpack.c.l.b16 %v718
    %v2319 = vunpack.c.h.b16 %v718
    %v2320 = vunpack.c.l.b16 %v719
    %v2321 = vunpack.c.h.b16 %v719
    %v2322 = vunpack.c.l.b16 %v720
    %v2323 = vunpack.c.l.b16 %v721
    %v2324 = vunpack.c.h.b16 %v721
    %v2325 = vunpack.c.l.b16 %v722
    %v2326 = vunpack.c.h.b16 %v722
    %v2327 = vunpack.c.l.b16 %v723
    %v2328 = vunpack.c.h.b16 %v723
    %v2329 = vunpack.c.l.b16 %v724
    %v2330 = vunpack.c.l.b16 %v725
    %v2331 = vunpack.c.h.b16 %v725
    %v2332 = vunpack.c.l.b16 %v726
    %v2333 = vunpack.c.h.b16 %v726
    %v2334 = vunpack.c.l.b16 %v727
    %v2335 = vunpack.c.h.b16 %v727
    %v2336 = vunpack.c.l.b16 %v728
    %v2337 = vunpack.c.l.b16 %v729
    %v2338 = vunpack.c.h.b16 %v729
    %v2339 = vunpack.c.l.b16 %v730
    %v2340 = vunpack.c.h.b16 %v730
    %v2341 = vunpack.c.l.b16 %v731
    %v2342 = vunpack.c.h.b16 %v731
    %v2343 = vunpack.c.l.b16 %v732
    %v2344 = vunpack.c.l.b16 %v733
    %v2345 = vunpack.c.h.b16 %v733
    %v2346 = vunpack.c.l.b16 %v734
    %v2347 = vunpack.c.h.b16 %v734
    %v2348 = vunpack.c.l.b16 %v735
    %v2349 = vunpack.c.h.b16 %v735
    %v2350 = vunpack.c.l.b16 %v736
    %v2351 = vunpack.c.l.b16 %v737
    %v2352 = vunpack.c.h.b16 %v737
    %v2353 = vunpack.c.l.b16 %v738
    %v2354 = vunpack.c.h.b16 %v738
    %v2355 = vunpack.c.l.b16 %v739
    %v2356 = vunpack.c.h.b16 %v739
    %v2357 = vunpack.c.l.b16 %v740
    %v2358 = vunpack.c.l.b16 %v741
    %v2359 = vunpack.c.h.b16 %v741
    %v2360 = vunpack.c.l.b16 %v742
    %v2361 = vunpack.c.h.b16 %v742
    %v2362 = vunpack.c.l.b16 %v743
    %v2363 = vunpack.c.h.b16 %v743
    %v2364 = vunpack.c.l.b16 %v744
    %v2365 = vunpack.c.l.b16 %v745
    %v2366 = vunpack.c.h.b16 %v745
    %v2367 = vunpack.c.l.b16 %v746
    %v2368 = vunpack.c.h.b16 %v746
    %v2369 = vunpack.c.l.b16 %v747
    %v2370 = vunpack.c.h.b16 %v747
    %v2371 = vunpack.c.l.b16 %v748
    %v2372 = vunpack.c.l.b16 %v749
    %v2373 = vunpack.c.h.b16 %v749
    %v2374 = vunpack.c.l.b16 %v750
    %v2375 = vunpack.c.h.b16 %v750
    %v2376 = vunpack.c.l.b16 %v751
    %v2377 = vunpack.c.h.b16 %v751
    %v2378 = vunpack.c.l.b16 %v752
    %v2379 = vunpack.c.l.b16 %v753
    %v2380 = vunpack.c.h.b16 %v753
    %v2381 = vunpack.c.l.b16 %v754
    %v2382 = vunpack.c.h.b16 %v754
    %v2383 = vunpack.c.l.b16 %v755
    %v2384 = vunpack.c.h.b16 %v755
    %v2385 = vunpack.c.l.b16 %v756
    %v2386 = vunpack.c.l.b16 %v757
    %v2387 = vunpack.c.h.b16 %v757
    %v2388 = vunpack.c.l.b16 %v758
    %v2389 = vunpack.c.h.b16 %v758
    %v2390 = vunpack.c.l.b16 %v759
    %v2391 = vunpack.c.h.b16 %v759
    %v2392 = vunpack.c.l.b16 %v760
    %v2393 = vunpack.c.l.b16 %v761
    %v2394 = vunpack.c.h.b16 %v761
    %v2395 = vunpack.c.l.b16 %v762
    %v2396 = vunpack.c.h.b16 %v762
    %v2397 = vunpack.c.l.b16 %v763
    %v2398 = vunpack.c.h.b16 %v763
    %v2399 = vunpack.c.l.b16 %v764
    %v2400 = vunpack.c.l.b16 %v765
    %v2401 = vunpack.c.h.b16 %v765
    %v2402 = vunpack.c.l.b16 %v766
    %v2403 = vunpack.c.h.b16 %v766
    %v2404 = vunpack.c.l.b16 %v767
    %v2405 = vunpack.c.h.b16 %v767
    %v2406 = vunpack.c.l.b16 %v768
    %v2407 = vunpack.c.l.b16 %v769
    %v2408 = vunpack.c.h.b16 %v769
    %v2409 = vunpack.c.l.b16 %v770
    %v2410 = vunpack.c.h.b16 %v770
    %v2411 = vunpack.c.l.b16 %v771
    %v2412 = vunpack.c.h.b16 %v771
    %v2413 = vunpack.c.l.b16 %v772
    %v2414 = vunpack.c.l.b16 %v773
    %v2415 = vunpack.c.h.b16 %v773
    %v2416 = vunpack.c.l.b16 %v774
    %v2417 = vunpack.c.h.b16 %v774
    %v2418 = vunpack.c.l.b16 %v775
    %v2419 = vunpack.c.h.b16 %v775
    %v2420 = vunpack.c.l.b16 %v776
    %v2421 = vunpack.c.l.b16 %v777
    %v2422 = vunpack.c.h.b16 %v777
    %v2423 = vunpack.c.l.b16 %v778
    %v2424 = vunpack.c.h.b16 %v778
    %v2425 = vunpack.c.l.b16 %v779
    %v2426 = vunpack.c.h.b16 %v779
    %v2427 = vunpack.c.l.b16 %v780
    %v2428 = vunpack.c.l.b16 %v781
    %v2429 = vunpack.c.h.b16 %v781
    %v2430 = vunpack.c.l.b16 %v782
    %v2431 = vunpack.c.h.b16 %v782
    %v2432 = vunpack.c.l.b16 %v783
    %v2433 = vunpack.c.h.b16 %v783
    %v2434 = vunpack.c.l.b16 %v784
    %v2435 = vunpack.c.l.b16 %v785
    %v2436 = vunpack.c.h.b16 %v785
    %v2437 = vunpack.c.l.b16 %v786
    %v2438 = vunpack.c.h.b16 %v786
    %v2439 = vunpack.c.l.b16 %v787
    %v2440 = vunpack.c.h.b16 %v787
    %v2441 = vunpack.c.l.b16 %v788
    %v2442 = vpack.c.b16 %v1441, %v1434
    %v2443 = vpack.c.b16 %v1442, %v1435
    %v2444 = vpack.c.b16 %v1443, %v1436
    %v2445 = vpack.c.b16 %v1444, %v1437
    %v2446 = vpack.c.b16 %v1445, %v1438
    %v2447 = vpack.c.b16 %v1446, %v1439
    %v2448 = vpack.c.b16 %v1447, %v1440
    %v2449 = vpack.c.b16 %v1455, %v1448
    %v2450 = vpack.c.b16 %v1456, %v1449
    %v2451 = vpack.c.b16 %v1457, %v1450
    %v2452 = vpack.c.b16 %v1458, %v1451
    %v2453 = vpack.c.b16 %v1459, %v1452
    %v2454 = vpack.c.b16 %v1460, %v1453
    %v2455 = vpack.c.b16 %v1461, %v1454
    %v2456 = vpack.c.b16 %v1469, %v1462
    %v2457 = vpack.c.b16 %v1470, %v1463
    %v2458 = vpack.c.b16 %v1471, %v1464
    %v2459 = vpack.c.b16 %v1472, %v1465
    %v2460 = vpack.c.b16 %v1473, %v1466
    %v2461 = vpack.c.b16 %v1474, %v1467
    %v2462 = vpack.c.b16 %v1475, %v1468
    %v2463 = vpack.c.b16 %v1483, %v1476
    %v2464 = vpack.c.b16 %v1484, %v1477
    %v2465 = vpack.c.b16 %v1485, %v1478
    %v2466 = vpack.c.b16 %v1486, %v1479
    %v2467 = vpack.c.b16 %v1487, %v1480
    %v2468 = vpack.c.b16 %v1488, %v1481
    %v2469 = vpack.c.b16 %v1489, %v1482
    %v2470 = vpack.c.b16 %v1497, %v1490
    %v2471 = vpack.c.b16 %v1498, %v1491
    %v2472 = vpack.c.b16 %v1499, %v1492
    %v2473 = vpack.c.b16 %v1500, %v1493
    %v2474 = vpack.c.b16 %v1501, %v1494
    %v2475 = vpack.c.b16 %v1502, %v1495
    %v2476 = vpack.c.b16 %v1503, %v1496
    %v2477 = vpack.c.b16 %v1511, %v1504
    %v2478 = vpack.c.b16 %v1512, %v1505
    %v2479 = vpack.c.b16 %v1513, %v1506
    %v2480 = vpack.c.b16 %v1514, %v1507
    %v2481 = vpack.c.b16 %v1515, %v1508
    %v2482 = vpack.c.b16 %v1516, %v1509
    %v2483 = vpack.c.b16 %v1517, %v1510
    %v2484 = vpack.c.b16 %v1525, %v1518
    %v2485 = vpack.c.b16 %v1526, %v1519
    %v2486 = vpack.c.b16 %v1527, %v1520
    %v2487 = vpack.c.b16 %v1528, %v1521
    %v2488 = vpack.c.b16 %v1529, %v1522
    %v2489 = vpack.c.b16 %v1530, %v1523
    %v2490 = vpack.c.b16 %v1531, %v1524
    %v2491 = vpack.c.b16 %v1539, %v1532
    %v2492 = vpack.c.b16 %v1540, %v1533
    %v2493 = vpack.c.b16 %v1541, %v1534
    %v2494 = vpack.c.b16 %v1542, %v1535
    %v2495 = vpack.c.b16 %v1543, %v1536
    %v2496 = vpack.c.b16 %v1544, %v1537
    %v2497 = vpack.c.b16 %v1545, %v1538
    %v2498 = vpack.c.b16 %v1553, %v1546
    %v2499 = vpack.c.b16 %v1554, %v1547
    %v2500 = vpack.c.b16 %v1555, %v1548
    %v2501 = vpack.c.b16 %v1556, %v1549
    %v2502 = vpack.c.b16 %v1557, %v1550
    %v2503 = vpack.c.b16 %v1558, %v1551
    %v2504 = vpack.c.b16 %v1559, %v1552
    %v2505 = vpack.c.b16 %v1567, %v1560
    %v2506 = vpack.c.b16 %v1568, %v1561
    %v2507 = vpack.c.b16 %v1569, %v1562
    %v2508 = vpack.c.b16 %v1570, %v1563
    %v2509 = vpack.c.b16 %v1571, %v1564
    %v2510 = vpack.c.b16 %v1572, %v1565
    %v2511 = vpack.c.b16 %v1573, %v1566
    %v2512 = vpack.c.b16 %v1581, %v1574
    %v2513 = vpack.c.b16 %v1582, %v1575
    %v2514 = vpack.c.b16 %v1583, %v1576
    %v2515 = vpack.c.b16 %v1584, %v1577
    %v2516 = vpack.c.b16 %v1585, %v1578
    %v2517 = vpack.c.b16 %v1586, %v1579
    %v2518 = vpack.c.b16 %v1587, %v1580
    %v2519 = vpack.c.b16 %v1595, %v1588
    %v2520 = vpack.c.b16 %v1596, %v1589
    %v2521 = vpack.c.b16 %v1597, %v1590
    %v2522 = vpack.c.b16 %v1598, %v1591
    %v2523 = vpack.c.b16 %v1599, %v1592
    %v2524 = vpack.c.b16 %v1600, %v1593
    %v2525 = vpack.c.b16 %v1601, %v1594
    %v2526 = vpack.c.b16 %v1609, %v1602
    %v2527 = vpack.c.b16 %v1610, %v1603
    %v2528 = vpack.c.b16 %v1611, %v1604
    %v2529 = vpack.c.b16 %v1612, %v1605
    %v2530 = vpack.c.b16 %v1613, %v1606
    %v2531 = vpack.c.b16 %v1614, %v1607
    %v2532 = vpack.c.b16 %v1615, %v1608
    %v2533 = vpack.c.b16 %v1623, %v1616
    %v2534 = vpack.c.b16 %v1624, %v1617
    %v2535 = vpack.c.b16 %v1625, %v1618
    %v2536 = vpack.c.b16 %v1626, %v1619
    %v2537 = vpack.c.b16 %v1627, %v1620
    %v2538 = vpack.c.b16 %v1628, %v1621
    %v2539 = vpack.c.b16 %v1629, %v1622
    %v2540 = vpack.c.b16 %v1637, %v1630
    %v2541 = vpack.c.b16 %v1638, %v1631
    %v2542 = vpack.c.b16 %v1639, %v1632
    %v2543 = vpack.c.b16 %v1640, %v1633
    %v2544 = vpack.c.b16 %v1641, %v1634
    %v2545 = vpack.c.b16 %v1642, %v1635
    %v2546 = vpack.c.b16 %v1643, %v1636
    %v2547 = vpack.c.b16 %v1651, %v1644
    %v2548 = vpack.c.b16 %v1652, %v1645
    %v2549 = vpack.c.b16 %v1653, %v1646
    %v2550 = vpack.c.b16 %v1654, %v1647
    %v2551 = vpack.c.b16 %v1655, %v1648
    %v2552 = vpack.c.b16 %v1656, %v1649
    %v2553 = vpack.c.b16 %v1657, %v1650
    %v2554 = vpack.c.b16 %v1665, %v1658
    %v2555 = vpack.c.b16 %v1666, %v1659
    %v2556 = vpack.c.b16 %v1667, %v1660
    %v2557 = vpack.c.b16 %v1668, %v1661
    %v2558 = vpack.c.b16 %v1669, %v1662
    %v2559 = vpack.c.b16 %v1670, %v1663
    %v2560 = vpack.c.b16 %v1671, %v1664
    %v2561 = vpack.c.b16 %v1679, %v1672
    %v2562 = vpack.c.b16 %v1680, %v1673
    %v2563 = vpack.c.b16 %v1681, %v1674
    %v2564 = vpack.c.b16 %v1682, %v1675
    %v2565 = vpack.c.b16 %v1683, %v1676
    %v2566 = vpack.c.b16 %v1684, %v1677
    %v2567 = vpack.c.b16 %v1685, %v1678
    %v2568 = vpack.c.b16 %v1693, %v1686
    %v2569 = vpack.c.b16 %v1694, %v1687
    %v2570 = vpack.c.b16 %v1695, %v1688
    %v2571 = vpack.c.b16 %v1696, %v1689
    %v2572 = vpack.c.b16 %v1697, %v1690
    %v2573 = vpack.c.b16 %v1698, %v1691
    %v2574 = vpack.c.b16 %v1699, %v1692
    %v2575 = vpack.c.b16 %v1707, %v1700
    %v2576 = vpack.c.b16 %v1708, %v1701
    %v2577 = vpack.c.b16 %v1709, %v1702
    %v2578 = vpack.c.b16 %v1710, %v1703
    %v2579 = vpack.c.b16 %v1711, %v1704
    %v2580 = vpack.c.b16 %v1712, %v1705
    %v2581 = vpack.c.b16 %v1713, %v1706
    %v2582 = vpack.c.b16 %v1721, %v1714
    %v2583 = vpack.c.b16 %v1722, %v1715
    %v2584 = vpack.c.b16 %v1723, %v1716
    %v2585 = vpack.c.b16 %v1724, %v1717
    %v2586 = vpack.c.b16 %v1725, %v1718
    %v2587 = vpack.c.b16 %v1726, %v1719
    %v2588 = vpack.c.b16 %v1727, %v1720
    %v2589 = vpack.c.b16 %v1735, %v1728
    %v2590 = vpack.c.b16 %v1736, %v1729
    %v2591 = vpack.c.b16 %v1737, %v1730
    %v2592 = vpack.c.b16 %v1738, %v1731
    %v2593 = vpack.c.b16 %v1739, %v1732
    %v2594 = vpack.c.b16 %v1740, %v1733
    %v2595 = vpack.c.b16 %v1741, %v1734
    %v2596 = vpack.c.b16 %v1749, %v1742
    %v2597 = vpack.c.b16 %v1750, %v1743
    %v2598 = vpack.c.b16 %v1751, %v1744
    %v2599 = vpack.c.b16 %v1752, %v1745
    %v2600 = vpack.c.b16 %v1753, %v1746
    %v2601 = vpack.c.b16 %v1754, %v1747
    %v2602 = vpack.c.b16 %v1755, %v1748
    %v2603 = vpack.c.b16 %v1763, %v1756
    %v2604 = vpack.c.b16 %v1764, %v1757
    %v2605 = vpack.c.b16 %v1765, %v1758
    %v2606 = vpack.c.b16 %v1766, %v1759
    %v2607 = vpack.c.b16 %v1767, %v1760
    %v2608 = vpack.c.b16 %v1768, %v1761
    %v2609 = vpack.c.b16 %v1769, %v1762
    %v2610 = vpack.c.b16 %v1777, %v1770
    %v2611 = vpack.c.b16 %v1778, %v1771
    %v2612 = vpack.c.b16 %v1779, %v1772
    %v2613 = vpack.c.b16 %v1780, %v1773
    %v2614 = vpack.c.b16 %v1781, %v1774
    %v2615 = vpack.c.b16 %v1782, %v1775
    %v2616 = vpack.c.b16 %v1783, %v1776
    %v2617 = vpack.c.b16 %v1791, %v1784
    %v2618 = vpack.c.b16 %v1792, %v1785
    %v2619 = vpack.c.b16 %v1793, %v1786
    %v2620 = vpack.c.b16 %v1794, %v1787
    %v2621 = vpack.c.b16 %v1795, %v1788
    %v2622 = vpack.c.b16 %v1796, %v1789
    %v2623 = vpack.c.b16 %v1797, %v1790
    %v2624 = vpack.c.b16 %v1805, %v1798
    %v2625 = vpack.c.b16 %v1806, %v1799
    %v2626 = vpack.c.b16 %v1807, %v1800
    %v2627 = vpack.c.b16 %v1808, %v1801
    %v2628 = vpack.c.b16 %v1809, %v1802
    %v2629 = vpack.c.b16 %v1810, %v1803
    %v2630 = vpack.c.b16 %v1811, %v1804
    %v2631 = vpack.c.b16 %v1819, %v1812
    %v2632 = vpack.c.b16 %v1820, %v1813
    %v2633 = vpack.c.b16 %v1821, %v1814
    %v2634 = vpack.c.b16 %v1822, %v1815
    %v2635 = vpack.c.b16 %v1823, %v1816
    %v2636 = vpack.c.b16 %v1824, %v1817
    %v2637 = vpack.c.b16 %v1825, %v1818
    %v2638 = vpack.c.b16 %v1833, %v1826
    %v2639 = vpack.c.b16 %v1834, %v1827
    %v2640 = vpack.c.b16 %v1835, %v1828
    %v2641 = vpack.c.b16 %v1836, %v1829
    %v2642 = vpack.c.b16 %v1837, %v1830
    %v2643 = vpack.c.b16 %v1838, %v1831
    %v2644 = vpack.c.b16 %v1839, %v1832
    %v2645 = vpack.c.b16 %v1847, %v1840
    %v2646 = vpack.c.b16 %v1848, %v1841
    %v2647 = vpack.c.b16 %v1849, %v1842
    %v2648 = vpack.c.b16 %v1850, %v1843
    %v2649 = vpack.c.b16 %v1851, %v1844
    %v2650 = vpack.c.b16 %v1852, %v1845
    %v2651 = vpack.c.b16 %v1853, %v1846
    %v2652 = vpack.c.b16 %v1861, %v1854
    %v2653 = vpack.c.b16 %v1862, %v1855
    %v2654 = vpack.c.b16 %v1863, %v1856
    %v2655 = vpack.c.b16 %v1864, %v1857
    %v2656 = vpack.c.b16 %v1865, %v1858
    %v2657 = vpack.c.b16 %v1866, %v1859
    %v2658 = vpack.c.b16 %v1867, %v1860
    %v2659 = vpack.c.b16 %v1875, %v1868
    %v2660 = vpack.c.b16 %v1876, %v1869
    %v2661 = vpack.c.b16 %v1877, %v1870
    %v2662 = vpack.c.b16 %v1878, %v1871
    %v2663 = vpack.c.b16 %v1879, %v1872
    %v2664 = vpack.c.b16 %v1880, %v1873
    %v2665 = vpack.c.b16 %v1881, %v1874
    %v2666 = vpack.c.b16 %v1889, %v1882
    %v2667 = vpack.c.b16 %v1890, %v1883
    %v2668 = vpack.c.b16 %v1891, %v1884
    %v2669 = vpack.c.b16 %v1892, %v1885
    %v2670 = vpack.c.b16 %v1893, %v1886
    %v2671 = vpack.c.b16 %v1894, %v1887
    %v2672 = vpack.c.b16 %v1895, %v1888
    %v2673 = vpack.c.b16 %v1903, %v1896
    %v2674 = vpack.c.b16 %v1904, %v1897
    %v2675 = vpack.c.b16 %v1905, %v1898
    %v2676 = vpack.c.b16 %v1906, %v1899
    %v2677 = vpack.c.b16 %v1907, %v1900
    %v2678 = vpack.c.b16 %v1908, %v1901
    %v2679 = vpack.c.b16 %v1909, %v1902
    %v2680 = vpack.c.b16 %v1917, %v1910
    %v2681 = vpack.c.b16 %v1918, %v1911
    %v2682 = vpack.c.b16 %v1919, %v1912
    %v2683 = vpack.c.b16 %v1920, %v1913
    %v2684 = vpack.c.b16 %v1921, %v1914
    %v2685 = vpack.c.b16 %v1922, %v1915
    %v2686 = vpack.c.b16 %v1923, %v1916
    %v2687 = vpack.c.b16 %v1931, %v1924
    %v2688 = vpack.c.b16 %v1932, %v1925
    %v2689 = vpack.c.b16 %v1933, %v1926
    %v2690 = vpack.c.b16 %v1934, %v1927
    %v2691 = vpack.c.b16 %v1935, %v1928
    %v2692 = vpack.c.b16 %v1936, %v1929
    %v2693 = vpack.c.b16 %v1937, %v1930
    %v2694 = vpack.c.b16 %v1945, %v1938
    %v2695 = vpack.c.b16 %v1946, %v1939
    %v2696 = vpack.c.b16 %v1947, %v1940
    %v2697 = vpack.c.b16 %v1948, %v1941
    %v2698 = vpack.c.b16 %v1949, %v1942
    %v2699 = vpack.c.b16 %v1950, %v1943
    %v2700 = vpack.c.b16 %v1951, %v1944
    %v2701 = vpack.c.b16 %v1959, %v1952
    %v2702 = vpack.c.b16 %v1960, %v1953
    %v2703 = vpack.c.b16 %v1961, %v1954
    %v2704 = vpack.c.b16 %v1962, %v1955
    %v2705 = vpack.c.b16 %v1963, %v1956
    %v2706 = vpack.c.b16 %v1964, %v1957
    %v2707 = vpack.c.b16 %v1965, %v1958
    %v2708 = vpack.c.b16 %v1973, %v1966
    %v2709 = vpack.c.b16 %v1974, %v1967
    %v2710 = vpack.c.b16 %v1975, %v1968
    %v2711 = vpack.c.b16 %v1976, %v1969
    %v2712 = vpack.c.b16 %v1977, %v1970
    %v2713 = vpack.c.b16 %v1978, %v1971
    %v2714 = vpack.c.b16 %v1979, %v1972
    %v2715 = vpack.c.b16 %v1987, %v1980
    %v2716 = vpack.c.b16 %v1988, %v1981
    %v2717 = vpack.c.b16 %v1989, %v1982
    %v2718 = vpack.c.b16 %v1990, %v1983
    %v2719 = vpack.c.b16 %v1991, %v1984
    %v2720 = vpack.c.b16 %v1992, %v1985
    %v2721 = vpack.c.b16 %v1993, %v1986
    %v2722 = vpack.c.b16 %v2001, %v1994
    %v2723 = vpack.c.b16 %v2002, %v1995
    %v2724 = vpack.c.b16 %v2003, %v1996
    %v2725 = vpack.c.b16 %v2004, %v1997
    %v2726 = vpack.c.b16 %v2005, %v1998
    %v2727 = vpack.c.b16 %v2006, %v1999
    %v2728 = vpack.c.b16 %v2007, %v2000
    %v2729 = vpack.c.b16 %v2015, %v2008
    %v2730 = vpack.c.b16 %v2016, %v2009
    %v2731 = vpack.c.b16 %v2017, %v2010
    %v2732 = vpack.c.b16 %v2018, %v2011
    %v2733 = vpack.c.b16 %v2019, %v2012
    %v2734 = vpack.c.b16 %v2020, %v2013
    %v2735 = vpack.c.b16 %v2021, %v2014
    %v2736 = vpack.c.b16 %v2029, %v2022
    %v2737 = vpack.c.b16 %v2030, %v2023
    %v2738 = vpack.c.b16 %v2031, %v2024
    %v2739 = vpack.c.b16 %v2032, %v2025
    %v2740 = vpack.c.b16 %v2033, %v2026
    %v2741 = vpack.c.b16 %v2034, %v2027
    %v2742 = vpack.c.b16 %v2035, %v2028
    %v2743 = vpack.c.b16 %v2043, %v2036
    %v2744 = vpack.c.b16 %v2044, %v2037
    %v2745 = vpack.c.b16 %v2045, %v2038
    %v2746 = vpack.c.b16 %v2046, %v2039
    %v2747 = vpack.c.b16 %v2047, %v2040
    %v2748 = vpack.c.b16 %v2048, %v2041
    %v2749 = vpack.c.b16 %v2049, %v2042
    %v2750 = vpack.c.b16 %v2057, %v2050
    %v2751 = vpack.c.b16 %v2058, %v2051
    %v2752 = vpack.c.b16 %v2059, %v2052
    %v2753 = vpack.c.b16 %v2060, %v2053
    %v2754 = vpack.c.b16 %v2061, %v2054
    %v2755 = vpack.c.b16 %v2062, %v2055
    %v2756 = vpack.c.b16 %v2063, %v2056
    %v2757 = vpack.c.b16 %v2071, %v2064
    %v2758 = vpack.c.b16 %v2072, %v2065
    %v2759 = vpack.c.b16 %v2073, %v2066
    %v2760 = vpack.c.b16 %v2074, %v2067
    %v2761 = vpack.c.b16 %v2075, %v2068
    %v2762 = vpack.c.b16 %v2076, %v2069
    %v2763 = vpack.c.b16 %v2077, %v2070
    %v2764 = vpack.c.b16 %v2085, %v2078
    %v2765 = vpack.c.b16 %v2086, %v2079
    %v2766 = vpack.c.b16 %v2087, %v2080
    %v2767 = vpack.c.b16 %v2088, %v2081
    %v2768 = vpack.c.b16 %v2089, %v2082
    %v2769 = vpack.c.b16 %v2090, %v2083
    %v2770 = vpack.c.b16 %v2091, %v2084
    %v2771 = vpack.c.b16 %v2099, %v2092
    %v2772 = vpack.c.b16 %v2100, %v2093
    %v2773 = vpack.c.b16 %v2101, %v2094
    %v2774 = vpack.c.b16 %v2102, %v2095
    %v2775 = vpack.c.b16 %v2103, %v2096
    %v2776 = vpack.c.b16 %v2104, %v2097
    %v2777 = vpack.c.b16 %v2105, %v2098
    %v2778 = vpack.c.b16 %v2113, %v2106
    %v2779 = vpack.c.b16 %v2114, %v2107
    %v2780 = vpack.c.b16 %v2115, %v2108
    %v2781 = vpack.c.b16 %v2116, %v2109
    %v2782 = vpack.c.b16 %v2117, %v2110
    %v2783 = vpack.c.b16 %v2118, %v2111
    %v2784 = vpack.c.b16 %v2119, %v2112
    %v2785 = vpack.c.b16 %v2127, %v2120
    %v2786 = vpack.c.b16 %v2128, %v2121
    %v2787 = vpack.c.b16 %v2129, %v2122
    %v2788 = vpack.c.b16 %v2130, %v2123
    %v2789 = vpack.c.b16 %v2131, %v2124
    %v2790 = vpack.c.b16 %v2132, %v2125
    %v2791 = vpack.c.b16 %v2133, %v2126
    %v2792 = vpack.c.b16 %v2141, %v2134
    %v2793 = vpack.c.b16 %v2142, %v2135
    %v2794 = vpack.c.b16 %v2143, %v2136
    %v2795 = vpack.c.b16 %v2144, %v2137
    %v2796 = vpack.c.b16 %v2145, %v2138
    %v2797 = vpack.c.b16 %v2146, %v2139
    %v2798 = vpack.c.b16 %v2147, %v2140
    %v2799 = vpack.c.b16 %v2155, %v2148
    %v2800 = vpack.c.b16 %v2156, %v2149
    %v2801 = vpack.c.b16 %v2157, %v2150
    %v2802 = vpack.c.b16 %v2158, %v2151
    %v2803 = vpack.c.b16 %v2159, %v2152
    %v2804 = vpack.c.b16 %v2160, %v2153
    %v2805 = vpack.c.b16 %v2161, %v2154
    %v2806 = vpack.c.b16 %v2169, %v2162
    %v2807 = vpack.c.b16 %v2170, %v2163
    %v2808 = vpack.c.b16 %v2171, %v2164
    %v2809 = vpack.c.b16 %v2172, %v2165
    %v2810 = vpack.c.b16 %v2173, %v2166
    %v2811 = vpack.c.b16 %v2174, %v2167
    %v2812 = vpack.c.b16 %v2175, %v2168
    %v2813 = vpack.c.b16 %v2183, %v2176
    %v2814 = vpack.c.b16 %v2184, %v2177
    %v2815 = vpack.c.b16 %v2185, %v2178
    %v2816 = vpack.c.b16 %v2186, %v2179
    %v2817 = vpack.c.b16 %v2187, %v2180
    %v2818 = vpack.c.b16 %v2188, %v2181
    %v2819 = vpack.c.b16 %v2189, %v2182
    %v2820 = vpack.c.b16 %v2197, %v2190
    %v2821 = vpack.c.b16 %v2198, %v2191
    %v2822 = vpack.c.b16 %v2199, %v2192
    %v2823 = vpack.c.b16 %v2200, %v2193
    %v2824 = vpack.c.b16 %v2201, %v2194
    %v2825 = vpack.c.b16 %v2202, %v2195
    %v2826 = vpack.c.b16 %v2203, %v2196
    %v2827 = vpack.c.b16 %v2211, %v2204
    %v2828 = vpack.c.b16 %v2212, %v2205
    %v2829 = vpack.c.b16 %v2213, %v2206
    %v2830 = vpack.c.b16 %v2214, %v2207
    %v2831 = vpack.c.b16 %v2215, %v2208
    %v2832 = vpack.c.b16 %v2216, %v2209
    %v2833 = vpack.c.b16 %v2217, %v2210
    %v2834 = vpack.c.b16 %v2225, %v2218
    %v2835 = vpack.c.b16 %v2226, %v2219
    %v2836 = vpack.c.b16 %v2227, %v2220
    %v2837 = vpack.c.b16 %v2228, %v2221
    %v2838 = vpack.c.b16 %v2229, %v2222
    %v2839 = vpack.c.b16 %v2230, %v2223
    %v2840 = vpack.c.b16 %v2231, %v2224
    %v2841 = vpack.c.b16 %v2239, %v2232
    %v2842 = vpack.c.b16 %v2240, %v2233
    %v2843 = vpack.c.b16 %v2241, %v2234
    %v2844 = vpack.c.b16 %v2242, %v2235
    %v2845 = vpack.c.b16 %v2243, %v2236
    %v2846 = vpack.c.b16 %v2244, %v2237
    %v2847 = vpack.c.b16 %v2245, %v2238
    %v2848 = vpack.c.b16 %v2253, %v2246
    %v2849 = vpack.c.b16 %v2254, %v2247
    %v2850 = vpack.c.b16 %v2255, %v2248
    %v2851 = vpack.c.b16 %v2256, %v2249
    %v2852 = vpack.c.b16 %v2257, %v2250
    %v2853 = vpack.c.b16 %v2258, %v2251
    %v2854 = vpack.c.b16 %v2259, %v2252
    %v2855 = vpack.c.b16 %v2267, %v2260
    %v2856 = vpack.c.b16 %v2268, %v2261
    %v2857 = vpack.c.b16 %v2269, %v2262
    %v2858 = vpack.c.b16 %v2270, %v2263
    %v2859 = vpack.c.b16 %v2271, %v2264
    %v2860 = vpack.c.b16 %v2272, %v2265
    %v2861 = vpack.c.b16 %v2273, %v2266
    %v2862 = vpack.c.b16 %v2281, %v2274
    %v2863 = vpack.c.b16 %v2282, %v2275
    %v2864 = vpack.c.b16 %v2283, %v2276
    %v2865 = vpack.c.b16 %v2284, %v2277
    %v2866 = vpack.c.b16 %v2285, %v2278
    %v2867 = vpack.c.b16 %v2286, %v2279
    %v2868 = vpack.c.b16 %v2287, %v2280
    %v2869 = vpack.c.b16 %v2295, %v2288
    %v2870 = vpack.c.b16 %v2296, %v2289
    %v2871 = vpack.c.b16 %v2297, %v2290
    %v2872 = vpack.c.b16 %v2298, %v2291
    %v2873 = vpack.c.b16 %v2299, %v2292
    %v2874 = vpack.c.b16 %v2300, %v2293
    %v2875 = vpack.c.b16 %v2301, %v2294
    %v2876 = vpack.c.b16 %v2309, %v2302
    %v2877 = vpack.c.b16 %v2310, %v2303
    %v2878 = vpack.c.b16 %v2311, %v2304
    %v2879 = vpack.c.b16 %v2312, %v2305
    %v2880 = vpack.c.b16 %v2313, %v2306
    %v2881 = vpack.c.b16 %v2314, %v2307
    %v2882 = vpack.c.b16 %v2315, %v2308
    %v2883 = vpack.c.b16 %v2323, %v2316
    %v2884 = vpack.c.b16 %v2324, %v2317
    %v2885 = vpack.c.b16 %v2325, %v2318
    %v2886 = vpack.c.b16 %v2326, %v2319
    %v2887 = vpack.c.b16 %v2327, %v2320
    %v2888 = vpack.c.b16 %v2328, %v2321
    %v2889 = vpack.c.b16 %v2329, %v2322
    %v2890 = vpack.c.b16 %v2337, %v2330
    %v2891 = vpack.c.b16 %v2338, %v2331
    %v2892 = vpack.c.b16 %v2339, %v2332
    %v2893 = vpack.c.b16 %v2340, %v2333
    %v2894 = vpack.c.b16 %v2341, %v2334
    %v2895 = vpack.c.b16 %v2342, %v2335
    %v2896 = vpack.c.b16 %v2343, %v2336
    %v2897 = vpack.c.b16 %v2351, %v2344
    %v2898 = vpack.c.b16 %v2352, %v2345
    %v2899 = vpack.c.b16 %v2353, %v2346
    %v2900 = vpack.c.b16 %v2354, %v2347
    %v2901 = vpack.c.b16 %v2355, %v2348
    %v2902 = vpack.c.b16 %v2356, %v2349
    %v2903 = vpack.c.b16 %v2357, %v2350
    %v2904 = vpack.c.b16 %v2365, %v2358
    %v2905 = vpack.c.b16 %v2366, %v2359
    %v2906 = vpack.c.b16 %v2367, %v2360
    %v2907 = vpack.c.b16 %v2368, %v2361
    %v2908 = vpack.c.b16 %v2369, %v2362
    %v2909 = vpack.c.b16 %v2370, %v2363
    %v2910 = vpack.c.b16 %v2371, %v2364
    %v2911 = vpack.c.b16 %v2379, %v2372
    %v2912 = vpack.c.b16 %v2380, %v2373
    %v2913 = vpack.c.b16 %v2381, %v2374
    %v2914 = vpack.c.b16 %v2382, %v2375
    %v2915 = vpack.c.b16 %v2383, %v2376
    %v2916 = vpack.c.b16 %v2384, %v2377
    %v2917 = vpack.c.b16 %v2385, %v2378
    %v2918 = vpack.c.b16 %v2393, %v2386
    %v2919 = vpack.c.b16 %v2394, %v2387
    %v2920 = vpack.c.b16 %v2395, %v2388
    %v2921 = vpack.c.b16 %v2396, %v2389
    %v2922 = vpack.c.b16 %v2397, %v2390
    %v2923 = vpack.c.b16 %v2398, %v2391
    %v2924 = vpack.c.b16 %v2399, %v2392
    %v2925 = vpack.c.b16 %v2407, %v2400
    %v2926 = vpack.c.b16 %v2408, %v2401
    %v2927 = vpack.c.b16 %v2409, %v2402
    %v2928 = vpack.c.b16 %v2410, %v2403
    %v2929 = vpack.c.b16 %v2411, %v2404
    %v2930 = vpack.c.b16 %v2412, %v2405
    %v2931 = vpack.c.b16 %v2413, %v2406
    %v2932 = vpack.c.b16 %v2421, %v2414
    %v2933 = vpack.c.b16 %v2422, %v2415
    %v2934 = vpack.c.b16 %v2423, %v2416
    %v2935 = vpack.c.b16 %v2424, %v2417
    %v2936 = vpack.c.b16 %v2425, %v2418
    %v2937 = vpack.c.b16 %v2426, %v2419
    %v2938 = vpack.c.b16 %v2427, %v2420
    %v2939 = vpack.c.b16 %v2435, %v2428
    %v2940 = vpack.c.b16 %v2436, %v2429
    %v2941 = vpack.c.b16 %v2437, %v2430
    %v2942 = vpack.c.b16 %v2438, %v2431
    %v2943 = vpack.c.b16 %v2439, %v2432
    %v2944 = vpack.c.b16 %v2440, %v2433
    %v2945 = vpack.c.b16 %v2441, %v2434
    %3450 = vmatprep.subr.bf16.mxu0 %v2443
    %3451 = vmatpush1.bf16.msra.mxu0 %v2442
    %3452 = vmatprep.subr.bf16.mxu0 %v2450
    %3453 = vmatpush1.bf16.msra.mxu0 %v2449
    %3454 = vmatprep.subr.bf16.mxu0 %v2457
    %3455 = vmatpush1.bf16.msra.mxu0 %v2456
    %3456 = vmatprep.subr.bf16.mxu0 %v2464
    %3457 = vmatpush1.bf16.msra.mxu0 %v2463
    %3458 = vmatprep.subr.bf16.mxu0 %v2471
    %3459 = vmatpush1.bf16.msra.mxu0 %v2470
    %3460 = vmatprep.subr.bf16.mxu0 %v2478
    %3461 = vmatpush1.bf16.msra.mxu0 %v2477
    %3462 = vmatprep.subr.bf16.mxu0 %v2485
    %3463 = vmatpush1.bf16.msra.mxu0 %v2484
    %3464 = vmatprep.subr.bf16.mxu0 %v2492
    %3465 = vmatpush1.bf16.msra.mxu0 %v2491
    %3466 = vmatprep.subr.bf16.mxu0 %v2499
    %3467 = vmatpush1.bf16.msra.mxu0 %v2498
    %3468 = vmatprep.subr.bf16.mxu0 %v2506
    %3469 = vmatpush1.bf16.msra.mxu0 %v2505
    %3470 = vmatprep.subr.bf16.mxu0 %v2513
    %3471 = vmatpush1.bf16.msra.mxu0 %v2512
    %3472 = vmatprep.subr.bf16.mxu0 %v2520
    %3473 = vmatpush1.bf16.msra.mxu0 %v2519
    %3474 = vmatprep.subr.bf16.mxu0 %v2527
    %3475 = vmatpush1.bf16.msra.mxu0 %v2526
    %3476 = vmatprep.subr.bf16.mxu0 %v2534
    %3477 = vmatpush1.bf16.msra.mxu0 %v2533
    %3478 = vmatprep.subr.bf16.mxu0 %v2541
    %3479 = vmatpush1.bf16.msra.mxu0 %v2540
    %3480 = vmatprep.subr.bf16.mxu0 %v2548
    %3481 = vmatpush1.bf16.msra.mxu0 %v2547
    %3482 = vmatprep.mubr.bf16.mxu0 %v841
    %3483 = vmatmul.mubr.bf16.gmra.mrb[0].mxu0 %v840
    %v3484 = vpop.f32.mrb[0].mxu0
    %v3485 = vadd.f32 %v794, %v3484
    %v3486 = vpop.f32.mrb[0].mxu0
    %v3487 = vadd.f32 %v798, %v3486
    %v3488 = vpop.f32.mrb[0].mxu0
    %v3489 = vpop.f32.mrb[0].mxu0
    %3490 = vdwg.mxu0
    %3491 = vmatprep.subr.bf16.mxu0 %v2555
    %3492 = vmatpush1.bf16.msra.mxu0 %v2554
    %3493 = vmatprep.subr.bf16.mxu0 %v2562
    %3494 = vmatpush1.bf16.msra.mxu0 %v2561
    %3495 = vmatprep.subr.bf16.mxu0 %v2569
    %3496 = vmatpush1.bf16.msra.mxu0 %v2568
    %3497 = vmatprep.subr.bf16.mxu0 %v2576
    %3498 = vmatpush1.bf16.msra.mxu0 %v2575
    %3499 = vmatprep.subr.bf16.mxu0 %v2583
    %3500 = vmatpush1.bf16.msra.mxu0 %v2582
    %3501 = vmatprep.subr.bf16.mxu0 %v2590
    %3502 = vmatpush1.bf16.msra.mxu0 %v2589
    %3503 = vmatprep.subr.bf16.mxu0 %v2597
    %3504 = vmatpush1.bf16.msra.mxu0 %v2596
    %3505 = vmatprep.subr.bf16.mxu0 %v2604
    %3506 = vmatpush1.bf16.msra.mxu0 %v2603
    %3507 = vmatprep.subr.bf16.mxu0 %v2611
    %3508 = vmatpush1.bf16.msra.mxu0 %v2610
    %3509 = vmatprep.subr.bf16.mxu0 %v2618
    %3510 = vmatpush1.bf16.msra.mxu0 %v2617
    %3511 = vmatprep.subr.bf16.mxu0 %v2625
    %3512 = vmatpush1.bf16.msra.mxu0 %v2624
    %3513 = vmatprep.subr.bf16.mxu0 %v2632
    %3514 = vmatpush1.bf16.msra.mxu0 %v2631
    %3515 = vmatprep.subr.bf16.mxu0 %v2639
    %3516 = vmatpush1.bf16.msra.mxu0 %v2638
    %3517 = vmatprep.subr.bf16.mxu0 %v2646
    %3518 = vmatpush1.bf16.msra.mxu0 %v2645
    %3519 = vmatprep.subr.bf16.mxu0 %v2653
    %3520 = vmatpush1.bf16.msra.mxu0 %v2652
    %3521 = vmatprep.subr.bf16.mxu0 %v2660
    %3522 = vmatpush1.bf16.msra.mxu0 %v2659
    %3523 = vmatprep.mubr.bf16.mxu0 %v843
    %3524 = vmatmul.mubr.bf16.gmra.mrb[0].mxu0 %v842
    %v3525 = vpop.f32.mrb[0].mxu0
    %v3526 = vadd.f32 %v3485, %v3525
    %v3527 = vpop.f32.mrb[0].mxu0
    %v3528 = vadd.f32 %v3487, %v3527
    %v3529 = vpop.f32.mrb[0].mxu0
    %v3530 = vpop.f32.mrb[0].mxu0
    %3531 = vdwg.mxu0
    %3532 = vmatprep.subr.bf16.mxu0 %v2667
    %3533 = vmatpush1.bf16.msra.mxu0 %v2666
    %3534 = vmatprep.subr.bf16.mxu0 %v2674
    %3535 = vmatpush1.bf16.msra.mxu0 %v2673
    %3536 = vmatprep.subr.bf16.mxu0 %v2681
    %3537 = vmatpush1.bf16.msra.mxu0 %v2680
    %3538 = vmatprep.subr.bf16.mxu0 %v2688
    %3539 = vmatpush1.bf16.msra.mxu0 %v2687
    %3540 = vmatprep.subr.bf16.mxu0 %v2695
    %3541 = vmatpush1.bf16.msra.mxu0 %v2694
    %3542 = vmatprep.subr.bf16.mxu0 %v2702
    %3543 = vmatpush1.bf16.msra.mxu0 %v2701
    %3544 = vmatprep.subr.bf16.mxu0 %v2709
    %3545 = vmatpush1.bf16.msra.mxu0 %v2708
    %3546 = vmatprep.subr.bf16.mxu0 %v2716
    %3547 = vmatpush1.bf16.msra.mxu0 %v2715
    %3548 = vmatprep.subr.bf16.mxu0 %v2723
    %3549 = vmatpush1.bf16.msra.mxu0 %v2722
    %3550 = vmatprep.subr.bf16.mxu0 %v2730
    %3551 = vmatpush1.bf16.msra.mxu0 %v2729
    %3552 = vmatprep.subr.bf16.mxu0 %v2737
    %3553 = vmatpush1.bf16.msra.mxu0 %v2736
    %3554 = vmatprep.subr.bf16.mxu0 %v2744
    %3555 = vmatpush1.bf16.msra.mxu0 %v2743
    %3556 = vmatprep.subr.bf16.mxu0 %v2751
    %3557 = vmatpush1.bf16.msra.mxu0 %v2750
    %3558 = vmatprep.subr.bf16.mxu0 %v2758
    %3559 = vmatpush1.bf16.msra.mxu0 %v2757
    %3560 = vmatprep.subr.bf16.mxu0 %v2765
    %3561 = vmatpush1.bf16.msra.mxu0 %v2764
    %3562 = vmatprep.subr.bf16.mxu0 %v2772
    %3563 = vmatpush1.bf16.msra.mxu0 %v2771
    %3564 = vmatprep.mubr.bf16.mxu0 %v845
    %3565 = vmatmul.mubr.bf16.gmra.mrb[0].mxu0 %v844
    %v3566 = vpop.f32.mrb[0].mxu0
    %v3567 = vadd.f32 %v3526, %v3566
    %v3568 = vpop.f32.mrb[0].mxu0
    %v3569 = vadd.f32 %v3528, %v3568
    %v3570 = vpop.f32.mrb[0].mxu0
    %v3571 = vpop.f32.mrb[0].mxu0
    %3572 = vdwg.mxu0
    %3573 = vmatprep.subr.bf16.mxu0 %v2779
    %3574 = vmatpush1.bf16.msra.mxu0 %v2778
    %3575 = vmatprep.subr.bf16.mxu0 %v2786
    %3576 = vmatpush1.bf16.msra.mxu0 %v2785
    %3577 = vmatprep.subr.bf16.mxu0 %v2793
    %3578 = vmatpush1.bf16.msra.mxu0 %v2792
    %3579 = vmatprep.subr.bf16.mxu0 %v2800
    %3580 = vmatpush1.bf16.msra.mxu0 %v2799
    %3581 = vmatprep.subr.bf16.mxu0 %v2807
    %3582 = vmatpush1.bf16.msra.mxu0 %v2806
    %3583 = vmatprep.subr.bf16.mxu0 %v2814
    %3584 = vmatpush1.bf16.msra.mxu0 %v2813
    %3585 = vmatprep.subr.bf16.mxu0 %v2821
    %3586 = vmatpush1.bf16.msra.mxu0 %v2820
    %3587 = vmatprep.subr.bf16.mxu0 %v2828
    %3588 = vmatpush1.bf16.msra.mxu0 %v2827
    %3589 = vmatprep.subr.bf16.mxu0 %v2835
    %3590 = vmatpush1.bf16.msra.mxu0 %v2834
    %3591 = vmatprep.subr.bf16.mxu0 %v2842
    %3592 = vmatpush1.bf16.msra.mxu0 %v2841
    %3593 = vmatprep.subr.bf16.mxu0 %v2849
    %3594 = vmatpush1.bf16.msra.mxu0 %v2848
    %3595 = vmatprep.subr.bf16.mxu0 %v2856
    %3596 = vmatpush1.bf16.msra.mxu0 %v2855
    %3597 = vmatprep.subr.bf16.mxu0 %v2863
    %3598 = vmatpush1.bf16.msra.mxu0 %v2862
    %3599 = vmatprep.subr.bf16.mxu0 %v2870
    %3600 = vmatpush1.bf16.msra.mxu0 %v2869
    %3601 = vmatprep.subr.bf16.mxu0 %v2877
    %3602 = vmatpush1.bf16.msra.mxu0 %v2876
    %3603 = vmatprep.subr.bf16.mxu0 %v2884
    %3604 = vmatpush1.bf16.msra.mxu0 %v2883
    %3605 = vmatprep.mubr.bf16.mxu0 %v847
    %3606 = vmatmul.mubr.bf16.gmra.mrb[0].mxu0 %v846
    %v3607 = vpop.f32.mrb[0].mxu0
    %v3608 = vadd.f32 %v3567, %v3607
    %v3609 = vpop.f32.mrb[0].mxu0
    %v3610 = vadd.f32 %v3569, %v3609
    %v3611 = vpop.f32.mrb[0].mxu0
    %v3612 = vpop.f32.mrb[0].mxu0
    %3613 = vdwg.mxu0
    %3614 = vmatprep.subr.bf16.mxu0 %v2891
    %3615 = vmatpush1.bf16.msra.mxu0 %v2890
    %3616 = vmatprep.subr.bf16.mxu0 %v2898
    %3617 = vmatpush1.bf16.msra.mxu0 %v2897
    %3618 = vmatprep.subr.bf16.mxu0 %v2905
    %3619 = vmatpush1.bf16.msra.mxu0 %v2904
    %3620 = vmatprep.subr.bf16.mxu0 %v2912
    %3621 = vmatpush1.bf16.msra.mxu0 %v2911
    %3622 = vmatprep.subr.bf16.mxu0 %v2919
    %3623 = vmatpush1.bf16.msra.mxu0 %v2918
    %3624 = vmatprep.subr.bf16.mxu0 %v2926
    %3625 = vmatpush1.bf16.msra.mxu0 %v2925
    %3626 = vmatprep.subr.bf16.mxu0 %v2933
    %3627 = vmatpush1.bf16.msra.mxu0 %v2932
    %3628 = vmatprep.subr.bf16.mxu0 %v2940
    %3629 = vmatpush1.bf16.msra.mxu0 %v2939
    %3630 = vmatprep.subr.bf16.mxu0 0
    %3631 = vmatpush1.bf16.msra.mxu0 0
    %3632 = vmatprep.subr.bf16.mxu0 0
    %3633 = vmatpush1.bf16.msra.mxu0 0
    %3634 = vmatprep.subr.bf16.mxu0 0
    %3635 = vmatpush1.bf16.msra.mxu0 0
    %3636 = vmatprep.subr.bf16.mxu0 0
    %3637 = vmatpush1.bf16.msra.mxu0 0
    %3638 = vmatprep.subr.bf16.mxu0 0
    %3639 = vmatpush1.bf16.msra.mxu0 0
    %3640 = vmatprep.subr.bf16.mxu0 0
    %3641 = vmatpush1.bf16.msra.mxu0 0
    %3642 = vmatprep.subr.bf16.mxu0 0
    %3643 = vmatpush1.bf16.msra.mxu0 0
    %3644 = vmatprep.subr.bf16.mxu0 0
    %3645 = vmatpush1.bf16.msra.mxu0 0
    %3646 = vmatprep.mubr.bf16.mxu0 0
    %3647 = vmatmul.mubr.bf16.gmra.mrb[0].mxu0 %v848
    %v3648 = vpop.f32.mrb[0].mxu0
    %v3649 = vadd.f32 %v3608, %v3648
    %v3650 = vpop.f32.mrb[0].mxu0
    %v3651 = vadd.f32 %v3610, %v3650
    %v3652 = vpop.f32.mrb[0].mxu0
    %v3653 = vpop.f32.mrb[0].mxu0
    %3654 = vdwg.mxu0
    %3655 = vmatprep.subr.bf16.mxu0 %v2445
    %3656 = vmatpush1.bf16.msra.mxu0 %v2444
    %3657 = vmatprep.subr.bf16.mxu0 %v2452
    %3658 = vmatpush1.bf16.msra.mxu0 %v2451
    %3659 = vmatprep.subr.bf16.mxu0 %v2459
    %3660 = vmatpush1.bf16.msra.mxu0 %v2458
    %3661 = vmatprep.subr.bf16.mxu0 %v2466
    %3662 = vmatpush1.bf16.msra.mxu0 %v2465
    %3663 = vmatprep.subr.bf16.mxu0 %v2473
    %3664 = vmatpush1.bf16.msra.mxu0 %v2472
    %3665 = vmatprep.subr.bf16.mxu0 %v2480
    %3666 = vmatpush1.bf16.msra.mxu0 %v2479
    %3667 = vmatprep.subr.bf16.mxu0 %v2487
    %3668 = vmatpush1.bf16.msra.mxu0 %v2486
    %3669 = vmatprep.subr.bf16.mxu0 %v2494
    %3670 = vmatpush1.bf16.msra.mxu0 %v2493
    %3671 = vmatprep.subr.bf16.mxu0 %v2501
    %3672 = vmatpush1.bf16.msra.mxu0 %v2500
    %3673 = vmatprep.subr.bf16.mxu0 %v2508
    %3674 = vmatpush1.bf16.msra.mxu0 %v2507
    %3675 = vmatprep.subr.bf16.mxu0 %v2515
    %3676 = vmatpush1.bf16.msra.mxu0 %v2514
    %3677 = vmatprep.subr.bf16.mxu0 %v2522
    %3678 = vmatpush1.bf16.msra.mxu0 %v2521
    %3679 = vmatprep.subr.bf16.mxu0 %v2529
    %3680 = vmatpush1.bf16.msra.mxu0 %v2528
    %3681 = vmatprep.subr.bf16.mxu0 %v2536
    %3682 = vmatpush1.bf16.msra.mxu0 %v2535
    %3683 = vmatprep.subr.bf16.mxu0 %v2543
    %3684 = vmatpush1.bf16.msra.mxu0 %v2542
    %3685 = vmatprep.subr.bf16.mxu0 %v2550
    %3686 = vmatpush1.bf16.msra.mxu0 %v2549
    %3687 = vmatprep.mubr.bf16.mxu0 %v841
    %3688 = vmatmul.mubr.bf16.gmra.mrb[0].mxu0 %v840
    %v3689 = vpop.f32.mrb[0].mxu0
    %v3690 = vadd.f32 %v802, %v3689
    %v3691 = vpop.f32.mrb[0].mxu0
    %v3692 = vadd.f32 %v806, %v3691
    %v3693 = vpop.f32.mrb[0].mxu0
    %v3694 = vpop.f32.mrb[0].mxu0
    %3695 = vdwg.mxu0
    %3696 = vmatprep.subr.bf16.mxu0 %v2557
    %3697 = vmatpush1.bf16.msra.mxu0 %v2556
    %3698 = vmatprep.subr.bf16.mxu0 %v2564
    %3699 = vmatpush1.bf16.msra.mxu0 %v2563
    %3700 = vmatprep.subr.bf16.mxu0 %v2571
    %3701 = vmatpush1.bf16.msra.mxu0 %v2570
    %3702 = vmatprep.subr.bf16.mxu0 %v2578
    %3703 = vmatpush1.bf16.msra.mxu0 %v2577
    %3704 = vmatprep.subr.bf16.mxu0 %v2585
    %3705 = vmatpush1.bf16.msra.mxu0 %v2584
    %3706 = vmatprep.subr.bf16.mxu0 %v2592
    %3707 = vmatpush1.bf16.msra.mxu0 %v2591
    %3708 = vmatprep.subr.bf16.mxu0 %v2599
    %3709 = vmatpush1.bf16.msra.mxu0 %v2598
    %3710 = vmatprep.subr.bf16.mxu0 %v2606
    %3711 = vmatpush1.bf16.msra.mxu0 %v2605
    %3712 = vmatprep.subr.bf16.mxu0 %v2613
    %3713 = vmatpush1.bf16.msra.mxu0 %v2612
    %3714 = vmatprep.subr.bf16.mxu0 %v2620
    %3715 = vmatpush1.bf16.msra.mxu0 %v2619
    %3716 = vmatprep.subr.bf16.mxu0 %v2627
    %3717 = vmatpush1.bf16.msra.mxu0 %v2626
    %3718 = vmatprep.subr.bf16.mxu0 %v2634
    %3719 = vmatpush1.bf16.msra.mxu0 %v2633
    %3720 = vmatprep.subr.bf16.mxu0 %v2641
    %3721 = vmatpush1.bf16.msra.mxu0 %v2640
    %3722 = vmatprep.subr.bf16.mxu0 %v2648
    %3723 = vmatpush1.bf16.msra.mxu0 %v2647
    %3724 = vmatprep.subr.bf16.mxu0 %v2655
    %3725 = vmatpush1.bf16.msra.mxu0 %v2654
    %3726 = vmatprep.subr.bf16.mxu0 %v2662
    %3727 = vmatpush1.bf16.msra.mxu0 %v2661
    %3728 = vmatprep.mubr.bf16.mxu0 %v843
    %3729 = vmatmul.mubr.bf16.gmra.mrb[0].mxu0 %v842
    %v3730 = vpop.f32.mrb[0].mxu0
    %v3731 = vadd.f32 %v3690, %v3730
    %v3732 = vpop.f32.mrb[0].mxu0
    %v3733 = vadd.f32 %v3692, %v3732
    %v3734 = vpop.f32.mrb[0].mxu0
    %v3735 = vpop.f32.mrb[0].mxu0
    %3736 = vdwg.mxu0
    %3737 = vmatprep.subr.bf16.mxu0 %v2669
    %3738 = vmatpush1.bf16.msra.mxu0 %v2668
    %3739 = vmatprep.subr.bf16.mxu0 %v2676
    %3740 = vmatpush1.bf16.msra.mxu0 %v2675
    %3741 = vmatprep.subr.bf16.mxu0 %v2683
    %3742 = vmatpush1.bf16.msra.mxu0 %v2682
    %3743 = vmatprep.subr.bf16.mxu0 %v2690
    %3744 = vmatpush1.bf16.msra.mxu0 %v2689
    %3745 = vmatprep.subr.bf16.mxu0 %v2697
    %3746 = vmatpush1.bf16.msra.mxu0 %v2696
    %3747 = vmatprep.subr.bf16.mxu0 %v2704
    %3748 = vmatpush1.bf16.msra.mxu0 %v2703
    %3749 = vmatprep.subr.bf16.mxu0 %v2711
    %3750 = vmatpush1.bf16.msra.mxu0 %v2710
    %3751 = vmatprep.subr.bf16.mxu0 %v2718
    %3752 = vmatpush1.bf16.msra.mxu0 %v2717
    %3753 = vmatprep.subr.bf16.mxu0 %v2725
    %3754 = vmatpush1.bf16.msra.mxu0 %v2724
    %3755 = vmatprep.subr.bf16.mxu0 %v2732
    %3756 = vmatpush1.bf16.msra.mxu0 %v2731
    %3757 = vmatprep.subr.bf16.mxu0 %v2739
    %3758 = vmatpush1.bf16.msra.mxu0 %v2738
    %3759 = vmatprep.subr.bf16.mxu0 %v2746
    %3760 = vmatpush1.bf16.msra.mxu0 %v2745
    %3761 = vmatprep.subr.bf16.mxu0 %v2753
    %3762 = vmatpush1.bf16.msra.mxu0 %v2752
    %3763 = vmatprep.subr.bf16.mxu0 %v2760
    %3764 = vmatpush1.bf16.msra.mxu0 %v2759
    %3765 = vmatprep.subr.bf16.mxu0 %v2767
    %3766 = vmatpush1.bf16.msra.mxu0 %v2766
    %3767 = vmatprep.subr.bf16.mxu0 %v2774
    %3768 = vmatpush1.bf16.msra.mxu0 %v2773
    %3769 = vmatprep.mubr.bf16.mxu0 %v845
    %3770 = vmatmul.mubr.bf16.gmra.mrb[0].mxu0 %v844
    %v3771 = vpop.f32.mrb[0].mxu0
    %v3772 = vadd.f32 %v3731, %v3771
    %v3773 = vpop.f32.mrb[0].mxu0
    %v3774 = vadd.f32 %v3733, %v3773
    %v3775 = vpop.f32.mrb[0].mxu0
    %v3776 = vpop.f32.mrb[0].mxu0
    %3777 = vdwg.mxu0
    %3778 = vmatprep.subr.bf16.mxu0 %v2781
    %3779 = vmatpush1.bf16.msra.mxu0 %v2780
    %3780 = vmatprep.subr.bf16.mxu0 %v2788
    %3781 = vmatpush1.bf16.msra.mxu0 %v2787
    %3782 = vmatprep.subr.bf16.mxu0 %v2795
    %3783 = vmatpush1.bf16.msra.mxu0 %v2794
    %3784 = vmatprep.subr.bf16.mxu0 %v2802
    %3785 = vmatpush1.bf16.msra.mxu0 %v2801
    %3786 = vmatprep.subr.bf16.mxu0 %v2809
    %3787 = vmatpush1.bf16.msra.mxu0 %v2808
    %3788 = vmatprep.subr.bf16.mxu0 %v2816
    %3789 = vmatpush1.bf16.msra.mxu0 %v2815
    %3790 = vmatprep.subr.bf16.mxu0 %v2823
    %3791 = vmatpush1.bf16.msra.mxu0 %v2822
    %3792 = vmatprep.subr.bf16.mxu0 %v2830
    %3793 = vmatpush1.bf16.msra.mxu0 %v2829
    %3794 = vmatprep.subr.bf16.mxu0 %v2837
    %3795 = vmatpush1.bf16.msra.mxu0 %v2836
    %3796 = vmatprep.subr.bf16.mxu0 %v2844
    %3797 = vmatpush1.bf16.msra.mxu0 %v2843
    %3798 = vmatprep.subr.bf16.mxu0 %v2851
    %3799 = vmatpush1.bf16.msra.mxu0 %v2850
    %3800 = vmatprep.subr.bf16.mxu0 %v2858
    %3801 = vmatpush1.bf16.msra.mxu0 %v2857
    %3802 = vmatprep.subr.bf16.mxu0 %v2865
    %3803 = vmatpush1.bf16.msra.mxu0 %v2864
    %3804 = vmatprep.subr.bf16.mxu0 %v2872
    %3805 = vmatpush1.bf16.msra.mxu0 %v2871
    %3806 = vmatprep.subr.bf16.mxu0 %v2879
    %3807 = vmatpush1.bf16.msra.mxu0 %v2878
    %3808 = vmatprep.subr.bf16.mxu0 %v2886
    %3809 = vmatpush1.bf16.msra.mxu0 %v2885
    %3810 = vmatprep.mubr.bf16.mxu0 %v847
    %3811 = vmatmul.mubr.bf16.gmra.mrb[0].mxu0 %v846
    %v3812 = vpop.f32.mrb[0].mxu0
    %v3813 = vadd.f32 %v3772, %v3812
    %v3814 = vpop.f32.mrb[0].mxu0
    %v3815 = vadd.f32 %v3774, %v3814
    %v3816 = vpop.f32.mrb[0].mxu0
    %v3817 = vpop.f32.mrb[0].mxu0
    %3818 = vdwg.mxu0
    %3819 = vmatprep.subr.bf16.mxu0 %v2893
    %3820 = vmatpush1.bf16.msra.mxu0 %v2892
    %3821 = vmatprep.subr.bf16.mxu0 %v2900
    %3822 = vmatpush1.bf16.msra.mxu0 %v2899
    %3823 = vmatprep.subr.bf16.mxu0 %v2907
    %3824 = vmatpush1.bf16.msra.mxu0 %v2906
    %3825 = vmatprep.subr.bf16.mxu0 %v2914
    %3826 = vmatpush1.bf16.msra.mxu0 %v2913
    %3827 = vmatprep.subr.bf16.mxu0 %v2921
    %3828 = vmatpush1.bf16.msra.mxu0 %v2920
    %3829 = vmatprep.subr.bf16.mxu0 %v2928
    %3830 = vmatpush1.bf16.msra.mxu0 %v2927
    %3831 = vmatprep.subr.bf16.mxu0 %v2935
    %3832 = vmatpush1.bf16.msra.mxu0 %v2934
    %3833 = vmatprep.subr.bf16.mxu0 %v2942
    %3834 = vmatpush1.bf16.msra.mxu0 %v2941
    %3835 = vmatprep.subr.bf16.mxu0 0
    %3836 = vmatpush1.bf16.msra.mxu0 0
    %3837 = vmatprep.subr.bf16.mxu0 0
    %3838 = vmatpush1.bf16.msra.mxu0 0
    %3839 = vmatprep.subr.bf16.mxu0 0
    %3840 = vmatpush1.bf16.msra.mxu0 0
    %3841 = vmatprep.subr.bf16.mxu0 0
    %3842 = vmatpush1.bf16.msra.mxu0 0
    %3843 = vmatprep.subr.bf16.mxu0 0
    %3844 = vmatpush1.bf16.msra.mxu0 0
    %3845 = vmatprep.subr.bf16.mxu0 0
    %3846 = vmatpush1.bf16.msra.mxu0 0
    %3847 = vmatprep.subr.bf16.mxu0 0
    %3848 = vmatpush1.bf16.msra.mxu0 0
    %3849 = vmatprep.subr.bf16.mxu0 0
    %3850 = vmatpush1.bf16.msra.mxu0 0
    %3851 = vmatprep.mubr.bf16.mxu0 0
    %3852 = vmatmul.mubr.bf16.gmra.mrb[0].mxu0 %v848
    %v3853 = vpop.f32.mrb[0].mxu0
    %v3854 = vadd.f32 %v3813, %v3853
    %v3855 = vpop.f32.mrb[0].mxu0
    %v3856 = vadd.f32 %v3815, %v3855
    %v3857 = vpop.f32.mrb[0].mxu0
    %v3858 = vpop.f32.mrb[0].mxu0
    %3859 = vdwg.mxu0
    %3860 = vmatprep.subr.bf16.mxu0 %v2447
    %3861 = vmatpush1.bf16.msra.mxu0 %v2446
    %3862 = vmatprep.subr.bf16.mxu0 %v2454
    %3863 = vmatpush1.bf16.msra.mxu0 %v2453
    %3864 = vmatprep.subr.bf16.mxu0 %v2461
    %3865 = vmatpush1.bf16.msra.mxu0 %v2460
    %3866 = vmatprep.subr.bf16.mxu0 %v2468
    %3867 = vmatpush1.bf16.msra.mxu0 %v2467
    %3868 = vmatprep.subr.bf16.mxu0 %v2475
    %3869 = vmatpush1.bf16.msra.mxu0 %v2474
    %3870 = vmatprep.subr.bf16.mxu0 %v2482
    %3871 = vmatpush1.bf16.msra.mxu0 %v2481
    %3872 = vmatprep.subr.bf16.mxu0 %v2489
    %3873 = vmatpush1.bf16.msra.mxu0 %v2488
    %3874 = vmatprep.subr.bf16.mxu0 %v2496
    %3875 = vmatpush1.bf16.msra.mxu0 %v2495
    %3876 = vmatprep.subr.bf16.mxu0 %v2503
    %3877 = vmatpush1.bf16.msra.mxu0 %v2502
    %3878 = vmatprep.subr.bf16.mxu0 %v2510
    %3879 = vmatpush1.bf16.msra.mxu0 %v2509
    %3880 = vmatprep.subr.bf16.mxu0 %v2517
    %3881 = vmatpush1.bf16.msra.mxu0 %v2516
    %3882 = vmatprep.subr.bf16.mxu0 %v2524
    %3883 = vmatpush1.bf16.msra.mxu0 %v2523
    %3884 = vmatprep.subr.bf16.mxu0 %v2531
    %3885 = vmatpush1.bf16.msra.mxu0 %v2530
    %3886 = vmatprep.subr.bf16.mxu0 %v2538
    %3887 = vmatpush1.bf16.msra.mxu0 %v2537
    %3888 = vmatprep.subr.bf16.mxu0 %v2545
    %3889 = vmatpush1.bf16.msra.mxu0 %v2544
    %3890 = vmatprep.subr.bf16.mxu0 %v2552
    %3891 = vmatpush1.bf16.msra.mxu0 %v2551
    %3892 = vmatprep.mubr.bf16.mxu0 %v841
    %3893 = vmatmul.mubr.bf16.gmra.mrb[0].mxu0 %v840
    %v3894 = vpop.f32.mrb[0].mxu0
    %v3895 = vadd.f32 %v810, %v3894
    %v3896 = vpop.f32.mrb[0].mxu0
    %v3897 = vadd.f32 %v814, %v3896
    %v3898 = vpop.f32.mrb[0].mxu0
    %v3899 = vpop.f32.mrb[0].mxu0
    %3900 = vdwg.mxu0
    %3901 = vmatprep.subr.bf16.mxu0 %v2559
    %3902 = vmatpush1.bf16.msra.mxu0 %v2558
    %3903 = vmatprep.subr.bf16.mxu0 %v2566
    %3904 = vmatpush1.bf16.msra.mxu0 %v2565
    %3905 = vmatprep.subr.bf16.mxu0 %v2573
    %3906 = vmatpush1.bf16.msra.mxu0 %v2572
    %3907 = vmatprep.subr.bf16.mxu0 %v2580
    %3908 = vmatpush1.bf16.msra.mxu0 %v2579
    %3909 = vmatprep.subr.bf16.mxu0 %v2587
    %3910 = vmatpush1.bf16.msra.mxu0 %v2586
    %3911 = vmatprep.subr.bf16.mxu0 %v2594
    %3912 = vmatpush1.bf16.msra.mxu0 %v2593
    %3913 = vmatprep.subr.bf16.mxu0 %v2601
    %3914 = vmatpush1.bf16.msra.mxu0 %v2600
    %3915 = vmatprep.subr.bf16.mxu0 %v2608
    %3916 = vmatpush1.bf16.msra.mxu0 %v2607
    %3917 = vmatprep.subr.bf16.mxu0 %v2615
    %3918 = vmatpush1.bf16.msra.mxu0 %v2614
    %3919 = vmatprep.subr.bf16.mxu0 %v2622
    %3920 = vmatpush1.bf16.msra.mxu0 %v2621
    %3921 = vmatprep.subr.bf16.mxu0 %v2629
    %3922 = vmatpush1.bf16.msra.mxu0 %v2628
    %3923 = vmatprep.subr.bf16.mxu0 %v2636
    %3924 = vmatpush1.bf16.msra.mxu0 %v2635
    %3925 = vmatprep.subr.bf16.mxu0 %v2643
    %3926 = vmatpush1.bf16.msra.mxu0 %v2642
    %3927 = vmatprep.subr.bf16.mxu0 %v2650
    %3928 = vmatpush1.bf16.msra.mxu0 %v2649
    %3929 = vmatprep.subr.bf16.mxu0 %v2657
    %3930 = vmatpush1.bf16.msra.mxu0 %v2656
    %3931 = vmatprep.subr.bf16.mxu0 %v2664
    %3932 = vmatpush1.bf16.msra.mxu0 %v2663
    %3933 = vmatprep.mubr.bf16.mxu0 %v843
    %3934 = vmatmul.mubr.bf16.gmra.mrb[0].mxu0 %v842
    %v3935 = vpop.f32.mrb[0].mxu0
    %v3936 = vadd.f32 %v3895, %v3935
    %v3937 = vpop.f32.mrb[0].mxu0
    %v3938 = vadd.f32 %v3897, %v3937
    %v3939 = vpop.f32.mrb[0].mxu0
    %v3940 = vpop.f32.mrb[0].mxu0
    %3941 = vdwg.mxu0
    %3942 = vmatprep.subr.bf16.mxu0 %v2671
    %3943 = vmatpush1.bf16.msra.mxu0 %v2670
    %3944 = vmatprep.subr.bf16.mxu0 %v2678
    %3945 = vmatpush1.bf16.msra.mxu0 %v2677
    %3946 = vmatprep.subr.bf16.mxu0 %v2685
    %3947 = vmatpush1.bf16.msra.mxu0 %v2684
    %3948 = vmatprep.subr.bf16.mxu0 %v2692
    %3949 = vmatpush1.bf16.msra.mxu0 %v2691
    %3950 = vmatprep.subr.bf16.mxu0 %v2699
    %3951 = vmatpush1.bf16.msra.mxu0 %v2698
    %3952 = vmatprep.subr.bf16.mxu0 %v2706
    %3953 = vmatpush1.bf16.msra.mxu0 %v2705
    %3954 = vmatprep.subr.bf16.mxu0 %v2713
    %3955 = vmatpush1.bf16.msra.mxu0 %v2712
    %3956 = vmatprep.subr.bf16.mxu0 %v2720
    %3957 = vmatpush1.bf16.msra.mxu0 %v2719
    %3958 = vmatprep.subr.bf16.mxu0 %v2727
    %3959 = vmatpush1.bf16.msra.mxu0 %v2726
    %3960 = vmatprep.subr.bf16.mxu0 %v2734
    %3961 = vmatpush1.bf16.msra.mxu0 %v2733
    %3962 = vmatprep.subr.bf16.mxu0 %v2741
    %3963 = vmatpush1.bf16.msra.mxu0 %v2740
    %3964 = vmatprep.subr.bf16.mxu0 %v2748
    %3965 = vmatpush1.bf16.msra.mxu0 %v2747
    %3966 = vmatprep.subr.bf16.mxu0 %v2755
    %3967 = vmatpush1.bf16.msra.mxu0 %v2754
    %3968 = vmatprep.subr.bf16.mxu0 %v2762
    %3969 = vmatpush1.bf16.msra.mxu0 %v2761
    %3970 = vmatprep.subr.bf16.mxu0 %v2769
    %3971 = vmatpush1.bf16.msra.mxu0 %v2768
    %3972 = vmatprep.subr.bf16.mxu0 %v2776
    %3973 = vmatpush1.bf16.msra.mxu0 %v2775
    %3974 = vmatprep.mubr.bf16.mxu0 %v845
    %3975 = vmatmul.mubr.bf16.gmra.mrb[0].mxu0 %v844
    %v3976 = vpop.f32.mrb[0].mxu0
    %v3977 = vadd.f32 %v3936, %v3976
    %v3978 = vpop.f32.mrb[0].mxu0
    %v3979 = vadd.f32 %v3938, %v3978
    %v3980 = vpop.f32.mrb[0].mxu0
    %v3981 = vpop.f32.mrb[0].mxu0
    %3982 = vdwg.mxu0
    %3983 = vmatprep.subr.bf16.mxu0 %v2783
    %3984 = vmatpush1.bf16.msra.mxu0 %v2782
    %3985 = vmatprep.subr.bf16.mxu0 %v2790
    %3986 = vmatpush1.bf16.msra.mxu0 %v2789
    %3987 = vmatprep.subr.bf16.mxu0 %v2797
    %3988 = vmatpush1.bf16.msra.mxu0 %v2796
    %3989 = vmatprep.subr.bf16.mxu0 %v2804
    %3990 = vmatpush1.bf16.msra.mxu0 %v2803
    %3991 = vmatprep.subr.bf16.mxu0 %v2811
    %3992 = vmatpush1.bf16.msra.mxu0 %v2810
    %3993 = vmatprep.subr.bf16.mxu0 %v2818
    %3994 = vmatpush1.bf16.msra.mxu0 %v2817
    %3995 = vmatprep.subr.bf16.mxu0 %v2825
    %3996 = vmatpush1.bf16.msra.mxu0 %v2824
    %3997 = vmatprep.subr.bf16.mxu0 %v2832
    %3998 = vmatpush1.bf16.msra.mxu0 %v2831
    %3999 = vmatprep.subr.bf16.mxu0 %v2839
    %4000 = vmatpush1.bf16.msra.mxu0 %v2838
    %4001 = vmatprep.subr.bf16.mxu0 %v2846
    %4002 = vmatpush1.bf16.msra.mxu0 %v2845
    %4003 = vmatprep.subr.bf16.mxu0 %v2853
    %4004 = vmatpush1.bf16.msra.mxu0 %v2852
    %4005 = vmatprep.subr.bf16.mxu0 %v2860
    %4006 = vmatpush1.bf16.msra.mxu0 %v2859
    %4007 = vmatprep.subr.bf16.mxu0 %v2867
    %4008 = vmatpush1.bf16.msra.mxu0 %v2866
    %4009 = vmatprep.subr.bf16.mxu0 %v2874
    %4010 = vmatpush1.bf16.msra.mxu0 %v2873
    %4011 = vmatprep.subr.bf16.mxu0 %v2881
    %4012 = vmatpush1.bf16.msra.mxu0 %v2880
    %4013 = vmatprep.subr.bf16.mxu0 %v2888
    %4014 = vmatpush1.bf16.msra.mxu0 %v2887
    %4015 = vmatprep.mubr.bf16.mxu0 %v847
    %4016 = vmatmul.mubr.bf16.gmra.mrb[0].mxu0 %v846
    %v4017 = vpop.f32.mrb[0].mxu0
    %v4018 = vadd.f32 %v3977, %v4017
    %v4019 = vpop.f32.mrb[0].mxu0
    %v4020 = vadd.f32 %v3979, %v4019
    %v4021 = vpop.f32.mrb[0].mxu0
    %v4022 = vpop.f32.mrb[0].mxu0
    %4023 = vdwg.mxu0
    %4024 = vmatprep.subr.bf16.mxu0 %v2895
    %4025 = vmatpush1.bf16.msra.mxu0 %v2894
    %4026 = vmatprep.subr.bf16.mxu0 %v2902
    %4027 = vmatpush1.bf16.msra.mxu0 %v2901
    %4028 = vmatprep.subr.bf16.mxu0 %v2909
    %4029 = vmatpush1.bf16.msra.mxu0 %v2908
    %4030 = vmatprep.subr.bf16.mxu0 %v2916
    %4031 = vmatpush1.bf16.msra.mxu0 %v2915
    %4032 = vmatprep.subr.bf16.mxu0 %v2923
    %4033 = vmatpush1.bf16.msra.mxu0 %v2922
    %4034 = vmatprep.subr.bf16.mxu0 %v2930
    %4035 = vmatpush1.bf16.msra.mxu0 %v2929
    %4036 = vmatprep.subr.bf16.mxu0 %v2937
    %4037 = vmatpush1.bf16.msra.mxu0 %v2936
    %4038 = vmatprep.subr.bf16.mxu0 %v2944
    %4039 = vmatpush1.bf16.msra.mxu0 %v2943
    %4040 = vmatprep.subr.bf16.mxu0 0
    %4041 = vmatpush1.bf16.msra.mxu0 0
    %4042 = vmatprep.subr.bf16.mxu0 0
    %4043 = vmatpush1.bf16.msra.mxu0 0
    %4044 = vmatprep.subr.bf16.mxu0 0
    %4045 = vmatpush1.bf16.msra.mxu0 0
    %4046 = vmatprep.subr.bf16.mxu0 0
    %4047 = vmatpush1.bf16.msra.mxu0 0
    %4048 = vmatprep.subr.bf16.mxu0 0
    %4049 = vmatpush1.bf16.msra.mxu0 0
    %4050 = vmatprep.subr.bf16.mxu0 0
    %4051 = vmatpush1.bf16.msra.mxu0 0
    %4052 = vmatprep.subr.bf16.mxu0 0
    %4053 = vmatpush1.bf16.msra.mxu0 0
    %4054 = vmatprep.subr.bf16.mxu0 0
    %4055 = vmatpush1.bf16.msra.mxu0 0
    %4056 = vmatprep.mubr.bf16.mxu0 0
    %4057 = vmatmul.mubr.bf16.gmra.mrb[0].mxu0 %v848
    %v4058 = vpop.f32.mrb[0].mxu0
    %v4059 = vadd.f32 %v4018, %v4058
    %v4060 = vpop.f32.mrb[0].mxu0
    %v4061 = vadd.f32 %v4020, %v4060
    %v4062 = vpop.f32.mrb[0].mxu0
    %v4063 = vpop.f32.mrb[0].mxu0
    %4064 = vdwg.mxu0
    %4065 = vmatprep.subr.bf16.mxu0 0
    %4066 = vmatpush1.bf16.msra.mxu0 %v2448
    %4067 = vmatprep.subr.bf16.mxu0 0
    %4068 = vmatpush1.bf16.msra.mxu0 %v2455
    %4069 = vmatprep.subr.bf16.mxu0 0
    %4070 = vmatpush1.bf16.msra.mxu0 %v2462
    %4071 = vmatprep.subr.bf16.mxu0 0
    %4072 = vmatpush1.bf16.msra.mxu0 %v2469
    %4073 = vmatprep.subr.bf16.mxu0 0
    %4074 = vmatpush1.bf16.msra.mxu0 %v2476
    %4075 = vmatprep.subr.bf16.mxu0 0
    %4076 = vmatpush1.bf16.msra.mxu0 %v2483
    %4077 = vmatprep.subr.bf16.mxu0 0
    %4078 = vmatpush1.bf16.msra.mxu0 %v2490
    %4079 = vmatprep.subr.bf16.mxu0 0
    %4080 = vmatpush1.bf16.msra.mxu0 %v2497
    %4081 = vmatprep.subr.bf16.mxu0 0
    %4082 = vmatpush1.bf16.msra.mxu0 %v2504
    %4083 = vmatprep.subr.bf16.mxu0 0
    %4084 = vmatpush1.bf16.msra.mxu0 %v2511
    %4085 = vmatprep.subr.bf16.mxu0 0
    %4086 = vmatpush1.bf16.msra.mxu0 %v2518
    %4087 = vmatprep.subr.bf16.mxu0 0
    %4088 = vmatpush1.bf16.msra.mxu0 %v2525
    %4089 = vmatprep.subr.bf16.mxu0 0
    %4090 = vmatpush1.bf16.msra.mxu0 %v2532
    %4091 = vmatprep.subr.bf16.mxu0 0
    %4092 = vmatpush1.bf16.msra.mxu0 %v2539
    %4093 = vmatprep.subr.bf16.mxu0 0
    %4094 = vmatpush1.bf16.msra.mxu0 %v2546
    %4095 = vmatprep.subr.bf16.mxu0 0
    %4096 = vmatpush1.bf16.msra.mxu0 %v2553
    %4097 = vmatprep.mubr.bf16.mxu0 %v841
    %4098 = vmatmul.mubr.bf16.gmra.mrb[0].mxu0 %v840
    %v4099 = vpop.f32.mrb[0].mxu0
    %v4100 = vadd.f32 %v818, %v4099
    %v4101 = vpop.f32.mrb[0].mxu0
    %v4102 = vpop.f32.mrb[0].mxu0
    %v4103 = vpop.f32.mrb[0].mxu0
    %4104 = vdwg.mxu0
    %4105 = vmatprep.subr.bf16.mxu0 0
    %4106 = vmatpush1.bf16.msra.mxu0 %v2560
    %4107 = vmatprep.subr.bf16.mxu0 0
    %4108 = vmatpush1.bf16.msra.mxu0 %v2567
    %4109 = vmatprep.subr.bf16.mxu0 0
    %4110 = vmatpush1.bf16.msra.mxu0 %v2574
    %4111 = vmatprep.subr.bf16.mxu0 0
    %4112 = vmatpush1.bf16.msra.mxu0 %v2581
    %4113 = vmatprep.subr.bf16.mxu0 0
    %4114 = vmatpush1.bf16.msra.mxu0 %v2588
    %4115 = vmatprep.subr.bf16.mxu0 0
    %4116 = vmatpush1.bf16.msra.mxu0 %v2595
    %4117 = vmatprep.subr.bf16.mxu0 0
    %4118 = vmatpush1.bf16.msra.mxu0 %v2602
    %4119 = vmatprep.subr.bf16.mxu0 0
    %4120 = vmatpush1.bf16.msra.mxu0 %v2609
    %4121 = vmatprep.subr.bf16.mxu0 0
    %4122 = vmatpush1.bf16.msra.mxu0 %v2616
    %4123 = vmatprep.subr.bf16.mxu0 0
    %4124 = vmatpush1.bf16.msra.mxu0 %v2623
    %4125 = vmatprep.subr.bf16.mxu0 0
    %4126 = vmatpush1.bf16.msra.mxu0 %v2630
    %4127 = vmatprep.subr.bf16.mxu0 0
    %4128 = vmatpush1.bf16.msra.mxu0 %v2637
    %4129 = vmatprep.subr.bf16.mxu0 0
    %4130 = vmatpush1.bf16.msra.mxu0 %v2644
    %4131 = vmatprep.subr.bf16.mxu0 0
    %4132 = vmatpush1.bf16.msra.mxu0 %v2651
    %4133 = vmatprep.subr.bf16.mxu0 0
    %4134 = vmatpush1.bf16.msra.mxu0 %v2658
    %4135 = vmatprep.subr.bf16.mxu0 0
    %4136 = vmatpush1.bf16.msra.mxu0 %v2665
    %4137 = vmatprep.mubr.bf16.mxu0 %v843
    %4138 = vmatmul.mubr.bf16.gmra.mrb[0].mxu0 %v842
    %v4139 = vpop.f32.mrb[0].mxu0
    %v4140 = vadd.f32 %v4100, %v4139
    %v4141 = vpop.f32.mrb[0].mxu0
    %v4142 = vpop.f32.mrb[0].mxu0
    %v4143 = vpop.f32.mrb[0].mxu0
    %4144 = vdwg.mxu0
    %4145 = vmatprep.subr.bf16.mxu0 0
    %4146 = vmatpush1.bf16.msra.mxu0 %v2672
    %4147 = vmatprep.subr.bf16.mxu0 0
    %4148 = vmatpush1.bf16.msra.mxu0 %v2679
    %4149 = vmatprep.subr.bf16.mxu0 0
    %4150 = vmatpush1.bf16.msra.mxu0 %v2686
    %4151 = vmatprep.subr.bf16.mxu0 0
    %4152 = vmatpush1.bf16.msra.mxu0 %v2693
    %4153 = vmatprep.subr.bf16.mxu0 0
    %4154 = vmatpush1.bf16.msra.mxu0 %v2700
    %4155 = vmatprep.subr.bf16.mxu0 0
    %4156 = vmatpush1.bf16.msra.mxu0 %v2707
    %4157 = vmatprep.subr.bf16.mxu0 0
    %4158 = vmatpush1.bf16.msra.mxu0 %v2714
    %4159 = vmatprep.subr.bf16.mxu0 0
    %4160 = vmatpush1.bf16.msra.mxu0 %v2721
    %4161 = vmatprep.subr.bf16.mxu0 0
    %4162 = vmatpush1.bf16.msra.mxu0 %v2728
    %4163 = vmatprep.subr.bf16.mxu0 0
    %4164 = vmatpush1.bf16.msra.mxu0 %v2735
    %4165 = vmatprep.subr.bf16.mxu0 0
    %4166 = vmatpush1.bf16.msra.mxu0 %v2742
    %4167 = vmatprep.subr.bf16.mxu0 0
    %4168 = vmatpush1.bf16.msra.mxu0 %v2749
    %4169 = vmatprep.subr.bf16.mxu0 0
    %4170 = vmatpush1.bf16.msra.mxu0 %v2756
    %4171 = vmatprep.subr.bf16.mxu0 0
    %4172 = vmatpush1.bf16.msra.mxu0 %v2763
    %4173 = vmatprep.subr.bf16.mxu0 0
    %4174 = vmatpush1.bf16.msra.mxu0 %v2770
    %4175 = vmatprep.subr.bf16.mxu0 0
    %4176 = vmatpush1.bf16.msra.mxu0 %v2777
    %4177 = vmatprep.mubr.bf16.mxu0 %v845
    %4178 = vmatmul.mubr.bf16.gmra.mrb[0].mxu0 %v844
    %v4179 = vpop.f32.mrb[0].mxu0
    %v4180 = vadd.f32 %v4140, %v4179
    %v4181 = vpop.f32.mrb[0].mxu0
    %v4182 = vpop.f32.mrb[0].mxu0
    %v4183 = vpop.f32.mrb[0].mxu0
    %4184 = vdwg.mxu0
    %4185 = vmatprep.subr.bf16.mxu0 0
    %4186 = vmatpush1.bf16.msra.mxu0 %v2784
    %4187 = vmatprep.subr.bf16.mxu0 0
    %4188 = vmatpush1.bf16.msra.mxu0 %v2791
    %4189 = vmatprep.subr.bf16.mxu0 0
    %4190 = vmatpush1.bf16.msra.mxu0 %v2798
    %4191 = vmatprep.subr.bf16.mxu0 0
    %4192 = vmatpush1.bf16.msra.mxu0 %v2805
    %4193 = vmatprep.subr.bf16.mxu0 0
    %4194 = vmatpush1.bf16.msra.mxu0 %v2812
    %4195 = vmatprep.subr.bf16.mxu0 0
    %4196 = vmatpush1.bf16.msra.mxu0 %v2819
    %4197 = vmatprep.subr.bf16.mxu0 0
    %4198 = vmatpush1.bf16.msra.mxu0 %v2826
    %4199 = vmatprep.subr.bf16.mxu0 0
    %4200 = vmatpush1.bf16.msra.mxu0 %v2833
    %4201 = vmatprep.subr.bf16.mxu0 0
    %4202 = vmatpush1.bf16.msra.mxu0 %v2840
    %4203 = vmatprep.subr.bf16.mxu0 0
    %4204 = vmatpush1.bf16.msra.mxu0 %v2847
    %4205 = vmatprep.subr.bf16.mxu0 0
    %4206 = vmatpush1.bf16.msra.mxu0 %v2854
    %4207 = vmatprep.subr.bf16.mxu0 0
    %4208 = vmatpush1.bf16.msra.mxu0 %v2861
    %4209 = vmatprep.subr.bf16.mxu0 0
    %4210 = vmatpush1.bf16.msra.mxu0 %v2868
    %4211 = vmatprep.subr.bf16.mxu0 0
    %4212 = vmatpush1.bf16.msra.mxu0 %v2875
    %4213 = vmatprep.subr.bf16.mxu0 0
    %4214 = vmatpush1.bf16.msra.mxu0 %v2882
    %4215 = vmatprep.subr.bf16.mxu0 0
    %4216 = vmatpush1.bf16.msra.mxu0 %v2889
    %4217 = vmatprep.mubr.bf16.mxu0 %v847
    %4218 = vmatmul.mubr.bf16.gmra.mrb[0].mxu0 %v846
    %v4219 = vpop.f32.mrb[0].mxu0
    %v4220 = vadd.f32 %v4180, %v4219
    %v4221 = vpop.f32.mrb[0].mxu0
    %v4222 = vpop.f32.mrb[0].mxu0
    %v4223 = vpop.f32.mrb[0].mxu0
    %4224 = vdwg.mxu0
    %4225 = vmatprep.subr.bf16.mxu0 0
    %4226 = vmatpush1.bf16.msra.mxu0 %v2896
    %4227 = vmatprep.subr.bf16.mxu0 0
    %4228 = vmatpush1.bf16.msra.mxu0 %v2903
    %4229 = vmatprep.subr.bf16.mxu0 0
    %4230 = vmatpush1.bf16.msra.mxu0 %v2910
    %4231 = vmatprep.subr.bf16.mxu0 0
    %4232 = vmatpush1.bf16.msra.mxu0 %v2917
    %4233 = vmatprep.subr.bf16.mxu0 0
    %4234 = vmatpush1.bf16.msra.mxu0 %v2924
    %4235 = vmatprep.subr.bf16.mxu0 0
    %4236 = vmatpush1.bf16.msra.mxu0 %v2931
    %4237 = vmatprep.subr.bf16.mxu0 0
    %4238 = vmatpush1.bf16.msra.mxu0 %v2938
    %4239 = vmatprep.subr.bf16.mxu0 0
    %4240 = vmatpush1.bf16.msra.mxu0 %v2945
    %4241 = vmatprep.subr.bf16.mxu0 0
    %4242 = vmatpush1.bf16.msra.mxu0 0
    %4243 = vmatprep.subr.bf16.mxu0 0
    %4244 = vmatpush1.bf16.msra.mxu0 0
    %4245 = vmatprep.subr.bf16.mxu0 0
    %4246 = vmatpush1.bf16.msra.mxu0 0
    %4247 = vmatprep.subr.bf16.mxu0 0
    %4248 = vmatpush1.bf16.msra.mxu0 0
    %4249 = vmatprep.subr.bf16.mxu0 0
    %4250 = vmatpush1.bf16.msra.mxu0 0
    %4251 = vmatprep.subr.bf16.mxu0 0
    %4252 = vmatpush1.bf16.msra.mxu0 0
    %4253 = vmatprep.subr.bf16.mxu0 0
    %4254 = vmatpush1.bf16.msra.mxu0 0
    %4255 = vmatprep.subr.bf16.mxu0 0
    %4256 = vmatpush1.bf16.msra.mxu0 0
    %4257 = vmatprep.mubr.bf16.mxu0 0
    %4258 = vmatmul.mubr.bf16.gmra.mrb[0].mxu0 %v848
    %v4259 = vpop.f32.mrb[0].mxu0
    %v4260 = vadd.f32 %v4220, %v4259
    %v4261 = vpop.f32.mrb[0].mxu0
    %v4262 = vpop.f32.mrb[0].mxu0
    %v4263 = vpop.f32.mrb[0].mxu0
    %4264 = vdwg.mxu0
    %v4265 = vmax.f32 %v3649, 0.0
    %v4266 = vmax.f32 %v3651, 0.0
    %v4267 = vmax.f32 %v3854, 0.0
    %v4268 = vmax.f32 %v3856, 0.0
    %v4269 = vmax.f32 %v4059, 0.0
    %v4270 = vmax.f32 %v4061, 0.0
    %v4271 = vmax.f32 %v4260, 0.0
    %v4272 = vpack.c.bf16 %v4265, %v4265
    %v4273 = vpack.c.bf16 %v4266, %v4266
    %v4274 = vpack.c.bf16 %v4267, %v4267
    %v4275 = vpack.c.bf16 %v4268, %v4268
    %v4276 = vpack.c.bf16 %v4269, %v4269
    %v4277 = vpack.c.bf16 %v4270, %v4270
    %v4278 = vpack.c.bf16 %v4271, %v4271
    %v4279 = vld [vmem:[#allocation8] sm:$0xff]
    %v4280 = vld [vmem:[#allocation8 + $0x8] sm:$0xff]
    %v4281 = vld [vmem:[#allocation8 + $0x10] sm:$0xff]
    %v4282 = vld [vmem:[#allocation8 + $0x18] sm:$0xff]
    %v4283 = vld [vmem:[#allocation8 + $0x20] sm:$0xff]
    %v4284 = vld [vmem:[#allocation8 + $0x28] sm:$0xff]
    %v4285 = vld [vmem:[#allocation8 + $0x30] sm:$0xff]
    %v4286 = vld [vmem:[#allocation8 + $0x38] sm:$0xff]
    %v4287 = vld [vmem:[#allocation8 + $0x40] sm:$0xff]
    %v4288 = vld [vmem:[#allocation8 + $0x48] sm:$0xff]
    %v4289 = vld [vmem:[#allocation8 + $0x50] sm:$0xff]
    %v4290 = vld [vmem:[#allocation8 + $0x58] sm:$0xff]
    %v4291 = vld [vmem:[#allocation8 + $0x60] sm:$0xff]
    %v4292 = vld [vmem:[#allocation8 + $0x68] sm:$0xff]
    %v4293 = vld [vmem:[#allocation8 + $0x70] sm:$0xff]
    %v4294 = vld [vmem:[#allocation8 + $0x78] sm:$0xff]
    %v4295 = vld [vmem:[#allocation8 + $0x80] sm:$0xff]
    %v4296 = vld [vmem:[#allocation8 + $0x88] sm:$0xff]
    %v4297 = vld [vmem:[#allocation8 + $0x90] sm:$0xff]
    %v4298 = vld [vmem:[#allocation8 + $0x98] sm:$0xff]
    %v4299 = vld [vmem:[#allocation8 + $0xa0] sm:$0xff]
    %v4300 = vld [vmem:[#allocation8 + $0xa8] sm:$0xff]
    %v4301 = vld [vmem:[#allocation8 + $0xb0] sm:$0xff]
    %v4302 = vld [vmem:[#allocation8 + $0xb8] sm:$0xff]
    %v4303 = vld [vmem:[#allocation8 + $0xc0] sm:$0xff]
    %v4304 = vld [vmem:[#allocation8 + $0xc8] sm:$0xff]
    %v4305 = vld [vmem:[#allocation8 + $0xd0] sm:$0xff]
    %v4306 = vld [vmem:[#allocation8 + $0xd8] sm:$0xff]
    %v4307 = vld [vmem:[#allocation8 + $0xe0] sm:$0xff]
    %v4308 = vld [vmem:[#allocation8 + $0xe8] sm:$0xff]
    %v4309 = vld [vmem:[#allocation8 + $0xf0] sm:$0xff]
    %v4310 = vld [vmem:[#allocation8 + $0xf8] sm:$0xff]
    %v4311 = vld [vmem:[#allocation8 + $0x100] sm:$0xff]
    %v4312 = vld [vmem:[#allocation8 + $0x108] sm:$0xff]
    %v4313 = vld [vmem:[#allocation8 + $0x110] sm:$0xff]
    %v4314 = vld [vmem:[#allocation8 + $0x118] sm:$0xff]
    %v4315 = vld [vmem:[#allocation8 + $0x120] sm:$0xff]
    %v4316 = vld [vmem:[#allocation8 + $0x128] sm:$0xff]
    %v4317 = vld [vmem:[#allocation8 + $0x130] sm:$0xff]
    %v4318 = vld [vmem:[#allocation8 + $0x138] sm:$0xff]
    %v4319 = vld [vmem:[#allocation8 + $0x140] sm:$0xff]
    %v4320 = vld [vmem:[#allocation8 + $0x148] sm:$0xff]
    %v4321 = vld [vmem:[#allocation8 + $0x150] sm:$0xff]
    %v4322 = vld [vmem:[#allocation8 + $0x158] sm:$0xff]
    %v4323 = vld [vmem:[#allocation8 + $0x160] sm:$0xff]
    %v4324 = vld [vmem:[#allocation8 + $0x168] sm:$0xff]
    %v4325 = vld [vmem:[#allocation8 + $0x170] sm:$0xff]
    %v4326 = vld [vmem:[#allocation8 + $0x178] sm:$0xff]
    %v4327 = vld [vmem:[#allocation8 + $0x180] sm:$0xff]
    %v4328 = vld [vmem:[#allocation8 + $0x188] sm:$0xff]
    %v4329 = vld [vmem:[#allocation8 + $0x190] sm:$0xff]
    %v4330 = vld [vmem:[#allocation8 + $0x198] sm:$0xff]
    %v4331 = vld [vmem:[#allocation8 + $0x1a0] sm:$0xff]
    %v4332 = vld [vmem:[#allocation8 + $0x1a8] sm:$0xff]
    %v4333 = vld [vmem:[#allocation8 + $0x1b0] sm:$0xff]
    %v4334 = vld [vmem:[#allocation8 + $0x1b8] sm:$0xff]
    %v4335 = vld [vmem:[#allocation8 + $0x1c0] sm:$0xff]
    %v4336 = vld [vmem:[#allocation8 + $0x1c8] sm:$0xff]
    %v4337 = vld [vmem:[#allocation8 + $0x1d0] sm:$0xff]
    %v4338 = vld [vmem:[#allocation8 + $0x1d8] sm:$0xff]
    %v4339 = vld [vmem:[#allocation8 + $0x1e0] sm:$0xff]
    %v4340 = vld [vmem:[#allocation8 + $0x1e8] sm:$0xff]
    %v4341 = vld [vmem:[#allocation8 + $0x1f0] sm:$0xff]
    %v4342 = vld [vmem:[#allocation8 + $0x1f8] sm:$0xff]
    %v4343 = vld [vmem:[#allocation8 + $0x200] sm:$0xff]
    %v4344 = vld [vmem:[#allocation8 + $0x208] sm:$0xff]
    %v4345 = vld [vmem:[#allocation8 + $0x210] sm:$0xff]
    %v4346 = vld [vmem:[#allocation8 + $0x218] sm:$0xff]
    %v4347 = vld [vmem:[#allocation8 + $0x220] sm:$0xff]
    %v4348 = vld [vmem:[#allocation8 + $0x228] sm:$0xff]
    %v4349 = vld [vmem:[#allocation8 + $0x230] sm:$0xff]
    %v4350 = vld [vmem:[#allocation8 + $0x238] sm:$0xff]
    %v4351 = vld [vmem:[#allocation8 + $0x240] sm:$0xff]
    %v4352 = vld [vmem:[#allocation8 + $0x248] sm:$0xff]
    %v4353 = vld [vmem:[#allocation8 + $0x250] sm:$0xff]
    %v4354 = vld [vmem:[#allocation8 + $0x258] sm:$0xff]
    %v4355 = vld [vmem:[#allocation8 + $0x260] sm:$0xff]
    %v4356 = vld [vmem:[#allocation8 + $0x268] sm:$0xff]
    %v4357 = vld [vmem:[#allocation8 + $0x270] sm:$0xff]
    %v4358 = vld [vmem:[#allocation8 + $0x278] sm:$0xff]
    %v4359 = vld [vmem:[#allocation8 + $0x280] sm:$0xff]
    %v4360 = vld [vmem:[#allocation8 + $0x288] sm:$0xff]
    %v4361 = vld [vmem:[#allocation8 + $0x290] sm:$0xff]
    %v4362 = vld [vmem:[#allocation8 + $0x298] sm:$0xff]
    %v4363 = vld [vmem:[#allocation8 + $0x2a0] sm:$0xff]
    %v4364 = vld [vmem:[#allocation8 + $0x2a8] sm:$0xff]
    %v4365 = vld [vmem:[#allocation8 + $0x2b0] sm:$0xff]
    %v4366 = vld [vmem:[#allocation8 + $0x2b8] sm:$0xff]
    %v4367 = vld [vmem:[#allocation8 + $0x2c0] sm:$0xff]
    %v4368 = vld [vmem:[#allocation8 + $0x2c8] sm:$0xff]
    %v4369 = vld [vmem:[#allocation8 + $0x2d0] sm:$0xff]
    %v4370 = vld [vmem:[#allocation8 + $0x2d8] sm:$0xff]
    %v4371 = vld [vmem:[#allocation8 + $0x2e0] sm:$0xff]
    %v4372 = vld [vmem:[#allocation8 + $0x2e8] sm:$0xff]
    %v4373 = vld [vmem:[#allocation8 + $0x2f0] sm:$0xff]
    %v4374 = vld [vmem:[#allocation8 + $0x2f8] sm:$0xff]
    %v4375 = vld [vmem:[#allocation8 + $0x300] sm:$0xff]
    %v4376 = vld [vmem:[#allocation8 + $0x308] sm:$0xff]
    %v4377 = vld [vmem:[#allocation8 + $0x310] sm:$0xff]
    %v4378 = vld [vmem:[#allocation8 + $0x318] sm:$0xff]
    %v4379 = vld [vmem:[#allocation8 + $0x320] sm:$0xff]
    %v4380 = vld [vmem:[#allocation8 + $0x328] sm:$0xff]
    %v4381 = vld [vmem:[#allocation8 + $0x330] sm:$0xff]
    %v4382 = vld [vmem:[#allocation8 + $0x338] sm:$0xff]
    %v4383 = vld [vmem:[#allocation8 + $0x340] sm:$0xff]
    %v4384 = vld [vmem:[#allocation8 + $0x348] sm:$0xff]
    %v4385 = vld [vmem:[#allocation8 + $0x350] sm:$0xff]
    %v4386 = vld [vmem:[#allocation8 + $0x358] sm:$0xff]
    %v4387 = vld [vmem:[#allocation8 + $0x360] sm:$0xff]
    %v4388 = vld [vmem:[#allocation8 + $0x368] sm:$0xff]
    %v4389 = vld [vmem:[#allocation8 + $0x370] sm:$0xff]
    %v4390 = vld [vmem:[#allocation8 + $0x378] sm:$0xff]
    %v4391 = vld [vmem:[#allocation8 + $0x380] sm:$0xff]
    %v4392 = vld [vmem:[#allocation8 + $0x388] sm:$0xff]
    %v4393 = vld [vmem:[#allocation8 + $0x390] sm:$0xff]
    %v4394 = vld [vmem:[#allocation8 + $0x398] sm:$0xff]
    %v4395 = vld [vmem:[#allocation8 + $0x3a0] sm:$0xff]
    %v4396 = vld [vmem:[#allocation8 + $0x3a8] sm:$0xff]
    %v4397 = vld [vmem:[#allocation8 + $0x3b0] sm:$0xff]
    %v4398 = vld [vmem:[#allocation8 + $0x3b8] sm:$0xff]
    %v4399 = vld [vmem:[#allocation8 + $0x3c0] sm:$0xff]
    %v4400 = vld [vmem:[#allocation8 + $0x3c8] sm:$0xff]
    %v4401 = vld [vmem:[#allocation8 + $0x3d0] sm:$0xff]
    %v4402 = vld [vmem:[#allocation8 + $0x3d8] sm:$0xff]
    %v4403 = vld [vmem:[#allocation8 + $0x3e0] sm:$0xff]
    %v4404 = vld [vmem:[#allocation8 + $0x3e8] sm:$0xff]
    %v4405 = vld [vmem:[#allocation8 + $0x3f0] sm:$0xff]
    %v4406 = vld [vmem:[#allocation8 + $0x3f8] sm:$0xff]
    %v4407 = vld [vmem:[#allocation8 + $0x400] sm:$0xff]
    %v4408 = vld [vmem:[#allocation8 + $0x408] sm:$0xff]
    %v4409 = vld [vmem:[#allocation8 + $0x410] sm:$0xff]
    %v4410 = vld [vmem:[#allocation8 + $0x418] sm:$0xff]
    %v4411 = vld [vmem:[#allocation8 + $0x420] sm:$0xff]
    %v4412 = vld [vmem:[#allocation8 + $0x428] sm:$0xff]
    %v4413 = vld [vmem:[#allocation8 + $0x430] sm:$0xff]
    %v4414 = vld [vmem:[#allocation8 + $0x438] sm:$0xff]
    %v4415 = vld [vmem:[#allocation8 + $0x440] sm:$0xff]
    %v4416 = vld [vmem:[#allocation8 + $0x448] sm:$0xff]
    %v4417 = vld [vmem:[#allocation8 + $0x450] sm:$0xff]
    %v4418 = vld [vmem:[#allocation8 + $0x458] sm:$0xff]
    %v4419 = vld [vmem:[#allocation8 + $0x460] sm:$0xff]
    %v4420 = vld [vmem:[#allocation8 + $0x468] sm:$0xff]
    %v4421 = vld [vmem:[#allocation8 + $0x470] sm:$0xff]
    %v4422 = vld [vmem:[#allocation8 + $0x478] sm:$0xff]
    %v4423 = vld [vmem:[#allocation8 + $0x480] sm:$0xff]
    %v4424 = vld [vmem:[#allocation8 + $0x488] sm:$0xff]
    %v4425 = vld [vmem:[#allocation8 + $0x490] sm:$0xff]
    %v4426 = vld [vmem:[#allocation8 + $0x498] sm:$0xff]
    %v4427 = vld [vmem:[#allocation8 + $0x4a0] sm:$0xff]
    %v4428 = vld [vmem:[#allocation8 + $0x4a8] sm:$0xff]
    %v4429 = vld [vmem:[#allocation8 + $0x4b0] sm:$0xff]
    %v4430 = vld [vmem:[#allocation8 + $0x4b8] sm:$0xff]
    %v4431 = vld [vmem:[#allocation8 + $0x4c0] sm:$0xff]
    %v4432 = vld [vmem:[#allocation8 + $0x4c8] sm:$0xff]
    %v4433 = vld [vmem:[#allocation8 + $0x4d0] sm:$0xff]
    %v4434 = vld [vmem:[#allocation8 + $0x4d8] sm:$0xff]
    %v4435 = vld [vmem:[#allocation8 + $0x4e0] sm:$0xff]
    %v4436 = vld [vmem:[#allocation8 + $0x4e8] sm:$0xff]
    %v4437 = vld [vmem:[#allocation8 + $0x4f0] sm:$0xff]
    %v4438 = vld [vmem:[#allocation8 + $0x4f8] sm:$0xff]
    %v4439 = vld [vmem:[#allocation8 + $0x500] sm:$0xff]
    %v4440 = vld [vmem:[#allocation8 + $0x508] sm:$0xff]
    %v4441 = vld [vmem:[#allocation8 + $0x510] sm:$0xff]
    %v4442 = vld [vmem:[#allocation8 + $0x518] sm:$0xff]
    %v4443 = vld [vmem:[#allocation8 + $0x520] sm:$0xff]
    %v4444 = vld [vmem:[#allocation8 + $0x528] sm:$0xff]
    %v4445 = vld [vmem:[#allocation8 + $0x530] sm:$0xff]
    %v4446 = vld [vmem:[#allocation8 + $0x538] sm:$0xff]
    %v4447 = vld [vmem:[#allocation8 + $0x540] sm:$0xff]
    %v4448 = vld [vmem:[#allocation8 + $0x548] sm:$0xff]
    %v4449 = vld [vmem:[#allocation8 + $0x550] sm:$0xff]
    %v4450 = vld [vmem:[#allocation8 + $0x558] sm:$0xff]
    %v4451 = vld [vmem:[#allocation8 + $0x560] sm:$0xff]
    %v4452 = vld [vmem:[#allocation8 + $0x568] sm:$0xff]
    %v4453 = vld [vmem:[#allocation8 + $0x570] sm:$0xff]
    %v4454 = vld [vmem:[#allocation8 + $0x578] sm:$0xff]
    %v4455 = vld [vmem:[#allocation8 + $0x580] sm:$0xff]
    %v4456 = vld [vmem:[#allocation8 + $0x588] sm:$0xff]
    %v4457 = vld [vmem:[#allocation8 + $0x590] sm:$0xff]
    %v4458 = vld [vmem:[#allocation8 + $0x598] sm:$0xff]
    %v4459 = vld [vmem:[#allocation8 + $0x5a0] sm:$0xff]
    %v4460 = vld [vmem:[#allocation8 + $0x5a8] sm:$0xff]
    %v4461 = vld [vmem:[#allocation8 + $0x5b0] sm:$0xff]
    %v4462 = vld [vmem:[#allocation8 + $0x5b8] sm:$0xff]
    %v4463 = vld [vmem:[#allocation8 + $0x5c0] sm:$0xff]
    %v4464 = vld [vmem:[#allocation8 + $0x5c8] sm:$0xff]
    %v4465 = vld [vmem:[#allocation8 + $0x5d0] sm:$0xff]
    %v4466 = vld [vmem:[#allocation8 + $0x5d8] sm:$0xff]
    %v4467 = vld [vmem:[#allocation8 + $0x5e0] sm:$0xff]
    %v4468 = vld [vmem:[#allocation8 + $0x5e8] sm:$0xff]
    %v4469 = vld [vmem:[#allocation8 + $0x5f0] sm:$0xff]
    %v4470 = vld [vmem:[#allocation8 + $0x5f8] sm:$0xff]
    %v4471 = vld [vmem:[#allocation8 + $0x600] sm:$0xff]
    %v4472 = vld [vmem:[#allocation8 + $0x608] sm:$0xff]
    %v4473 = vld [vmem:[#allocation8 + $0x610] sm:$0xff]
    %v4474 = vld [vmem:[#allocation8 + $0x618] sm:$0xff]
    %v4475 = vld [vmem:[#allocation8 + $0x620] sm:$0xff]
    %v4476 = vld [vmem:[#allocation8 + $0x628] sm:$0xff]
    %v4477 = vld [vmem:[#allocation8 + $0x630] sm:$0xff]
    %v4478 = vld [vmem:[#allocation8 + $0x638] sm:$0xff]
    %v4479 = vld [vmem:[#allocation8 + $0x640] sm:$0xff]
    %v4480 = vld [vmem:[#allocation8 + $0x648] sm:$0xff]
    %v4481 = vld [vmem:[#allocation8 + $0x650] sm:$0xff]
    %v4482 = vld [vmem:[#allocation8 + $0x658] sm:$0xff]
    %v4483 = vld [vmem:[#allocation8 + $0x660] sm:$0xff]
    %v4484 = vld [vmem:[#allocation8 + $0x668] sm:$0xff]
    %v4485 = vld [vmem:[#allocation8 + $0x670] sm:$0xff]
    %v4486 = vld [vmem:[#allocation8 + $0x678] sm:$0xff]
    %v4487 = vld [vmem:[#allocation8 + $0x680] sm:$0xff]
    %v4488 = vld [vmem:[#allocation8 + $0x688] sm:$0xff]
    %v4489 = vld [vmem:[#allocation8 + $0x690] sm:$0xff]
    %v4490 = vld [vmem:[#allocation8 + $0x698] sm:$0xff]
    %v4491 = vld [vmem:[#allocation8 + $0x6a0] sm:$0xff]
    %v4492 = vld [vmem:[#allocation8 + $0x6a8] sm:$0xff]
    %v4493 = vld [vmem:[#allocation8 + $0x6b0] sm:$0xff]
    %v4494 = vld [vmem:[#allocation8 + $0x6b8] sm:$0xff]
    %v4495 = vld [vmem:[#allocation8 + $0x6c0] sm:$0xff]
    %v4496 = vld [vmem:[#allocation8 + $0x6c8] sm:$0xff]
    %v4497 = vld [vmem:[#allocation8 + $0x6d0] sm:$0xff]
    %v4498 = vld [vmem:[#allocation8 + $0x6d8] sm:$0xff]
    %v4499 = vld [vmem:[#allocation8 + $0x6e0] sm:$0xff]
    %v4500 = vld [vmem:[#allocation8 + $0x6e8] sm:$0xff]
    %v4501 = vld [vmem:[#allocation8 + $0x6f0] sm:$0xff]
    %v4502 = vld [vmem:[#allocation8 + $0x6f8] sm:$0xff]
    %v4503 = vld [vmem:[#allocation10] sm:$0xf]
    %v4505 = vlaneseq
    %v4506 = vshrl.u32 %v4505, 7
    %v4507 = vsub.s32 0, %v4506
    %v4508 = vrot.slane %v4503, %v4507
    %v4509 = vlaneseq
    %v4510 = vshrl.u32 %v4509, 7
    %v4511 = vsub.s32 1, %v4510
    %v4512 = vrot.slane %v4503, %v4511
    %v4513 = vlaneseq
    %v4514 = vshrl.u32 %v4513, 7
    %v4515 = vsub.s32 2, %v4514
    %v4516 = vrot.slane %v4503, %v4515
    %v4517 = vlaneseq
    %v4518 = vshrl.u32 %v4517, 7
    %v4519 = vsub.s32 3, %v4518
    %v4520 = vrot.slane %v4503, %v4519
    %v4749 = vunpack.c.l.b16 %v4279
    %v4750 = vunpack.c.h.b16 %v4279
    %v4751 = vunpack.c.l.b16 %v4280
    %v4752 = vunpack.c.h.b16 %v4280
    %v4753 = vunpack.c.l.b16 %v4281
    %v4754 = vunpack.c.h.b16 %v4281
    %v4755 = vunpack.c.l.b16 %v4282
    %v4756 = vunpack.c.h.b16 %v4282
    %v4757 = vunpack.c.l.b16 %v4283
    %v4758 = vunpack.c.h.b16 %v4283
    %v4759 = vunpack.c.l.b16 %v4284
    %v4760 = vunpack.c.h.b16 %v4284
    %v4761 = vunpack.c.l.b16 %v4285
    %v4762 = vunpack.c.h.b16 %v4285
    %v4763 = vunpack.c.l.b16 %v4286
    %v4764 = vunpack.c.h.b16 %v4286
    %v4765 = vunpack.c.l.b16 %v4287
    %v4766 = vunpack.c.h.b16 %v4287
    %v4767 = vunpack.c.l.b16 %v4288
    %v4768 = vunpack.c.h.b16 %v4288
    %v4769 = vunpack.c.l.b16 %v4289
    %v4770 = vunpack.c.h.b16 %v4289
    %v4771 = vunpack.c.l.b16 %v4290
    %v4772 = vunpack.c.h.b16 %v4290
    %v4773 = vunpack.c.l.b16 %v4291
    %v4774 = vunpack.c.h.b16 %v4291
    %v4775 = vunpack.c.l.b16 %v4292
    %v4776 = vunpack.c.h.b16 %v4292
    %v4777 = vunpack.c.l.b16 %v4293
    %v4778 = vunpack.c.h.b16 %v4293
    %v4779 = vunpack.c.l.b16 %v4294
    %v4780 = vunpack.c.h.b16 %v4294
    %v4781 = vunpack.c.l.b16 %v4295
    %v4782 = vunpack.c.h.b16 %v4295
    %v4783 = vunpack.c.l.b16 %v4296
    %v4784 = vunpack.c.h.b16 %v4296
    %v4785 = vunpack.c.l.b16 %v4297
    %v4786 = vunpack.c.h.b16 %v4297
    %v4787 = vunpack.c.l.b16 %v4298
    %v4788 = vunpack.c.h.b16 %v4298
    %v4789 = vunpack.c.l.b16 %v4299
    %v4790 = vunpack.c.h.b16 %v4299
    %v4791 = vunpack.c.l.b16 %v4300
    %v4792 = vunpack.c.h.b16 %v4300
    %v4793 = vunpack.c.l.b16 %v4301
    %v4794 = vunpack.c.h.b16 %v4301
    %v4795 = vunpack.c.l.b16 %v4302
    %v4796 = vunpack.c.h.b16 %v4302
    %v4797 = vunpack.c.l.b16 %v4303
    %v4798 = vunpack.c.h.b16 %v4303
    %v4799 = vunpack.c.l.b16 %v4304
    %v4800 = vunpack.c.h.b16 %v4304
    %v4801 = vunpack.c.l.b16 %v4305
    %v4802 = vunpack.c.h.b16 %v4305
    %v4803 = vunpack.c.l.b16 %v4306
    %v4804 = vunpack.c.h.b16 %v4306
    %v4805 = vunpack.c.l.b16 %v4307
    %v4806 = vunpack.c.h.b16 %v4307
    %v4807 = vunpack.c.l.b16 %v4308
    %v4808 = vunpack.c.h.b16 %v4308
    %v4809 = vunpack.c.l.b16 %v4309
    %v4810 = vunpack.c.h.b16 %v4309
    %v4811 = vunpack.c.l.b16 %v4310
    %v4812 = vunpack.c.h.b16 %v4310
    %v4813 = vunpack.c.l.b16 %v4311
    %v4814 = vunpack.c.h.b16 %v4311
    %v4815 = vunpack.c.l.b16 %v4312
    %v4816 = vunpack.c.h.b16 %v4312
    %v4817 = vunpack.c.l.b16 %v4313
    %v4818 = vunpack.c.h.b16 %v4313
    %v4819 = vunpack.c.l.b16 %v4314
    %v4820 = vunpack.c.h.b16 %v4314
    %v4821 = vunpack.c.l.b16 %v4315
    %v4822 = vunpack.c.h.b16 %v4315
    %v4823 = vunpack.c.l.b16 %v4316
    %v4824 = vunpack.c.h.b16 %v4316
    %v4825 = vunpack.c.l.b16 %v4317
    %v4826 = vunpack.c.h.b16 %v4317
    %v4827 = vunpack.c.l.b16 %v4318
    %v4828 = vunpack.c.h.b16 %v4318
    %v4829 = vunpack.c.l.b16 %v4319
    %v4830 = vunpack.c.h.b16 %v4319
    %v4831 = vunpack.c.l.b16 %v4320
    %v4832 = vunpack.c.h.b16 %v4320
    %v4833 = vunpack.c.l.b16 %v4321
    %v4834 = vunpack.c.h.b16 %v4321
    %v4835 = vunpack.c.l.b16 %v4322
    %v4836 = vunpack.c.h.b16 %v4322
    %v4837 = vunpack.c.l.b16 %v4323
    %v4838 = vunpack.c.h.b16 %v4323
    %v4839 = vunpack.c.l.b16 %v4324
    %v4840 = vunpack.c.h.b16 %v4324
    %v4841 = vunpack.c.l.b16 %v4325
    %v4842 = vunpack.c.h.b16 %v4325
    %v4843 = vunpack.c.l.b16 %v4326
    %v4844 = vunpack.c.h.b16 %v4326
    %v4845 = vunpack.c.l.b16 %v4327
    %v4846 = vunpack.c.h.b16 %v4327
    %v4847 = vunpack.c.l.b16 %v4328
    %v4848 = vunpack.c.h.b16 %v4328
    %v4849 = vunpack.c.l.b16 %v4329
    %v4850 = vunpack.c.h.b16 %v4329
    %v4851 = vunpack.c.l.b16 %v4330
    %v4852 = vunpack.c.h.b16 %v4330
    %v4853 = vunpack.c.l.b16 %v4331
    %v4854 = vunpack.c.h.b16 %v4331
    %v4855 = vunpack.c.l.b16 %v4332
    %v4856 = vunpack.c.h.b16 %v4332
    %v4857 = vunpack.c.l.b16 %v4333
    %v4858 = vunpack.c.h.b16 %v4333
    %v4859 = vunpack.c.l.b16 %v4334
    %v4860 = vunpack.c.h.b16 %v4334
    %v4861 = vunpack.c.l.b16 %v4335
    %v4862 = vunpack.c.h.b16 %v4335
    %v4863 = vunpack.c.l.b16 %v4336
    %v4864 = vunpack.c.h.b16 %v4336
    %v4865 = vunpack.c.l.b16 %v4337
    %v4866 = vunpack.c.h.b16 %v4337
    %v4867 = vunpack.c.l.b16 %v4338
    %v4868 = vunpack.c.h.b16 %v4338
    %v4869 = vunpack.c.l.b16 %v4339
    %v4870 = vunpack.c.h.b16 %v4339
    %v4871 = vunpack.c.l.b16 %v4340
    %v4872 = vunpack.c.h.b16 %v4340
    %v4873 = vunpack.c.l.b16 %v4341
    %v4874 = vunpack.c.h.b16 %v4341
    %v4875 = vunpack.c.l.b16 %v4342
    %v4876 = vunpack.c.h.b16 %v4342
    %v4877 = vunpack.c.l.b16 %v4343
    %v4878 = vunpack.c.h.b16 %v4343
    %v4879 = vunpack.c.l.b16 %v4344
    %v4880 = vunpack.c.h.b16 %v4344
    %v4881 = vunpack.c.l.b16 %v4345
    %v4882 = vunpack.c.h.b16 %v4345
    %v4883 = vunpack.c.l.b16 %v4346
    %v4884 = vunpack.c.h.b16 %v4346
    %v4885 = vunpack.c.l.b16 %v4347
    %v4886 = vunpack.c.h.b16 %v4347
    %v4887 = vunpack.c.l.b16 %v4348
    %v4888 = vunpack.c.h.b16 %v4348
    %v4889 = vunpack.c.l.b16 %v4349
    %v4890 = vunpack.c.h.b16 %v4349
    %v4891 = vunpack.c.l.b16 %v4350
    %v4892 = vunpack.c.h.b16 %v4350
    %v4893 = vunpack.c.l.b16 %v4351
    %v4894 = vunpack.c.h.b16 %v4351
    %v4895 = vunpack.c.l.b16 %v4352
    %v4896 = vunpack.c.h.b16 %v4352
    %v4897 = vunpack.c.l.b16 %v4353
    %v4898 = vunpack.c.h.b16 %v4353
    %v4899 = vunpack.c.l.b16 %v4354
    %v4900 = vunpack.c.h.b16 %v4354
    %v4901 = vunpack.c.l.b16 %v4355
    %v4902 = vunpack.c.h.b16 %v4355
    %v4903 = vunpack.c.l.b16 %v4356
    %v4904 = vunpack.c.h.b16 %v4356
    %v4905 = vunpack.c.l.b16 %v4357
    %v4906 = vunpack.c.h.b16 %v4357
    %v4907 = vunpack.c.l.b16 %v4358
    %v4908 = vunpack.c.h.b16 %v4358
    %v4909 = vunpack.c.l.b16 %v4359
    %v4910 = vunpack.c.h.b16 %v4359
    %v4911 = vunpack.c.l.b16 %v4360
    %v4912 = vunpack.c.h.b16 %v4360
    %v4913 = vunpack.c.l.b16 %v4361
    %v4914 = vunpack.c.h.b16 %v4361
    %v4915 = vunpack.c.l.b16 %v4362
    %v4916 = vunpack.c.h.b16 %v4362
    %v4917 = vunpack.c.l.b16 %v4363
    %v4918 = vunpack.c.h.b16 %v4363
    %v4919 = vunpack.c.l.b16 %v4364
    %v4920 = vunpack.c.h.b16 %v4364
    %v4921 = vunpack.c.l.b16 %v4365
    %v4922 = vunpack.c.h.b16 %v4365
    %v4923 = vunpack.c.l.b16 %v4366
    %v4924 = vunpack.c.h.b16 %v4366
    %v4925 = vunpack.c.l.b16 %v4367
    %v4926 = vunpack.c.h.b16 %v4367
    %v4927 = vunpack.c.l.b16 %v4368
    %v4928 = vunpack.c.h.b16 %v4368
    %v4929 = vunpack.c.l.b16 %v4369
    %v4930 = vunpack.c.h.b16 %v4369
    %v4931 = vunpack.c.l.b16 %v4370
    %v4932 = vunpack.c.h.b16 %v4370
    %v4933 = vunpack.c.l.b16 %v4371
    %v4934 = vunpack.c.h.b16 %v4371
    %v4935 = vunpack.c.l.b16 %v4372
    %v4936 = vunpack.c.h.b16 %v4372
    %v4937 = vunpack.c.l.b16 %v4373
    %v4938 = vunpack.c.h.b16 %v4373
    %v4939 = vunpack.c.l.b16 %v4374
    %v4940 = vunpack.c.h.b16 %v4374
    %v4941 = vunpack.c.l.b16 %v4375
    %v4942 = vunpack.c.h.b16 %v4375
    %v4943 = vunpack.c.l.b16 %v4376
    %v4944 = vunpack.c.h.b16 %v4376
    %v4945 = vunpack.c.l.b16 %v4377
    %v4946 = vunpack.c.h.b16 %v4377
    %v4947 = vunpack.c.l.b16 %v4378
    %v4948 = vunpack.c.h.b16 %v4378
    %v4949 = vunpack.c.l.b16 %v4379
    %v4950 = vunpack.c.h.b16 %v4379
    %v4951 = vunpack.c.l.b16 %v4380
    %v4952 = vunpack.c.h.b16 %v4380
    %v4953 = vunpack.c.l.b16 %v4381
    %v4954 = vunpack.c.h.b16 %v4381
    %v4955 = vunpack.c.l.b16 %v4382
    %v4956 = vunpack.c.h.b16 %v4382
    %v4957 = vunpack.c.l.b16 %v4383
    %v4958 = vunpack.c.h.b16 %v4383
    %v4959 = vunpack.c.l.b16 %v4384
    %v4960 = vunpack.c.h.b16 %v4384
    %v4961 = vunpack.c.l.b16 %v4385
    %v4962 = vunpack.c.h.b16 %v4385
    %v4963 = vunpack.c.l.b16 %v4386
    %v4964 = vunpack.c.h.b16 %v4386
    %v4965 = vunpack.c.l.b16 %v4387
    %v4966 = vunpack.c.h.b16 %v4387
    %v4967 = vunpack.c.l.b16 %v4388
    %v4968 = vunpack.c.h.b16 %v4388
    %v4969 = vunpack.c.l.b16 %v4389
    %v4970 = vunpack.c.h.b16 %v4389
    %v4971 = vunpack.c.l.b16 %v4390
    %v4972 = vunpack.c.h.b16 %v4390
    %v4973 = vunpack.c.l.b16 %v4391
    %v4974 = vunpack.c.h.b16 %v4391
    %v4975 = vunpack.c.l.b16 %v4392
    %v4976 = vunpack.c.h.b16 %v4392
    %v4977 = vunpack.c.l.b16 %v4393
    %v4978 = vunpack.c.h.b16 %v4393
    %v4979 = vunpack.c.l.b16 %v4394
    %v4980 = vunpack.c.h.b16 %v4394
    %v4981 = vunpack.c.l.b16 %v4395
    %v4982 = vunpack.c.h.b16 %v4395
    %v4983 = vunpack.c.l.b16 %v4396
    %v4984 = vunpack.c.h.b16 %v4396
    %v4985 = vunpack.c.l.b16 %v4397
    %v4986 = vunpack.c.h.b16 %v4397
    %v4987 = vunpack.c.l.b16 %v4398
    %v4988 = vunpack.c.h.b16 %v4398
    %v4989 = vunpack.c.l.b16 %v4399
    %v4990 = vunpack.c.h.b16 %v4399
    %v4991 = vunpack.c.l.b16 %v4400
    %v4992 = vunpack.c.h.b16 %v4400
    %v4993 = vunpack.c.l.b16 %v4401
    %v4994 = vunpack.c.h.b16 %v4401
    %v4995 = vunpack.c.l.b16 %v4402
    %v4996 = vunpack.c.h.b16 %v4402
    %v4997 = vunpack.c.l.b16 %v4403
    %v4998 = vunpack.c.h.b16 %v4403
    %v4999 = vunpack.c.l.b16 %v4404
    %v5000 = vunpack.c.h.b16 %v4404
    %v5001 = vunpack.c.l.b16 %v4405
    %v5002 = vunpack.c.h.b16 %v4405
    %v5003 = vunpack.c.l.b16 %v4406
    %v5004 = vunpack.c.h.b16 %v4406
    %v5005 = vunpack.c.l.b16 %v4407
    %v5006 = vunpack.c.h.b16 %v4407
    %v5007 = vunpack.c.l.b16 %v4408
    %v5008 = vunpack.c.h.b16 %v4408
    %v5009 = vunpack.c.l.b16 %v4409
    %v5010 = vunpack.c.h.b16 %v4409
    %v5011 = vunpack.c.l.b16 %v4410
    %v5012 = vunpack.c.h.b16 %v4410
    %v5013 = vunpack.c.l.b16 %v4411
    %v5014 = vunpack.c.h.b16 %v4411
    %v5015 = vunpack.c.l.b16 %v4412
    %v5016 = vunpack.c.h.b16 %v4412
    %v5017 = vunpack.c.l.b16 %v4413
    %v5018 = vunpack.c.h.b16 %v4413
    %v5019 = vunpack.c.l.b16 %v4414
    %v5020 = vunpack.c.h.b16 %v4414
    %v5021 = vunpack.c.l.b16 %v4415
    %v5022 = vunpack.c.h.b16 %v4415
    %v5023 = vunpack.c.l.b16 %v4416
    %v5024 = vunpack.c.h.b16 %v4416
    %v5025 = vunpack.c.l.b16 %v4417
    %v5026 = vunpack.c.h.b16 %v4417
    %v5027 = vunpack.c.l.b16 %v4418
    %v5028 = vunpack.c.h.b16 %v4418
    %v5029 = vunpack.c.l.b16 %v4419
    %v5030 = vunpack.c.h.b16 %v4419
    %v5031 = vunpack.c.l.b16 %v4420
    %v5032 = vunpack.c.h.b16 %v4420
    %v5033 = vunpack.c.l.b16 %v4421
    %v5034 = vunpack.c.h.b16 %v4421
    %v5035 = vunpack.c.l.b16 %v4422
    %v5036 = vunpack.c.h.b16 %v4422
    %v5037 = vunpack.c.l.b16 %v4423
    %v5038 = vunpack.c.h.b16 %v4423
    %v5039 = vunpack.c.l.b16 %v4424
    %v5040 = vunpack.c.h.b16 %v4424
    %v5041 = vunpack.c.l.b16 %v4425
    %v5042 = vunpack.c.h.b16 %v4425
    %v5043 = vunpack.c.l.b16 %v4426
    %v5044 = vunpack.c.h.b16 %v4426
    %v5045 = vunpack.c.l.b16 %v4427
    %v5046 = vunpack.c.h.b16 %v4427
    %v5047 = vunpack.c.l.b16 %v4428
    %v5048 = vunpack.c.h.b16 %v4428
    %v5049 = vunpack.c.l.b16 %v4429
    %v5050 = vunpack.c.h.b16 %v4429
    %v5051 = vunpack.c.l.b16 %v4430
    %v5052 = vunpack.c.h.b16 %v4430
    %v5053 = vunpack.c.l.b16 %v4431
    %v5054 = vunpack.c.h.b16 %v4431
    %v5055 = vunpack.c.l.b16 %v4432
    %v5056 = vunpack.c.h.b16 %v4432
    %v5057 = vunpack.c.l.b16 %v4433
    %v5058 = vunpack.c.h.b16 %v4433
    %v5059 = vunpack.c.l.b16 %v4434
    %v5060 = vunpack.c.h.b16 %v4434
    %v5061 = vunpack.c.l.b16 %v4435
    %v5062 = vunpack.c.h.b16 %v4435
    %v5063 = vunpack.c.l.b16 %v4436
    %v5064 = vunpack.c.h.b16 %v4436
    %v5065 = vunpack.c.l.b16 %v4437
    %v5066 = vunpack.c.h.b16 %v4437
    %v5067 = vunpack.c.l.b16 %v4438
    %v5068 = vunpack.c.h.b16 %v4438
    %v5069 = vunpack.c.l.b16 %v4439
    %v5070 = vunpack.c.h.b16 %v4439
    %v5071 = vunpack.c.l.b16 %v4440
    %v5072 = vunpack.c.h.b16 %v4440
    %v5073 = vunpack.c.l.b16 %v4441
    %v5074 = vunpack.c.h.b16 %v4441
    %v5075 = vunpack.c.l.b16 %v4442
    %v5076 = vunpack.c.h.b16 %v4442
    %v5077 = vunpack.c.l.b16 %v4443
    %v5078 = vunpack.c.h.b16 %v4443
    %v5079 = vunpack.c.l.b16 %v4444
    %v5080 = vunpack.c.h.b16 %v4444
    %v5081 = vunpack.c.l.b16 %v4445
    %v5082 = vunpack.c.h.b16 %v4445
    %v5083 = vunpack.c.l.b16 %v4446
    %v5084 = vunpack.c.h.b16 %v4446
    %v5085 = vunpack.c.l.b16 %v4447
    %v5086 = vunpack.c.h.b16 %v4447
    %v5087 = vunpack.c.l.b16 %v4448
    %v5088 = vunpack.c.h.b16 %v4448
    %v5089 = vunpack.c.l.b16 %v4449
    %v5090 = vunpack.c.h.b16 %v4449
    %v5091 = vunpack.c.l.b16 %v4450
    %v5092 = vunpack.c.h.b16 %v4450
    %v5093 = vunpack.c.l.b16 %v4451
    %v5094 = vunpack.c.h.b16 %v4451
    %v5095 = vunpack.c.l.b16 %v4452
    %v5096 = vunpack.c.h.b16 %v4452
    %v5097 = vunpack.c.l.b16 %v4453
    %v5098 = vunpack.c.h.b16 %v4453
    %v5099 = vunpack.c.l.b16 %v4454
    %v5100 = vunpack.c.h.b16 %v4454
    %v5101 = vunpack.c.l.b16 %v4455
    %v5102 = vunpack.c.h.b16 %v4455
    %v5103 = vunpack.c.l.b16 %v4456
    %v5104 = vunpack.c.h.b16 %v4456
    %v5105 = vunpack.c.l.b16 %v4457
    %v5106 = vunpack.c.h.b16 %v4457
    %v5107 = vunpack.c.l.b16 %v4458
    %v5108 = vunpack.c.h.b16 %v4458
    %v5109 = vunpack.c.l.b16 %v4459
    %v5110 = vunpack.c.h.b16 %v4459
    %v5111 = vunpack.c.l.b16 %v4460
    %v5112 = vunpack.c.h.b16 %v4460
    %v5113 = vunpack.c.l.b16 %v4461
    %v5114 = vunpack.c.h.b16 %v4461
    %v5115 = vunpack.c.l.b16 %v4462
    %v5116 = vunpack.c.h.b16 %v4462
    %v5117 = vunpack.c.l.b16 %v4463
    %v5118 = vunpack.c.h.b16 %v4463
    %v5119 = vunpack.c.l.b16 %v4464
    %v5120 = vunpack.c.h.b16 %v4464
    %v5121 = vunpack.c.l.b16 %v4465
    %v5122 = vunpack.c.h.b16 %v4465
    %v5123 = vunpack.c.l.b16 %v4466
    %v5124 = vunpack.c.h.b16 %v4466
    %v5125 = vunpack.c.l.b16 %v4467
    %v5126 = vunpack.c.h.b16 %v4467
    %v5127 = vunpack.c.l.b16 %v4468
    %v5128 = vunpack.c.h.b16 %v4468
    %v5129 = vunpack.c.l.b16 %v4469
    %v5130 = vunpack.c.h.b16 %v4469
    %v5131 = vunpack.c.l.b16 %v4470
    %v5132 = vunpack.c.h.b16 %v4470
    %v5133 = vunpack.c.l.b16 %v4471
    %v5134 = vunpack.c.h.b16 %v4471
    %v5135 = vunpack.c.l.b16 %v4472
    %v5136 = vunpack.c.h.b16 %v4472
    %v5137 = vunpack.c.l.b16 %v4473
    %v5138 = vunpack.c.h.b16 %v4473
    %v5139 = vunpack.c.l.b16 %v4474
    %v5140 = vunpack.c.h.b16 %v4474
    %v5141 = vunpack.c.l.b16 %v4475
    %v5142 = vunpack.c.h.b16 %v4475
    %v5143 = vunpack.c.l.b16 %v4476
    %v5144 = vunpack.c.h.b16 %v4476
    %v5145 = vunpack.c.l.b16 %v4477
    %v5146 = vunpack.c.h.b16 %v4477
    %v5147 = vunpack.c.l.b16 %v4478
    %v5148 = vunpack.c.h.b16 %v4478
    %v5149 = vunpack.c.l.b16 %v4479
    %v5150 = vunpack.c.h.b16 %v4479
    %v5151 = vunpack.c.l.b16 %v4480
    %v5152 = vunpack.c.h.b16 %v4480
    %v5153 = vunpack.c.l.b16 %v4481
    %v5154 = vunpack.c.h.b16 %v4481
    %v5155 = vunpack.c.l.b16 %v4482
    %v5156 = vunpack.c.h.b16 %v4482
    %v5157 = vunpack.c.l.b16 %v4483
    %v5158 = vunpack.c.h.b16 %v4483
    %v5159 = vunpack.c.l.b16 %v4484
    %v5160 = vunpack.c.h.b16 %v4484
    %v5161 = vunpack.c.l.b16 %v4485
    %v5162 = vunpack.c.h.b16 %v4485
    %v5163 = vunpack.c.l.b16 %v4486
    %v5164 = vunpack.c.h.b16 %v4486
    %v5165 = vunpack.c.l.b16 %v4487
    %v5166 = vunpack.c.h.b16 %v4487
    %v5167 = vunpack.c.l.b16 %v4488
    %v5168 = vunpack.c.h.b16 %v4488
    %v5169 = vunpack.c.l.b16 %v4489
    %v5170 = vunpack.c.h.b16 %v4489
    %v5171 = vunpack.c.l.b16 %v4490
    %v5172 = vunpack.c.h.b16 %v4490
    %v5173 = vunpack.c.l.b16 %v4491
    %v5174 = vunpack.c.h.b16 %v4491
    %v5175 = vunpack.c.l.b16 %v4492
    %v5176 = vunpack.c.h.b16 %v4492
    %v5177 = vunpack.c.l.b16 %v4493
    %v5178 = vunpack.c.h.b16 %v4493
    %v5179 = vunpack.c.l.b16 %v4494
    %v5180 = vunpack.c.h.b16 %v4494
    %v5181 = vunpack.c.l.b16 %v4495
    %v5182 = vunpack.c.h.b16 %v4495
    %v5183 = vunpack.c.l.b16 %v4496
    %v5184 = vunpack.c.h.b16 %v4496
    %v5185 = vunpack.c.l.b16 %v4497
    %v5186 = vunpack.c.h.b16 %v4497
    %v5187 = vunpack.c.l.b16 %v4498
    %v5188 = vunpack.c.h.b16 %v4498
    %v5189 = vunpack.c.l.b16 %v4499
    %v5190 = vunpack.c.h.b16 %v4499
    %v5191 = vunpack.c.l.b16 %v4500
    %v5192 = vunpack.c.h.b16 %v4500
    %v5193 = vunpack.c.l.b16 %v4501
    %v5194 = vunpack.c.h.b16 %v4501
    %v5195 = vunpack.c.l.b16 %v4502
    %v5196 = vunpack.c.h.b16 %v4502
    %v5197 = vpack.c.b16 %v4753, %v4749
    %v5198 = vpack.c.b16 %v4754, %v4750
    %v5199 = vpack.c.b16 %v4755, %v4751
    %v5200 = vpack.c.b16 %v4756, %v4752
    %v5201 = vpack.c.b16 %v4761, %v4757
    %v5202 = vpack.c.b16 %v4762, %v4758
    %v5203 = vpack.c.b16 %v4763, %v4759
    %v5204 = vpack.c.b16 %v4764, %v4760
    %v5205 = vpack.c.b16 %v4769, %v4765
    %v5206 = vpack.c.b16 %v4770, %v4766
    %v5207 = vpack.c.b16 %v4771, %v4767
    %v5208 = vpack.c.b16 %v4772, %v4768
    %v5209 = vpack.c.b16 %v4777, %v4773
    %v5210 = vpack.c.b16 %v4778, %v4774
    %v5211 = vpack.c.b16 %v4779, %v4775
    %v5212 = vpack.c.b16 %v4780, %v4776
    %v5213 = vpack.c.b16 %v4785, %v4781
    %v5214 = vpack.c.b16 %v4786, %v4782
    %v5215 = vpack.c.b16 %v4787, %v4783
    %v5216 = vpack.c.b16 %v4788, %v4784
    %v5217 = vpack.c.b16 %v4793, %v4789
    %v5218 = vpack.c.b16 %v4794, %v4790
    %v5219 = vpack.c.b16 %v4795, %v4791
    %v5220 = vpack.c.b16 %v4796, %v4792
    %v5221 = vpack.c.b16 %v4801, %v4797
    %v5222 = vpack.c.b16 %v4802, %v4798
    %v5223 = vpack.c.b16 %v4803, %v4799
    %v5224 = vpack.c.b16 %v4804, %v4800
    %v5225 = vpack.c.b16 %v4809, %v4805
    %v5226 = vpack.c.b16 %v4810, %v4806
    %v5227 = vpack.c.b16 %v4811, %v4807
    %v5228 = vpack.c.b16 %v4812, %v4808
    %v5229 = vpack.c.b16 %v4817, %v4813
    %v5230 = vpack.c.b16 %v4818, %v4814
    %v5231 = vpack.c.b16 %v4819, %v4815
    %v5232 = vpack.c.b16 %v4820, %v4816
    %v5233 = vpack.c.b16 %v4825, %v4821
    %v5234 = vpack.c.b16 %v4826, %v4822
    %v5235 = vpack.c.b16 %v4827, %v4823
    %v5236 = vpack.c.b16 %v4828, %v4824
    %v5237 = vpack.c.b16 %v4833, %v4829
    %v5238 = vpack.c.b16 %v4834, %v4830
    %v5239 = vpack.c.b16 %v4835, %v4831
    %v5240 = vpack.c.b16 %v4836, %v4832
    %v5241 = vpack.c.b16 %v4841, %v4837
    %v5242 = vpack.c.b16 %v4842, %v4838
    %v5243 = vpack.c.b16 %v4843, %v4839
    %v5244 = vpack.c.b16 %v4844, %v4840
    %v5245 = vpack.c.b16 %v4849, %v4845
    %v5246 = vpack.c.b16 %v4850, %v4846
    %v5247 = vpack.c.b16 %v4851, %v4847
    %v5248 = vpack.c.b16 %v4852, %v4848
    %v5249 = vpack.c.b16 %v4857, %v4853
    %v5250 = vpack.c.b16 %v4858, %v4854
    %v5251 = vpack.c.b16 %v4859, %v4855
    %v5252 = vpack.c.b16 %v4860, %v4856
    %v5253 = vpack.c.b16 %v4865, %v4861
    %v5254 = vpack.c.b16 %v4866, %v4862
    %v5255 = vpack.c.b16 %v4867, %v4863
    %v5256 = vpack.c.b16 %v4868, %v4864
    %v5257 = vpack.c.b16 %v4873, %v4869
    %v5258 = vpack.c.b16 %v4874, %v4870
    %v5259 = vpack.c.b16 %v4875, %v4871
    %v5260 = vpack.c.b16 %v4876, %v4872
    %v5261 = vpack.c.b16 %v4881, %v4877
    %v5262 = vpack.c.b16 %v4882, %v4878
    %v5263 = vpack.c.b16 %v4883, %v4879
    %v5264 = vpack.c.b16 %v4884, %v4880
    %v5265 = vpack.c.b16 %v4889, %v4885
    %v5266 = vpack.c.b16 %v4890, %v4886
    %v5267 = vpack.c.b16 %v4891, %v4887
    %v5268 = vpack.c.b16 %v4892, %v4888
    %v5269 = vpack.c.b16 %v4897, %v4893
    %v5270 = vpack.c.b16 %v4898, %v4894
    %v5271 = vpack.c.b16 %v4899, %v4895
    %v5272 = vpack.c.b16 %v4900, %v4896
    %v5273 = vpack.c.b16 %v4905, %v4901
    %v5274 = vpack.c.b16 %v4906, %v4902
    %v5275 = vpack.c.b16 %v4907, %v4903
    %v5276 = vpack.c.b16 %v4908, %v4904
    %v5277 = vpack.c.b16 %v4913, %v4909
    %v5278 = vpack.c.b16 %v4914, %v4910
    %v5279 = vpack.c.b16 %v4915, %v4911
    %v5280 = vpack.c.b16 %v4916, %v4912
    %v5281 = vpack.c.b16 %v4921, %v4917
    %v5282 = vpack.c.b16 %v4922, %v4918
    %v5283 = vpack.c.b16 %v4923, %v4919
    %v5284 = vpack.c.b16 %v4924, %v4920
    %v5285 = vpack.c.b16 %v4929, %v4925
    %v5286 = vpack.c.b16 %v4930, %v4926
    %v5287 = vpack.c.b16 %v4931, %v4927
    %v5288 = vpack.c.b16 %v4932, %v4928
    %v5289 = vpack.c.b16 %v4937, %v4933
    %v5290 = vpack.c.b16 %v4938, %v4934
    %v5291 = vpack.c.b16 %v4939, %v4935
    %v5292 = vpack.c.b16 %v4940, %v4936
    %v5293 = vpack.c.b16 %v4945, %v4941
    %v5294 = vpack.c.b16 %v4946, %v4942
    %v5295 = vpack.c.b16 %v4947, %v4943
    %v5296 = vpack.c.b16 %v4948, %v4944
    %v5297 = vpack.c.b16 %v4953, %v4949
    %v5298 = vpack.c.b16 %v4954, %v4950
    %v5299 = vpack.c.b16 %v4955, %v4951
    %v5300 = vpack.c.b16 %v4956, %v4952
    %v5301 = vpack.c.b16 %v4961, %v4957
    %v5302 = vpack.c.b16 %v4962, %v4958
    %v5303 = vpack.c.b16 %v4963, %v4959
    %v5304 = vpack.c.b16 %v4964, %v4960
    %v5305 = vpack.c.b16 %v4969, %v4965
    %v5306 = vpack.c.b16 %v4970, %v4966
    %v5307 = vpack.c.b16 %v4971, %v4967
    %v5308 = vpack.c.b16 %v4972, %v4968
    %v5309 = vpack.c.b16 %v4977, %v4973
    %v5310 = vpack.c.b16 %v4978, %v4974
    %v5311 = vpack.c.b16 %v4979, %v4975
    %v5312 = vpack.c.b16 %v4980, %v4976
    %v5313 = vpack.c.b16 %v4985, %v4981
    %v5314 = vpack.c.b16 %v4986, %v4982
    %v5315 = vpack.c.b16 %v4987, %v4983
    %v5316 = vpack.c.b16 %v4988, %v4984
    %v5317 = vpack.c.b16 %v4993, %v4989
    %v5318 = vpack.c.b16 %v4994, %v4990
    %v5319 = vpack.c.b16 %v4995, %v4991
    %v5320 = vpack.c.b16 %v4996, %v4992
    %v5321 = vpack.c.b16 %v5001, %v4997
    %v5322 = vpack.c.b16 %v5002, %v4998
    %v5323 = vpack.c.b16 %v5003, %v4999
    %v5324 = vpack.c.b16 %v5004, %v5000
    %v5325 = vpack.c.b16 %v5009, %v5005
    %v5326 = vpack.c.b16 %v5010, %v5006
    %v5327 = vpack.c.b16 %v5011, %v5007
    %v5328 = vpack.c.b16 %v5012, %v5008
    %v5329 = vpack.c.b16 %v5017, %v5013
    %v5330 = vpack.c.b16 %v5018, %v5014
    %v5331 = vpack.c.b16 %v5019, %v5015
    %v5332 = vpack.c.b16 %v5020, %v5016
    %v5333 = vpack.c.b16 %v5025, %v5021
    %v5334 = vpack.c.b16 %v5026, %v5022
    %v5335 = vpack.c.b16 %v5027, %v5023
    %v5336 = vpack.c.b16 %v5028, %v5024
    %v5337 = vpack.c.b16 %v5033, %v5029
    %v5338 = vpack.c.b16 %v5034, %v5030
    %v5339 = vpack.c.b16 %v5035, %v5031
    %v5340 = vpack.c.b16 %v5036, %v5032
    %v5341 = vpack.c.b16 %v5041, %v5037
    %v5342 = vpack.c.b16 %v5042, %v5038
    %v5343 = vpack.c.b16 %v5043, %v5039
    %v5344 = vpack.c.b16 %v5044, %v5040
    %v5345 = vpack.c.b16 %v5049, %v5045
    %v5346 = vpack.c.b16 %v5050, %v5046
    %v5347 = vpack.c.b16 %v5051, %v5047
    %v5348 = vpack.c.b16 %v5052, %v5048
    %v5349 = vpack.c.b16 %v5057, %v5053
    %v5350 = vpack.c.b16 %v5058, %v5054
    %v5351 = vpack.c.b16 %v5059, %v5055
    %v5352 = vpack.c.b16 %v5060, %v5056
    %v5353 = vpack.c.b16 %v5065, %v5061
    %v5354 = vpack.c.b16 %v5066, %v5062
    %v5355 = vpack.c.b16 %v5067, %v5063
    %v5356 = vpack.c.b16 %v5068, %v5064
    %v5357 = vpack.c.b16 %v5073, %v5069
    %v5358 = vpack.c.b16 %v5074, %v5070
    %v5359 = vpack.c.b16 %v5075, %v5071
    %v5360 = vpack.c.b16 %v5076, %v5072
    %v5361 = vpack.c.b16 %v5081, %v5077
    %v5362 = vpack.c.b16 %v5082, %v5078
    %v5363 = vpack.c.b16 %v5083, %v5079
    %v5364 = vpack.c.b16 %v5084, %v5080
    %v5365 = vpack.c.b16 %v5089, %v5085
    %v5366 = vpack.c.b16 %v5090, %v5086
    %v5367 = vpack.c.b16 %v5091, %v5087
    %v5368 = vpack.c.b16 %v5092, %v5088
    %v5369 = vpack.c.b16 %v5097, %v5093
    %v5370 = vpack.c.b16 %v5098, %v5094
    %v5371 = vpack.c.b16 %v5099, %v5095
    %v5372 = vpack.c.b16 %v5100, %v5096
    %v5373 = vpack.c.b16 %v5105, %v5101
    %v5374 = vpack.c.b16 %v5106, %v5102
    %v5375 = vpack.c.b16 %v5107, %v5103
    %v5376 = vpack.c.b16 %v5108, %v5104
    %v5377 = vpack.c.b16 %v5113, %v5109
    %v5378 = vpack.c.b16 %v5114, %v5110
    %v5379 = vpack.c.b16 %v5115, %v5111
    %v5380 = vpack.c.b16 %v5116, %v5112
    %v5381 = vpack.c.b16 %v5121, %v5117
    %v5382 = vpack.c.b16 %v5122, %v5118
    %v5383 = vpack.c.b16 %v5123, %v5119
    %v5384 = vpack.c.b16 %v5124, %v5120
    %v5385 = vpack.c.b16 %v5129, %v5125
    %v5386 = vpack.c.b16 %v5130, %v5126
    %v5387 = vpack.c.b16 %v5131, %v5127
    %v5388 = vpack.c.b16 %v5132, %v5128
    %v5389 = vpack.c.b16 %v5137, %v5133
    %v5390 = vpack.c.b16 %v5138, %v5134
    %v5391 = vpack.c.b16 %v5139, %v5135
    %v5392 = vpack.c.b16 %v5140, %v5136
    %v5393 = vpack.c.b16 %v5145, %v5141
    %v5394 = vpack.c.b16 %v5146, %v5142
    %v5395 = vpack.c.b16 %v5147, %v5143
    %v5396 = vpack.c.b16 %v5148, %v5144
    %v5397 = vpack.c.b16 %v5153, %v5149
    %v5398 = vpack.c.b16 %v5154, %v5150
    %v5399 = vpack.c.b16 %v5155, %v5151
    %v5400 = vpack.c.b16 %v5156, %v5152
    %v5401 = vpack.c.b16 %v5161, %v5157
    %v5402 = vpack.c.b16 %v5162, %v5158
    %v5403 = vpack.c.b16 %v5163, %v5159
    %v5404 = vpack.c.b16 %v5164, %v5160
    %v5405 = vpack.c.b16 %v5169, %v5165
    %v5406 = vpack.c.b16 %v5170, %v5166
    %v5407 = vpack.c.b16 %v5171, %v5167
    %v5408 = vpack.c.b16 %v5172, %v5168
    %v5409 = vpack.c.b16 %v5177, %v5173
    %v5410 = vpack.c.b16 %v5178, %v5174
    %v5411 = vpack.c.b16 %v5179, %v5175
    %v5412 = vpack.c.b16 %v5180, %v5176
    %v5413 = vpack.c.b16 %v5185, %v5181
    %v5414 = vpack.c.b16 %v5186, %v5182
    %v5415 = vpack.c.b16 %v5187, %v5183
    %v5416 = vpack.c.b16 %v5188, %v5184
    %v5417 = vpack.c.b16 %v5193, %v5189
    %v5418 = vpack.c.b16 %v5194, %v5190
    %v5419 = vpack.c.b16 %v5195, %v5191
    %v5420 = vpack.c.b16 %v5196, %v5192
    %5645 = vmatprep.subr.bf16.mxu0 %v5198
    %5646 = vmatpush1.bf16.msra.mxu0 %v5197
    %5647 = vmatprep.subr.bf16.mxu0 %v5202
    %5648 = vmatpush1.bf16.msra.mxu0 %v5201
    %5649 = vmatprep.subr.bf16.mxu0 %v5206
    %5650 = vmatpush1.bf16.msra.mxu0 %v5205
    %5651 = vmatprep.subr.bf16.mxu0 %v5210
    %5652 = vmatpush1.bf16.msra.mxu0 %v5209
    %5653 = vmatprep.subr.bf16.mxu0 %v5214
    %5654 = vmatpush1.bf16.msra.mxu0 %v5213
    %5655 = vmatprep.subr.bf16.mxu0 %v5218
    %5656 = vmatpush1.bf16.msra.mxu0 %v5217
    %5657 = vmatprep.subr.bf16.mxu0 %v5222
    %5658 = vmatpush1.bf16.msra.mxu0 %v5221
    %5659 = vmatprep.subr.bf16.mxu0 %v5226
    %5660 = vmatpush1.bf16.msra.mxu0 %v5225
    %5661 = vmatprep.subr.bf16.mxu0 %v5230
    %5662 = vmatpush1.bf16.msra.mxu0 %v5229
    %5663 = vmatprep.subr.bf16.mxu0 %v5234
    %5664 = vmatpush1.bf16.msra.mxu0 %v5233
    %5665 = vmatprep.subr.bf16.mxu0 %v5238
    %5666 = vmatpush1.bf16.msra.mxu0 %v5237
    %5667 = vmatprep.subr.bf16.mxu0 %v5242
    %5668 = vmatpush1.bf16.msra.mxu0 %v5241
    %5669 = vmatprep.subr.bf16.mxu0 %v5246
    %5670 = vmatpush1.bf16.msra.mxu0 %v5245
    %5671 = vmatprep.subr.bf16.mxu0 %v5250
    %5672 = vmatpush1.bf16.msra.mxu0 %v5249
    %5673 = vmatprep.subr.bf16.mxu0 %v5254
    %5674 = vmatpush1.bf16.msra.mxu0 %v5253
    %5675 = vmatprep.subr.bf16.mxu0 %v5258
    %5676 = vmatpush1.bf16.msra.mxu0 %v5257
    %5677 = vmatprep.mubr.bf16.mxu0 %v4273
    %5678 = vmatmul.mubr.bf16.gmra.mrb[0].mxu0 %v4272
    %v5679 = vpop.f32.mrb[0].mxu0
    %v5680 = vadd.f32 %v4508, %v5679
    %v5681 = vpop.f32.mrb[0].mxu0
    %v5682 = vadd.f32 %v4512, %v5681
    %v5683 = vpop.f32.mrb[0].mxu0
    %v5684 = vpop.f32.mrb[0].mxu0
    %5685 = vdwg.mxu0
    %5686 = vmatprep.subr.bf16.mxu0 %v5262
    %5687 = vmatpush1.bf16.msra.mxu0 %v5261
    %5688 = vmatprep.subr.bf16.mxu0 %v5266
    %5689 = vmatpush1.bf16.msra.mxu0 %v5265
    %5690 = vmatprep.subr.bf16.mxu0 %v5270
    %5691 = vmatpush1.bf16.msra.mxu0 %v5269
    %5692 = vmatprep.subr.bf16.mxu0 %v5274
    %5693 = vmatpush1.bf16.msra.mxu0 %v5273
    %5694 = vmatprep.subr.bf16.mxu0 %v5278
    %5695 = vmatpush1.bf16.msra.mxu0 %v5277
    %5696 = vmatprep.subr.bf16.mxu0 %v5282
    %5697 = vmatpush1.bf16.msra.mxu0 %v5281
    %5698 = vmatprep.subr.bf16.mxu0 %v5286
    %5699 = vmatpush1.bf16.msra.mxu0 %v5285
    %5700 = vmatprep.subr.bf16.mxu0 %v5290
    %5701 = vmatpush1.bf16.msra.mxu0 %v5289
    %5702 = vmatprep.subr.bf16.mxu0 %v5294
    %5703 = vmatpush1.bf16.msra.mxu0 %v5293
    %5704 = vmatprep.subr.bf16.mxu0 %v5298
    %5705 = vmatpush1.bf16.msra.mxu0 %v5297
    %5706 = vmatprep.subr.bf16.mxu0 %v5302
    %5707 = vmatpush1.bf16.msra.mxu0 %v5301
    %5708 = vmatprep.subr.bf16.mxu0 %v5306
    %5709 = vmatpush1.bf16.msra.mxu0 %v5305
    %5710 = vmatprep.subr.bf16.mxu0 %v5310
    %5711 = vmatpush1.bf16.msra.mxu0 %v5309
    %5712 = vmatprep.subr.bf16.mxu0 %v5314
    %5713 = vmatpush1.bf16.msra.mxu0 %v5313
    %5714 = vmatprep.subr.bf16.mxu0 %v5318
    %5715 = vmatpush1.bf16.msra.mxu0 %v5317
    %5716 = vmatprep.subr.bf16.mxu0 %v5322
    %5717 = vmatpush1.bf16.msra.mxu0 %v5321
    %5718 = vmatprep.mubr.bf16.mxu0 %v4275
    %5719 = vmatmul.mubr.bf16.gmra.mrb[0].mxu0 %v4274
    %v5720 = vpop.f32.mrb[0].mxu0
    %v5721 = vadd.f32 %v5680, %v5720
    %v5722 = vpop.f32.mrb[0].mxu0
    %v5723 = vadd.f32 %v5682, %v5722
    %v5724 = vpop.f32.mrb[0].mxu0
    %v5725 = vpop.f32.mrb[0].mxu0
    %5726 = vdwg.mxu0
    %5727 = vmatprep.subr.bf16.mxu0 %v5326
    %5728 = vmatpush1.bf16.msra.mxu0 %v5325
    %5729 = vmatprep.subr.bf16.mxu0 %v5330
    %5730 = vmatpush1.bf16.msra.mxu0 %v5329
    %5731 = vmatprep.subr.bf16.mxu0 %v5334
    %5732 = vmatpush1.bf16.msra.mxu0 %v5333
    %5733 = vmatprep.subr.bf16.mxu0 %v5338
    %5734 = vmatpush1.bf16.msra.mxu0 %v5337
    %5735 = vmatprep.subr.bf16.mxu0 %v5342
    %5736 = vmatpush1.bf16.msra.mxu0 %v5341
    %5737 = vmatprep.subr.bf16.mxu0 %v5346
    %5738 = vmatpush1.bf16.msra.mxu0 %v5345
    %5739 = vmatprep.subr.bf16.mxu0 %v5350
    %5740 = vmatpush1.bf16.msra.mxu0 %v5349
    %5741 = vmatprep.subr.bf16.mxu0 %v5354
    %5742 = vmatpush1.bf16.msra.mxu0 %v5353
    %5743 = vmatprep.subr.bf16.mxu0 %v5358
    %5744 = vmatpush1.bf16.msra.mxu0 %v5357
    %5745 = vmatprep.subr.bf16.mxu0 %v5362
    %5746 = vmatpush1.bf16.msra.mxu0 %v5361
    %5747 = vmatprep.subr.bf16.mxu0 %v5366
    %5748 = vmatpush1.bf16.msra.mxu0 %v5365
    %5749 = vmatprep.subr.bf16.mxu0 %v5370
    %5750 = vmatpush1.bf16.msra.mxu0 %v5369
    %5751 = vmatprep.subr.bf16.mxu0 %v5374
    %5752 = vmatpush1.bf16.msra.mxu0 %v5373
    %5753 = vmatprep.subr.bf16.mxu0 %v5378
    %5754 = vmatpush1.bf16.msra.mxu0 %v5377
    %5755 = vmatprep.subr.bf16.mxu0 %v5382
    %5756 = vmatpush1.bf16.msra.mxu0 %v5381
    %5757 = vmatprep.subr.bf16.mxu0 %v5386
    %5758 = vmatpush1.bf16.msra.mxu0 %v5385
    %5759 = vmatprep.mubr.bf16.mxu0 %v4277
    %5760 = vmatmul.mubr.bf16.gmra.mrb[0].mxu0 %v4276
    %v5761 = vpop.f32.mrb[0].mxu0
    %v5762 = vadd.f32 %v5721, %v5761
    %v5763 = vpop.f32.mrb[0].mxu0
    %v5764 = vadd.f32 %v5723, %v5763
    %v5765 = vpop.f32.mrb[0].mxu0
    %v5766 = vpop.f32.mrb[0].mxu0
    %5767 = vdwg.mxu0
    %5768 = vmatprep.subr.bf16.mxu0 %v5390
    %5769 = vmatpush1.bf16.msra.mxu0 %v5389
    %5770 = vmatprep.subr.bf16.mxu0 %v5394
    %5771 = vmatpush1.bf16.msra.mxu0 %v5393
    %5772 = vmatprep.subr.bf16.mxu0 %v5398
    %5773 = vmatpush1.bf16.msra.mxu0 %v5397
    %5774 = vmatprep.subr.bf16.mxu0 %v5402
    %5775 = vmatpush1.bf16.msra.mxu0 %v5401
    %5776 = vmatprep.subr.bf16.mxu0 %v5406
    %5777 = vmatpush1.bf16.msra.mxu0 %v5405
    %5778 = vmatprep.subr.bf16.mxu0 %v5410
    %5779 = vmatpush1.bf16.msra.mxu0 %v5409
    %5780 = vmatprep.subr.bf16.mxu0 %v5414
    %5781 = vmatpush1.bf16.msra.mxu0 %v5413
    %5782 = vmatprep.subr.bf16.mxu0 %v5418
    %5783 = vmatpush1.bf16.msra.mxu0 %v5417
    %5784 = vmatprep.subr.bf16.mxu0 0
    %5785 = vmatpush1.bf16.msra.mxu0 0
    %5786 = vmatprep.subr.bf16.mxu0 0
    %5787 = vmatpush1.bf16.msra.mxu0 0
    %5788 = vmatprep.subr.bf16.mxu0 0
    %5789 = vmatpush1.bf16.msra.mxu0 0
    %5790 = vmatprep.subr.bf16.mxu0 0
    %5791 = vmatpush1.bf16.msra.mxu0 0
    %5792 = vmatprep.subr.bf16.mxu0 0
    %5793 = vmatpush1.bf16.msra.mxu0 0
    %5794 = vmatprep.subr.bf16.mxu0 0
    %5795 = vmatpush1.bf16.msra.mxu0 0
    %5796 = vmatprep.subr.bf16.mxu0 0
    %5797 = vmatpush1.bf16.msra.mxu0 0
    %5798 = vmatprep.subr.bf16.mxu0 0
    %5799 = vmatpush1.bf16.msra.mxu0 0
    %5800 = vmatprep.mubr.bf16.mxu0 0
    %5801 = vmatmul.mubr.bf16.gmra.mrb[0].mxu0 %v4278
    %v5802 = vpop.f32.mrb[0].mxu0
    %v5803 = vadd.f32 %v5762, %v5802
    %v5804 = vpop.f32.mrb[0].mxu0
    %v5805 = vadd.f32 %v5764, %v5804
    %v5806 = vpop.f32.mrb[0].mxu0
    %v5807 = vpop.f32.mrb[0].mxu0
    %5808 = vdwg.mxu0
    %5809 = vmatprep.subr.bf16.mxu0 %v5200
    %5810 = vmatpush1.bf16.msra.mxu0 %v5199
    %5811 = vmatprep.subr.bf16.mxu0 %v5204
    %5812 = vmatpush1.bf16.msra.mxu0 %v5203
    %5813 = vmatprep.subr.bf16.mxu0 %v5208
    %5814 = vmatpush1.bf16.msra.mxu0 %v5207
    %5815 = vmatprep.subr.bf16.mxu0 %v5212
    %5816 = vmatpush1.bf16.msra.mxu0 %v5211
    %5817 = vmatprep.subr.bf16.mxu0 %v5216
    %5818 = vmatpush1.bf16.msra.mxu0 %v5215
    %5819 = vmatprep.subr.bf16.mxu0 %v5220
    %5820 = vmatpush1.bf16.msra.mxu0 %v5219
    %5821 = vmatprep.subr.bf16.mxu0 %v5224
    %5822 = vmatpush1.bf16.msra.mxu0 %v5223
    %5823 = vmatprep.subr.bf16.mxu0 %v5228
    %5824 = vmatpush1.bf16.msra.mxu0 %v5227
    %5825 = vmatprep.subr.bf16.mxu0 %v5232
    %5826 = vmatpush1.bf16.msra.mxu0 %v5231
    %5827 = vmatprep.subr.bf16.mxu0 %v5236
    %5828 = vmatpush1.bf16.msra.mxu0 %v5235
    %5829 = vmatprep.subr.bf16.mxu0 %v5240
    %5830 = vmatpush1.bf16.msra.mxu0 %v5239
    %5831 = vmatprep.subr.bf16.mxu0 %v5244
    %5832 = vmatpush1.bf16.msra.mxu0 %v5243
    %5833 = vmatprep.subr.bf16.mxu0 %v5248
    %5834 = vmatpush1.bf16.msra.mxu0 %v5247
    %5835 = vmatprep.subr.bf16.mxu0 %v5252
    %5836 = vmatpush1.bf16.msra.mxu0 %v5251
    %5837 = vmatprep.subr.bf16.mxu0 %v5256
    %5838 = vmatpush1.bf16.msra.mxu0 %v5255
    %5839 = vmatprep.subr.bf16.mxu0 %v5260
    %5840 = vmatpush1.bf16.msra.mxu0 %v5259
    %5841 = vmatprep.mubr.bf16.mxu0 %v4273
    %5842 = vmatmul.mubr.bf16.gmra.mrb[0].mxu0 %v4272
    %v5843 = vpop.f32.mrb[0].mxu0
    %v5844 = vadd.f32 %v4516, %v5843
    %v5845 = vpop.f32.mrb[0].mxu0
    %v5846 = vadd.f32 %v4520, %v5845
    %v5847 = vpop.f32.mrb[0].mxu0
    %v5848 = vpop.f32.mrb[0].mxu0
    %5849 = vdwg.mxu0
    %5850 = vmatprep.subr.bf16.mxu0 %v5264
    %5851 = vmatpush1.bf16.msra.mxu0 %v5263
    %5852 = vmatprep.subr.bf16.mxu0 %v5268
    %5853 = vmatpush1.bf16.msra.mxu0 %v5267
    %5854 = vmatprep.subr.bf16.mxu0 %v5272
    %5855 = vmatpush1.bf16.msra.mxu0 %v5271
    %5856 = vmatprep.subr.bf16.mxu0 %v5276
    %5857 = vmatpush1.bf16.msra.mxu0 %v5275
    %5858 = vmatprep.subr.bf16.mxu0 %v5280
    %5859 = vmatpush1.bf16.msra.mxu0 %v5279
    %5860 = vmatprep.subr.bf16.mxu0 %v5284
    %5861 = vmatpush1.bf16.msra.mxu0 %v5283
    %5862 = vmatprep.subr.bf16.mxu0 %v5288
    %5863 = vmatpush1.bf16.msra.mxu0 %v5287
    %5864 = vmatprep.subr.bf16.mxu0 %v5292
    %5865 = vmatpush1.bf16.msra.mxu0 %v5291
    %5866 = vmatprep.subr.bf16.mxu0 %v5296
    %5867 = vmatpush1.bf16.msra.mxu0 %v5295
    %5868 = vmatprep.subr.bf16.mxu0 %v5300
    %5869 = vmatpush1.bf16.msra.mxu0 %v5299
    %5870 = vmatprep.subr.bf16.mxu0 %v5304
    %5871 = vmatpush1.bf16.msra.mxu0 %v5303
    %5872 = vmatprep.subr.bf16.mxu0 %v5308
    %5873 = vmatpush1.bf16.msra.mxu0 %v5307
    %5874 = vmatprep.subr.bf16.mxu0 %v5312
    %5875 = vmatpush1.bf16.msra.mxu0 %v5311
    %5876 = vmatprep.subr.bf16.mxu0 %v5316
    %5877 = vmatpush1.bf16.msra.mxu0 %v5315
    %5878 = vmatprep.subr.bf16.mxu0 %v5320
    %5879 = vmatpush1.bf16.msra.mxu0 %v5319
    %5880 = vmatprep.subr.bf16.mxu0 %v5324
    %5881 = vmatpush1.bf16.msra.mxu0 %v5323
    %5882 = vmatprep.mubr.bf16.mxu0 %v4275
    %5883 = vmatmul.mubr.bf16.gmra.mrb[0].mxu0 %v4274
    %v5884 = vpop.f32.mrb[0].mxu0
    %v5885 = vadd.f32 %v5844, %v5884
    %v5886 = vpop.f32.mrb[0].mxu0
    %v5887 = vadd.f32 %v5846, %v5886
    %v5888 = vpop.f32.mrb[0].mxu0
    %v5889 = vpop.f32.mrb[0].mxu0
    %5890 = vdwg.mxu0
    %5891 = vmatprep.subr.bf16.mxu0 %v5328
    %5892 = vmatpush1.bf16.msra.mxu0 %v5327
    %5893 = vmatprep.subr.bf16.mxu0 %v5332
    %5894 = vmatpush1.bf16.msra.mxu0 %v5331
    %5895 = vmatprep.subr.bf16.mxu0 %v5336
    %5896 = vmatpush1.bf16.msra.mxu0 %v5335
    %5897 = vmatprep.subr.bf16.mxu0 %v5340
    %5898 = vmatpush1.bf16.msra.mxu0 %v5339
    %5899 = vmatprep.subr.bf16.mxu0 %v5344
    %5900 = vmatpush1.bf16.msra.mxu0 %v5343
    %5901 = vmatprep.subr.bf16.mxu0 %v5348
    %5902 = vmatpush1.bf16.msra.mxu0 %v5347
    %5903 = vmatprep.subr.bf16.mxu0 %v5352
    %5904 = vmatpush1.bf16.msra.mxu0 %v5351
    %5905 = vmatprep.subr.bf16.mxu0 %v5356
    %5906 = vmatpush1.bf16.msra.mxu0 %v5355
    %5907 = vmatprep.subr.bf16.mxu0 %v5360
    %5908 = vmatpush1.bf16.msra.mxu0 %v5359
    %5909 = vmatprep.subr.bf16.mxu0 %v5364
    %5910 = vmatpush1.bf16.msra.mxu0 %v5363
    %5911 = vmatprep.subr.bf16.mxu0 %v5368
    %5912 = vmatpush1.bf16.msra.mxu0 %v5367
    %5913 = vmatprep.subr.bf16.mxu0 %v5372
    %5914 = vmatpush1.bf16.msra.mxu0 %v5371
    %5915 = vmatprep.subr.bf16.mxu0 %v5376
    %5916 = vmatpush1.bf16.msra.mxu0 %v5375
    %5917 = vmatprep.subr.bf16.mxu0 %v5380
    %5918 = vmatpush1.bf16.msra.mxu0 %v5379
    %5919 = vmatprep.subr.bf16.mxu0 %v5384
    %5920 = vmatpush1.bf16.msra.mxu0 %v5383
    %5921 = vmatprep.subr.bf16.mxu0 %v5388
    %5922 = vmatpush1.bf16.msra.mxu0 %v5387
    %5923 = vmatprep.mubr.bf16.mxu0 %v4277
    %5924 = vmatmul.mubr.bf16.gmra.mrb[0].mxu0 %v4276
    %v5925 = vpop.f32.mrb[0].mxu0
    %v5926 = vadd.f32 %v5885, %v5925
    %v5927 = vpop.f32.mrb[0].mxu0
    %v5928 = vadd.f32 %v5887, %v5927
    %v5929 = vpop.f32.mrb[0].mxu0
    %v5930 = vpop.f32.mrb[0].mxu0
    %5931 = vdwg.mxu0
    %5932 = vmatprep.subr.bf16.mxu0 %v5392
    %5933 = vmatpush1.bf16.msra.mxu0 %v5391
    %5934 = vmatprep.subr.bf16.mxu0 %v5396
    %5935 = vmatpush1.bf16.msra.mxu0 %v5395
    %5936 = vmatprep.subr.bf16.mxu0 %v5400
    %5937 = vmatpush1.bf16.msra.mxu0 %v5399
    %5938 = vmatprep.subr.bf16.mxu0 %v5404
    %5939 = vmatpush1.bf16.msra.mxu0 %v5403
    %5940 = vmatprep.subr.bf16.mxu0 %v5408
    %5941 = vmatpush1.bf16.msra.mxu0 %v5407
    %5942 = vmatprep.subr.bf16.mxu0 %v5412
    %5943 = vmatpush1.bf16.msra.mxu0 %v5411
    %5944 = vmatprep.subr.bf16.mxu0 %v5416
    %5945 = vmatpush1.bf16.msra.mxu0 %v5415
    %5946 = vmatprep.subr.bf16.mxu0 %v5420
    %5947 = vmatpush1.bf16.msra.mxu0 %v5419
    %5948 = vmatprep.subr.bf16.mxu0 0
    %5949 = vmatpush1.bf16.msra.mxu0 0
    %5950 = vmatprep.subr.bf16.mxu0 0
    %5951 = vmatpush1.bf16.msra.mxu0 0
    %5952 = vmatprep.subr.bf16.mxu0 0
    %5953 = vmatpush1.bf16.msra.mxu0 0
    %5954 = vmatprep.subr.bf16.mxu0 0
    %5955 = vmatpush1.bf16.msra.mxu0 0
    %5956 = vmatprep.subr.bf16.mxu0 0
    %5957 = vmatpush1.bf16.msra.mxu0 0
    %5958 = vmatprep.subr.bf16.mxu0 0
    %5959 = vmatpush1.bf16.msra.mxu0 0
    %5960 = vmatprep.subr.bf16.mxu0 0
    %5961 = vmatpush1.bf16.msra.mxu0 0
    %5962 = vmatprep.subr.bf16.mxu0 0
    %5963 = vmatpush1.bf16.msra.mxu0 0
    %5964 = vmatprep.mubr.bf16.mxu0 0
    %5965 = vmatmul.mubr.bf16.gmra.mrb[0].mxu0 %v4278
    %v5966 = vpop.f32.mrb[0].mxu0
    %v5967 = vadd.f32 %v5926, %v5966
    %v5968 = vpop.f32.mrb[0].mxu0
    %v5969 = vadd.f32 %v5928, %v5968
    %v5970 = vpop.f32.mrb[0].mxu0
    %v5971 = vpop.f32.mrb[0].mxu0
    %5972 = vdwg.mxu0
    %v5973 = vmax.f32 %v5803, 0.0
    %v5974 = vmax.f32 %v5805, 0.0
    %v5975 = vmax.f32 %v5967, 0.0
    %v5976 = vmax.f32 %v5969, 0.0
    %v5977 = vpack.c.bf16 %v5973, %v5973
    %v5978 = vpack.c.bf16 %v5974, %v5974
    %v5979 = vpack.c.bf16 %v5975, %v5975
    %v5980 = vpack.c.bf16 %v5976, %v5976
    %v5981 = vld [vmem:[#allocation11] sm:$0xff]
    %v5982 = vld [vmem:[#allocation11 + $0x8] sm:$0xff]
    %v5983 = vld [vmem:[#allocation11 + $0x10] sm:$0xff]
    %v5984 = vld [vmem:[#allocation11 + $0x18] sm:$0xff]
    %v5985 = vld [vmem:[#allocation11 + $0x20] sm:$0xff]
    %v5986 = vld [vmem:[#allocation11 + $0x28] sm:$0xff]
    %v5987 = vld [vmem:[#allocation11 + $0x30] sm:$0xff]
    %v5988 = vld [vmem:[#allocation11 + $0x38] sm:$0xff]
    %v5989 = vld [vmem:[#allocation11 + $0x40] sm:$0xff]
    %v5990 = vld [vmem:[#allocation11 + $0x48] sm:$0xff]
    %v5991 = vld [vmem:[#allocation11 + $0x50] sm:$0xff]
    %v5992 = vld [vmem:[#allocation11 + $0x58] sm:$0xff]
    %v5993 = vld [vmem:[#allocation11 + $0x60] sm:$0xff]
    %v5994 = vld [vmem:[#allocation11 + $0x68] sm:$0xff]
    %v5995 = vld [vmem:[#allocation11 + $0x70] sm:$0xff]
    %v5996 = vld [vmem:[#allocation11 + $0x78] sm:$0xff]
    %v5997 = vld [vmem:[#allocation11 + $0x80] sm:$0xff]
    %v5998 = vld [vmem:[#allocation11 + $0x88] sm:$0xff]
    %v5999 = vld [vmem:[#allocation11 + $0x90] sm:$0xff]
    %v6000 = vld [vmem:[#allocation11 + $0x98] sm:$0xff]
    %v6001 = vld [vmem:[#allocation11 + $0xa0] sm:$0xff]
    %v6002 = vld [vmem:[#allocation11 + $0xa8] sm:$0xff]
    %v6003 = vld [vmem:[#allocation11 + $0xb0] sm:$0xff]
    %v6004 = vld [vmem:[#allocation11 + $0xb8] sm:$0xff]
    %v6005 = vld [vmem:[#allocation11 + $0xc0] sm:$0xff]
    %v6006 = vld [vmem:[#allocation11 + $0xc8] sm:$0xff]
    %v6007 = vld [vmem:[#allocation11 + $0xd0] sm:$0xff]
    %v6008 = vld [vmem:[#allocation11 + $0xd8] sm:$0xff]
    %v6009 = vld [vmem:[#allocation11 + $0xe0] sm:$0xff]
    %v6010 = vld [vmem:[#allocation11 + $0xe8] sm:$0xff]
    %v6011 = vld [vmem:[#allocation11 + $0xf0] sm:$0xff]
    %v6012 = vld [vmem:[#allocation11 + $0xf8] sm:$0xff]
    %v6013 = vld [vmem:[#allocation11 + $0x100] sm:$0xff]
    %v6014 = vld [vmem:[#allocation11 + $0x108] sm:$0xff]
    %v6015 = vld [vmem:[#allocation11 + $0x110] sm:$0xff]
    %v6016 = vld [vmem:[#allocation11 + $0x118] sm:$0xff]
    %v6017 = vld [vmem:[#allocation11 + $0x120] sm:$0xff]
    %v6018 = vld [vmem:[#allocation11 + $0x128] sm:$0xff]
    %v6019 = vld [vmem:[#allocation11 + $0x130] sm:$0xff]
    %v6020 = vld [vmem:[#allocation11 + $0x138] sm:$0xff]
    %v6021 = vld [vmem:[#allocation11 + $0x140] sm:$0xff]
    %v6022 = vld [vmem:[#allocation11 + $0x148] sm:$0xff]
    %v6023 = vld [vmem:[#allocation11 + $0x150] sm:$0xff]
    %v6024 = vld [vmem:[#allocation11 + $0x158] sm:$0xff]
    %v6025 = vld [vmem:[#allocation11 + $0x160] sm:$0xff]
    %v6026 = vld [vmem:[#allocation11 + $0x168] sm:$0xff]
    %v6027 = vld [vmem:[#allocation11 + $0x170] sm:$0xff]
    %v6028 = vld [vmem:[#allocation11 + $0x178] sm:$0xff]
    %v6029 = vld [vmem:[#allocation11 + $0x180] sm:$0xff]
    %v6030 = vld [vmem:[#allocation11 + $0x188] sm:$0xff]
    %v6031 = vld [vmem:[#allocation11 + $0x190] sm:$0xff]
    %v6032 = vld [vmem:[#allocation11 + $0x198] sm:$0xff]
    %v6033 = vld [vmem:[#allocation11 + $0x1a0] sm:$0xff]
    %v6034 = vld [vmem:[#allocation11 + $0x1a8] sm:$0xff]
    %v6035 = vld [vmem:[#allocation11 + $0x1b0] sm:$0xff]
    %v6036 = vld [vmem:[#allocation11 + $0x1b8] sm:$0xff]
    %v6037 = vld [vmem:[#allocation11 + $0x1c0] sm:$0xff]
    %v6038 = vld [vmem:[#allocation11 + $0x1c8] sm:$0xff]
    %v6039 = vld [vmem:[#allocation11 + $0x1d0] sm:$0xff]
    %v6040 = vld [vmem:[#allocation11 + $0x1d8] sm:$0xff]
    %v6041 = vld [vmem:[#allocation11 + $0x1e0] sm:$0xff]
    %v6042 = vld [vmem:[#allocation11 + $0x1e8] sm:$0xff]
    %v6043 = vld [vmem:[#allocation11 + $0x1f0] sm:$0xff]
    %v6044 = vld [vmem:[#allocation11 + $0x1f8] sm:$0xff]
    %v6045 = vld [vmem:[#allocation13] sm:$0x3]
    %v6047 = vlaneseq
    %v6048 = vshrl.u32 %v6047, 7
    %v6049 = vsub.s32 0, %v6048
    %v6050 = vrot.slane %v6045, %v6049
    %v6051 = vlaneseq
    %v6052 = vshrl.u32 %v6051, 7
    %v6053 = vsub.s32 1, %v6052
    %v6054 = vrot.slane %v6045, %v6053
    %v6121 = vunpack.c.l.b16 %v5981
    %v6122 = vunpack.c.h.b16 %v5981
    %v6123 = vunpack.c.l.b16 %v5982
    %v6124 = vunpack.c.h.b16 %v5982
    %v6125 = vunpack.c.l.b16 %v5983
    %v6126 = vunpack.c.h.b16 %v5983
    %v6127 = vunpack.c.l.b16 %v5984
    %v6128 = vunpack.c.h.b16 %v5984
    %v6129 = vunpack.c.l.b16 %v5985
    %v6130 = vunpack.c.h.b16 %v5985
    %v6131 = vunpack.c.l.b16 %v5986
    %v6132 = vunpack.c.h.b16 %v5986
    %v6133 = vunpack.c.l.b16 %v5987
    %v6134 = vunpack.c.h.b16 %v5987
    %v6135 = vunpack.c.l.b16 %v5988
    %v6136 = vunpack.c.h.b16 %v5988
    %v6137 = vunpack.c.l.b16 %v5989
    %v6138 = vunpack.c.h.b16 %v5989
    %v6139 = vunpack.c.l.b16 %v5990
    %v6140 = vunpack.c.h.b16 %v5990
    %v6141 = vunpack.c.l.b16 %v5991
    %v6142 = vunpack.c.h.b16 %v5991
    %v6143 = vunpack.c.l.b16 %v5992
    %v6144 = vunpack.c.h.b16 %v5992
    %v6145 = vunpack.c.l.b16 %v5993
    %v6146 = vunpack.c.h.b16 %v5993
    %v6147 = vunpack.c.l.b16 %v5994
    %v6148 = vunpack.c.h.b16 %v5994
    %v6149 = vunpack.c.l.b16 %v5995
    %v6150 = vunpack.c.h.b16 %v5995
    %v6151 = vunpack.c.l.b16 %v5996
    %v6152 = vunpack.c.h.b16 %v5996
    %v6153 = vunpack.c.l.b16 %v5997
    %v6154 = vunpack.c.h.b16 %v5997
    %v6155 = vunpack.c.l.b16 %v5998
    %v6156 = vunpack.c.h.b16 %v5998
    %v6157 = vunpack.c.l.b16 %v5999
    %v6158 = vunpack.c.h.b16 %v5999
    %v6159 = vunpack.c.l.b16 %v6000
    %v6160 = vunpack.c.h.b16 %v6000
    %v6161 = vunpack.c.l.b16 %v6001
    %v6162 = vunpack.c.h.b16 %v6001
    %v6163 = vunpack.c.l.b16 %v6002
    %v6164 = vunpack.c.h.b16 %v6002
    %v6165 = vunpack.c.l.b16 %v6003
    %v6166 = vunpack.c.h.b16 %v6003
    %v6167 = vunpack.c.l.b16 %v6004
    %v6168 = vunpack.c.h.b16 %v6004
    %v6169 = vunpack.c.l.b16 %v6005
    %v6170 = vunpack.c.h.b16 %v6005
    %v6171 = vunpack.c.l.b16 %v6006
    %v6172 = vunpack.c.h.b16 %v6006
    %v6173 = vunpack.c.l.b16 %v6007
    %v6174 = vunpack.c.h.b16 %v6007
    %v6175 = vunpack.c.l.b16 %v6008
    %v6176 = vunpack.c.h.b16 %v6008
    %v6177 = vunpack.c.l.b16 %v6009
    %v6178 = vunpack.c.h.b16 %v6009
    %v6179 = vunpack.c.l.b16 %v6010
    %v6180 = vunpack.c.h.b16 %v6010
    %v6181 = vunpack.c.l.b16 %v6011
    %v6182 = vunpack.c.h.b16 %v6011
    %v6183 = vunpack.c.l.b16 %v6012
    %v6184 = vunpack.c.h.b16 %v6012
    %v6185 = vunpack.c.l.b16 %v6013
    %v6186 = vunpack.c.h.b16 %v6013
    %v6187 = vunpack.c.l.b16 %v6014
    %v6188 = vunpack.c.h.b16 %v6014
    %v6189 = vunpack.c.l.b16 %v6015
    %v6190 = vunpack.c.h.b16 %v6015
    %v6191 = vunpack.c.l.b16 %v6016
    %v6192 = vunpack.c.h.b16 %v6016
    %v6193 = vunpack.c.l.b16 %v6017
    %v6194 = vunpack.c.h.b16 %v6017
    %v6195 = vunpack.c.l.b16 %v6018
    %v6196 = vunpack.c.h.b16 %v6018
    %v6197 = vunpack.c.l.b16 %v6019
    %v6198 = vunpack.c.h.b16 %v6019
    %v6199 = vunpack.c.l.b16 %v6020
    %v6200 = vunpack.c.h.b16 %v6020
    %v6201 = vunpack.c.l.b16 %v6021
    %v6202 = vunpack.c.h.b16 %v6021
    %v6203 = vunpack.c.l.b16 %v6022
    %v6204 = vunpack.c.h.b16 %v6022
    %v6205 = vunpack.c.l.b16 %v6023
    %v6206 = vunpack.c.h.b16 %v6023
    %v6207 = vunpack.c.l.b16 %v6024
    %v6208 = vunpack.c.h.b16 %v6024
    %v6209 = vunpack.c.l.b16 %v6025
    %v6210 = vunpack.c.h.b16 %v6025
    %v6211 = vunpack.c.l.b16 %v6026
    %v6212 = vunpack.c.h.b16 %v6026
    %v6213 = vunpack.c.l.b16 %v6027
    %v6214 = vunpack.c.h.b16 %v6027
    %v6215 = vunpack.c.l.b16 %v6028
    %v6216 = vunpack.c.h.b16 %v6028
    %v6217 = vunpack.c.l.b16 %v6029
    %v6218 = vunpack.c.h.b16 %v6029
    %v6219 = vunpack.c.l.b16 %v6030
    %v6220 = vunpack.c.h.b16 %v6030
    %v6221 = vunpack.c.l.b16 %v6031
    %v6222 = vunpack.c.h.b16 %v6031
    %v6223 = vunpack.c.l.b16 %v6032
    %v6224 = vunpack.c.h.b16 %v6032
    %v6225 = vunpack.c.l.b16 %v6033
    %v6226 = vunpack.c.h.b16 %v6033
    %v6227 = vunpack.c.l.b16 %v6034
    %v6228 = vunpack.c.h.b16 %v6034
    %v6229 = vunpack.c.l.b16 %v6035
    %v6230 = vunpack.c.h.b16 %v6035
    %v6231 = vunpack.c.l.b16 %v6036
    %v6232 = vunpack.c.h.b16 %v6036
    %v6233 = vunpack.c.l.b16 %v6037
    %v6234 = vunpack.c.h.b16 %v6037
    %v6235 = vunpack.c.l.b16 %v6038
    %v6236 = vunpack.c.h.b16 %v6038
    %v6237 = vunpack.c.l.b16 %v6039
    %v6238 = vunpack.c.h.b16 %v6039
    %v6239 = vunpack.c.l.b16 %v6040
    %v6240 = vunpack.c.h.b16 %v6040
    %v6241 = vunpack.c.l.b16 %v6041
    %v6242 = vunpack.c.h.b16 %v6041
    %v6243 = vunpack.c.l.b16 %v6042
    %v6244 = vunpack.c.h.b16 %v6042
    %v6245 = vunpack.c.l.b16 %v6043
    %v6246 = vunpack.c.h.b16 %v6043
    %v6247 = vunpack.c.l.b16 %v6044
    %v6248 = vunpack.c.h.b16 %v6044
    %v6249 = vpack.c.b16 %v6123, %v6121
    %v6250 = vpack.c.b16 %v6124, %v6122
    %v6251 = vpack.c.b16 %v6127, %v6125
    %v6252 = vpack.c.b16 %v6128, %v6126
    %v6253 = vpack.c.b16 %v6131, %v6129
    %v6254 = vpack.c.b16 %v6132, %v6130
    %v6255 = vpack.c.b16 %v6135, %v6133
    %v6256 = vpack.c.b16 %v6136, %v6134
    %v6257 = vpack.c.b16 %v6139, %v6137
    %v6258 = vpack.c.b16 %v6140, %v6138
    %v6259 = vpack.c.b16 %v6143, %v6141
    %v6260 = vpack.c.b16 %v6144, %v6142
    %v6261 = vpack.c.b16 %v6147, %v6145
    %v6262 = vpack.c.b16 %v6148, %v6146
    %v6263 = vpack.c.b16 %v6151, %v6149
    %v6264 = vpack.c.b16 %v6152, %v6150
    %v6265 = vpack.c.b16 %v6155, %v6153
    %v6266 = vpack.c.b16 %v6156, %v6154
    %v6267 = vpack.c.b16 %v6159, %v6157
    %v6268 = vpack.c.b16 %v6160, %v6158
    %v6269 = vpack.c.b16 %v6163, %v6161
    %v6270 = vpack.c.b16 %v6164, %v6162
    %v6271 = vpack.c.b16 %v6167, %v6165
    %v6272 = vpack.c.b16 %v6168, %v6166
    %v6273 = vpack.c.b16 %v6171, %v6169
    %v6274 = vpack.c.b16 %v6172, %v6170
    %v6275 = vpack.c.b16 %v6175, %v6173
    %v6276 = vpack.c.b16 %v6176, %v6174
    %v6277 = vpack.c.b16 %v6179, %v6177
    %v6278 = vpack.c.b16 %v6180, %v6178
    %v6279 = vpack.c.b16 %v6183, %v6181
    %v6280 = vpack.c.b16 %v6184, %v6182
    %v6281 = vpack.c.b16 %v6187, %v6185
    %v6282 = vpack.c.b16 %v6188, %v6186
    %v6283 = vpack.c.b16 %v6191, %v6189
    %v6284 = vpack.c.b16 %v6192, %v6190
    %v6285 = vpack.c.b16 %v6195, %v6193
    %v6286 = vpack.c.b16 %v6196, %v6194
    %v6287 = vpack.c.b16 %v6199, %v6197
    %v6288 = vpack.c.b16 %v6200, %v6198
    %v6289 = vpack.c.b16 %v6203, %v6201
    %v6290 = vpack.c.b16 %v6204, %v6202
    %v6291 = vpack.c.b16 %v6207, %v6205
    %v6292 = vpack.c.b16 %v6208, %v6206
    %v6293 = vpack.c.b16 %v6211, %v6209
    %v6294 = vpack.c.b16 %v6212, %v6210
    %v6295 = vpack.c.b16 %v6215, %v6213
    %v6296 = vpack.c.b16 %v6216, %v6214
    %v6297 = vpack.c.b16 %v6219, %v6217
    %v6298 = vpack.c.b16 %v6220, %v6218
    %v6299 = vpack.c.b16 %v6223, %v6221
    %v6300 = vpack.c.b16 %v6224, %v6222
    %v6301 = vpack.c.b16 %v6227, %v6225
    %v6302 = vpack.c.b16 %v6228, %v6226
    %v6303 = vpack.c.b16 %v6231, %v6229
    %v6304 = vpack.c.b16 %v6232, %v6230
    %v6305 = vpack.c.b16 %v6235, %v6233
    %v6306 = vpack.c.b16 %v6236, %v6234
    %v6307 = vpack.c.b16 %v6239, %v6237
    %v6308 = vpack.c.b16 %v6240, %v6238
    %v6309 = vpack.c.b16 %v6243, %v6241
    %v6310 = vpack.c.b16 %v6244, %v6242
    %v6311 = vpack.c.b16 %v6247, %v6245
    %v6312 = vpack.c.b16 %v6248, %v6246
    %6377 = vmatprep.subr.bf16.mxu0 %v6250
    %6378 = vmatpush1.bf16.msra.mxu0 %v6249
    %6379 = vmatprep.subr.bf16.mxu0 %v6252
    %6380 = vmatpush1.bf16.msra.mxu0 %v6251
    %6381 = vmatprep.subr.bf16.mxu0 %v6254
    %6382 = vmatpush1.bf16.msra.mxu0 %v6253
    %6383 = vmatprep.subr.bf16.mxu0 %v6256
    %6384 = vmatpush1.bf16.msra.mxu0 %v6255
    %6385 = vmatprep.subr.bf16.mxu0 %v6258
    %6386 = vmatpush1.bf16.msra.mxu0 %v6257
    %6387 = vmatprep.subr.bf16.mxu0 %v6260
    %6388 = vmatpush1.bf16.msra.mxu0 %v6259
    %6389 = vmatprep.subr.bf16.mxu0 %v6262
    %6390 = vmatpush1.bf16.msra.mxu0 %v6261
    %6391 = vmatprep.subr.bf16.mxu0 %v6264
    %6392 = vmatpush1.bf16.msra.mxu0 %v6263
    %6393 = vmatprep.subr.bf16.mxu0 %v6266
    %6394 = vmatpush1.bf16.msra.mxu0 %v6265
    %6395 = vmatprep.subr.bf16.mxu0 %v6268
    %6396 = vmatpush1.bf16.msra.mxu0 %v6267
    %6397 = vmatprep.subr.bf16.mxu0 %v6270
    %6398 = vmatpush1.bf16.msra.mxu0 %v6269
    %6399 = vmatprep.subr.bf16.mxu0 %v6272
    %6400 = vmatpush1.bf16.msra.mxu0 %v6271
    %6401 = vmatprep.subr.bf16.mxu0 %v6274
    %6402 = vmatpush1.bf16.msra.mxu0 %v6273
    %6403 = vmatprep.subr.bf16.mxu0 %v6276
    %6404 = vmatpush1.bf16.msra.mxu0 %v6275
    %6405 = vmatprep.subr.bf16.mxu0 %v6278
    %6406 = vmatpush1.bf16.msra.mxu0 %v6277
    %6407 = vmatprep.subr.bf16.mxu0 %v6280
    %6408 = vmatpush1.bf16.msra.mxu0 %v6279
    %6409 = vmatprep.mubr.bf16.mxu0 %v5978
    %6410 = vmatmul.mubr.bf16.gmra.mrb[0].mxu0 %v5977
    %v6411 = vpop.f32.mrb[0].mxu0
    %v6412 = vadd.f32 %v6050, %v6411
    %v6413 = vpop.f32.mrb[0].mxu0
    %v6414 = vadd.f32 %v6054, %v6413
    %v6415 = vpop.f32.mrb[0].mxu0
    %v6416 = vpop.f32.mrb[0].mxu0
    %6417 = vdwg.mxu0
    %6418 = vmatprep.subr.bf16.mxu0 %v6282
    %6419 = vmatpush1.bf16.msra.mxu0 %v6281
    %6420 = vmatprep.subr.bf16.mxu0 %v6284
    %6421 = vmatpush1.bf16.msra.mxu0 %v6283
    %6422 = vmatprep.subr.bf16.mxu0 %v6286
    %6423 = vmatpush1.bf16.msra.mxu0 %v6285
    %6424 = vmatprep.subr.bf16.mxu0 %v6288
    %6425 = vmatpush1.bf16.msra.mxu0 %v6287
    %6426 = vmatprep.subr.bf16.mxu0 %v6290
    %6427 = vmatpush1.bf16.msra.mxu0 %v6289
    %6428 = vmatprep.subr.bf16.mxu0 %v6292
    %6429 = vmatpush1.bf16.msra.mxu0 %v6291
    %6430 = vmatprep.subr.bf16.mxu0 %v6294
    %6431 = vmatpush1.bf16.msra.mxu0 %v6293
    %6432 = vmatprep.subr.bf16.mxu0 %v6296
    %6433 = vmatpush1.bf16.msra.mxu0 %v6295
    %6434 = vmatprep.subr.bf16.mxu0 %v6298
    %6435 = vmatpush1.bf16.msra.mxu0 %v6297
    %6436 = vmatprep.subr.bf16.mxu0 %v6300
    %6437 = vmatpush1.bf16.msra.mxu0 %v6299
    %6438 = vmatprep.subr.bf16.mxu0 %v6302
    %6439 = vmatpush1.bf16.msra.mxu0 %v6301
    %6440 = vmatprep.subr.bf16.mxu0 %v6304
    %6441 = vmatpush1.bf16.msra.mxu0 %v6303
    %6442 = vmatprep.subr.bf16.mxu0 %v6306
    %6443 = vmatpush1.bf16.msra.mxu0 %v6305
    %6444 = vmatprep.subr.bf16.mxu0 %v6308
    %6445 = vmatpush1.bf16.msra.mxu0 %v6307
    %6446 = vmatprep.subr.bf16.mxu0 %v6310
    %6447 = vmatpush1.bf16.msra.mxu0 %v6309
    %6448 = vmatprep.subr.bf16.mxu0 %v6312
    %6449 = vmatpush1.bf16.msra.mxu0 %v6311
    %6450 = vmatprep.mubr.bf16.mxu0 %v5980
    %6451 = vmatmul.mubr.bf16.gmra.mrb[0].mxu0 %v5979
    %v6452 = vpop.f32.mrb[0].mxu0
    %v6453 = vadd.f32 %v6412, %v6452
    %v6454 = vpop.f32.mrb[0].mxu0
    %v6455 = vadd.f32 %v6414, %v6454
    %v6456 = vpop.f32.mrb[0].mxu0
    %v6457 = vpop.f32.mrb[0].mxu0
    %6458 = vdwg.mxu0
    %v6459 = vmax.f32 %v6453, 0.0
    %v6460 = vmax.f32 %v6455, 0.0
    %v6461 = vpack.c.bf16 %v6459, %v6459
    %v6462 = vpack.c.bf16 %v6460, %v6460
    %v6463 = vld [vmem:[#allocation14] sm:$0xf]
    %v6464 = vld [vmem:[#allocation14 + $0x4] sm:$0xf]
    %v6465 = vld [vmem:[#allocation14 + $0x8] sm:$0xf]
    %v6466 = vld [vmem:[#allocation14 + $0xc] sm:$0xf]
    %v6467 = vld [vmem:[#allocation14 + $0x10] sm:$0xf]
    %v6468 = vld [vmem:[#allocation14 + $0x14] sm:$0xf]
    %v6469 = vld [vmem:[#allocation14 + $0x18] sm:$0xf]
    %v6470 = vld [vmem:[#allocation14 + $0x1c] sm:$0xf]
    %v6471 = vld [vmem:[#allocation14 + $0x20] sm:$0xf]
    %v6472 = vld [vmem:[#allocation14 + $0x24] sm:$0xf]
    %v6473 = vld [vmem:[#allocation14 + $0x28] sm:$0xf]
    %v6474 = vld [vmem:[#allocation14 + $0x2c] sm:$0xf]
    %v6475 = vld [vmem:[#allocation14 + $0x30] sm:$0xf]
    %v6476 = vld [vmem:[#allocation14 + $0x34] sm:$0xf]
    %v6477 = vld [vmem:[#allocation14 + $0x38] sm:$0xf]
    %v6478 = vld [vmem:[#allocation14 + $0x3c] sm:$0xf]
    %v6479 = vld [vmem:[#allocation14 + $0x40] sm:$0xf]
    %v6480 = vld [vmem:[#allocation14 + $0x44] sm:$0xf]
    %v6481 = vld [vmem:[#allocation14 + $0x48] sm:$0xf]
    %v6482 = vld [vmem:[#allocation14 + $0x4c] sm:$0xf]
    %v6483 = vld [vmem:[#allocation14 + $0x50] sm:$0xf]
    %v6484 = vld [vmem:[#allocation14 + $0x54] sm:$0xf]
    %v6485 = vld [vmem:[#allocation14 + $0x58] sm:$0xf]
    %v6486 = vld [vmem:[#allocation14 + $0x5c] sm:$0xf]
    %v6487 = vld [vmem:[#allocation14 + $0x60] sm:$0xf]
    %v6488 = vld [vmem:[#allocation14 + $0x64] sm:$0xf]
    %v6489 = vld [vmem:[#allocation14 + $0x68] sm:$0xf]
    %v6490 = vld [vmem:[#allocation14 + $0x6c] sm:$0xf]
    %v6491 = vld [vmem:[#allocation14 + $0x70] sm:$0xf]
    %v6492 = vld [vmem:[#allocation14 + $0x74] sm:$0xf]
    %v6493 = vld [vmem:[#allocation14 + $0x78] sm:$0xf]
    %v6494 = vld [vmem:[#allocation14 + $0x7c] sm:$0xf]
    %v6495 = vld [vmem:[#allocation16] sm:$0x1]
    %v6497 = vlaneseq
    %v6498 = vshrl.u32 %v6497, 7
    %v6499 = vsub.s32 0, %v6498
    %v6500 = vrot.slane %v6495, %v6499
    %v6534 = vunpack.c.l.b16 %v6463
    %v6535 = vunpack.c.l.b16 %v6464
    %v6536 = vunpack.c.l.b16 %v6465
    %v6537 = vunpack.c.l.b16 %v6466
    %v6538 = vunpack.c.l.b16 %v6467
    %v6539 = vunpack.c.l.b16 %v6468
    %v6540 = vunpack.c.l.b16 %v6469
    %v6541 = vunpack.c.l.b16 %v6470
    %v6542 = vunpack.c.l.b16 %v6471
    %v6543 = vunpack.c.l.b16 %v6472
    %v6544 = vunpack.c.l.b16 %v6473
    %v6545 = vunpack.c.l.b16 %v6474
    %v6546 = vunpack.c.l.b16 %v6475
    %v6547 = vunpack.c.l.b16 %v6476
    %v6548 = vunpack.c.l.b16 %v6477
    %v6549 = vunpack.c.l.b16 %v6478
    %v6550 = vunpack.c.l.b16 %v6479
    %v6551 = vunpack.c.l.b16 %v6480
    %v6552 = vunpack.c.l.b16 %v6481
    %v6553 = vunpack.c.l.b16 %v6482
    %v6554 = vunpack.c.l.b16 %v6483
    %v6555 = vunpack.c.l.b16 %v6484
    %v6556 = vunpack.c.l.b16 %v6485
    %v6557 = vunpack.c.l.b16 %v6486
    %v6558 = vunpack.c.l.b16 %v6487
    %v6559 = vunpack.c.l.b16 %v6488
    %v6560 = vunpack.c.l.b16 %v6489
    %v6561 = vunpack.c.l.b16 %v6490
    %v6562 = vunpack.c.l.b16 %v6491
    %v6563 = vunpack.c.l.b16 %v6492
    %v6564 = vunpack.c.l.b16 %v6493
    %v6565 = vunpack.c.l.b16 %v6494
    %v6566 = vpack.c.b16 %v6535, %v6534
    %v6567 = vpack.c.b16 %v6537, %v6536
    %v6568 = vpack.c.b16 %v6539, %v6538
    %v6569 = vpack.c.b16 %v6541, %v6540
    %v6570 = vpack.c.b16 %v6543, %v6542
    %v6571 = vpack.c.b16 %v6545, %v6544
    %v6572 = vpack.c.b16 %v6547, %v6546
    %v6573 = vpack.c.b16 %v6549, %v6548
    %v6574 = vpack.c.b16 %v6551, %v6550
    %v6575 = vpack.c.b16 %v6553, %v6552
    %v6576 = vpack.c.b16 %v6555, %v6554
    %v6577 = vpack.c.b16 %v6557, %v6556
    %v6578 = vpack.c.b16 %v6559, %v6558
    %v6579 = vpack.c.b16 %v6561, %v6560
    %v6580 = vpack.c.b16 %v6563, %v6562
    %v6581 = vpack.c.b16 %v6565, %v6564
    %6598 = vmatprep.subr.bf16.mxu0 0
    %6599 = vmatpush1.bf16.msra.mxu0 %v6566
    %6600 = vmatprep.subr.bf16.mxu0 0
    %6601 = vmatpush1.bf16.msra.mxu0 %v6567
    %6602 = vmatprep.subr.bf16.mxu0 0
    %6603 = vmatpush1.bf16.msra.mxu0 %v6568
    %6604 = vmatprep.subr.bf16.mxu0 0
    %6605 = vmatpush1.bf16.msra.mxu0 %v6569
    %6606 = vmatprep.subr.bf16.mxu0 0
    %6607 = vmatpush1.bf16.msra.mxu0 %v6570
    %6608 = vmatprep.subr.bf16.mxu0 0
    %6609 = vmatpush1.bf16.msra.mxu0 %v6571
    %6610 = vmatprep.subr.bf16.mxu0 0
    %6611 = vmatpush1.bf16.msra.mxu0 %v6572
    %6612 = vmatprep.subr.bf16.mxu0 0
    %6613 = vmatpush1.bf16.msra.mxu0 %v6573
    %6614 = vmatprep.subr.bf16.mxu0 0
    %6615 = vmatpush1.bf16.msra.mxu0 %v6574
    %6616 = vmatprep.subr.bf16.mxu0 0
    %6617 = vmatpush1.bf16.msra.mxu0 %v6575
    %6618 = vmatprep.subr.bf16.mxu0 0
    %6619 = vmatpush1.bf16.msra.mxu0 %v6576
    %6620 = vmatprep.subr.bf16.mxu0 0
    %6621 = vmatpush1.bf16.msra.mxu0 %v6577
    %6622 = vmatprep.subr.bf16.mxu0 0
    %6623 = vmatpush1.bf16.msra.mxu0 %v6578
    %6624 = vmatprep.subr.bf16.mxu0 0
    %6625 = vmatpush1.bf16.msra.mxu0 %v6579
    %6626 = vmatprep.subr.bf16.mxu0 0
    %6627 = vmatpush1.bf16.msra.mxu0 %v6580
    %6628 = vmatprep.subr.bf16.mxu0 0
    %6629 = vmatpush1.bf16.msra.mxu0 %v6581
    %6630 = vmatprep.mubr.bf16.mxu0 %v6462
    %6631 = vmatmul.mubr.bf16.gmra.mrb[0].mxu0 %v6461
    %v6632 = vpop.f32.mrb[0].mxu0
    %v6633 = vadd.f32 %v6500, %v6632
    %v6634 = vpop.f32.mrb[0].mxu0
    %v6635 = vpop.f32.mrb[0].mxu0
    %v6636 = vpop.f32.mrb[0].mxu0
    %6637 = vdwg.mxu0
    %v6638 = vmax.f32 %v6633, 0.0
    %v6639 = vpack.c.bf16 %v6638, %v6638
    %v6640 = vld [vmem:[#allocation17] sm:$0xf]
    %v6641 = vld [vmem:[#allocation17 + $0x4] sm:$0xf]
    %v6642 = vld [vmem:[#allocation17 + $0x8] sm:$0xf]
    %v6643 = vld [vmem:[#allocation17 + $0xc] sm:$0xf]
    %v6644 = vld [vmem:[#allocation17 + $0x10] sm:$0xf]
    %v6645 = vld [vmem:[#allocation17 + $0x14] sm:$0xf]
    %v6646 = vld [vmem:[#allocation17 + $0x18] sm:$0xf]
    %v6647 = vld [vmem:[#allocation17 + $0x1c] sm:$0xf]
    %v6648 = vld [vmem:[#allocation17 + $0x20] sm:$0xf]
    %v6649 = vld [vmem:[#allocation17 + $0x24] sm:$0xf]
    %v6650 = vld [vmem:[#allocation17 + $0x28] sm:$0xf]
    %v6651 = vld [vmem:[#allocation17 + $0x2c] sm:$0xf]
    %v6652 = vld [vmem:[#allocation17 + $0x30] sm:$0xf]
    %v6653 = vld [vmem:[#allocation17 + $0x34] sm:$0xf]
    %v6654 = vld [vmem:[#allocation17 + $0x38] sm:$0xf]
    %v6655 = vld [vmem:[#allocation17 + $0x3c] sm:$0xf]
    %v6656 = vld [vmem:[#allocation19] sm:$0x1]
    %v6658 = vlaneseq
    %v6659 = vshrl.u32 %v6658, 7
    %v6660 = vsub.s32 0, %v6659
    %v6661 = vrot.slane %v6656, %v6660
    %v6679 = vunpack.c.l.b16 %v6640
    %v6680 = vunpack.c.l.b16 %v6641
    %v6681 = vunpack.c.l.b16 %v6642
    %v6682 = vunpack.c.l.b16 %v6643
    %v6683 = vunpack.c.l.b16 %v6644
    %v6684 = vunpack.c.l.b16 %v6645
    %v6685 = vunpack.c.l.b16 %v6646
    %v6686 = vunpack.c.l.b16 %v6647
    %v6687 = vunpack.c.l.b16 %v6648
    %v6688 = vunpack.c.l.b16 %v6649
    %v6689 = vunpack.c.l.b16 %v6650
    %v6690 = vunpack.c.l.b16 %v6651
    %v6691 = vunpack.c.l.b16 %v6652
    %v6692 = vunpack.c.l.b16 %v6653
    %v6693 = vunpack.c.l.b16 %v6654
    %v6694 = vunpack.c.l.b16 %v6655
    %v6695 = vpack.c.b16 %v6680, %v6679
    %v6696 = vpack.c.b16 %v6682, %v6681
    %v6697 = vpack.c.b16 %v6684, %v6683
    %v6698 = vpack.c.b16 %v6686, %v6685
    %v6699 = vpack.c.b16 %v6688, %v6687
    %v6700 = vpack.c.b16 %v6690, %v6689
    %v6701 = vpack.c.b16 %v6692, %v6691
    %v6702 = vpack.c.b16 %v6694, %v6693
    %6711 = vmatprep.subr.bf16.mxu0 0
    %6712 = vmatpush1.bf16.msra.mxu0 %v6695
    %6713 = vmatprep.subr.bf16.mxu0 0
    %6714 = vmatpush1.bf16.msra.mxu0 %v6696
    %6715 = vmatprep.subr.bf16.mxu0 0
    %6716 = vmatpush1.bf16.msra.mxu0 %v6697
    %6717 = vmatprep.subr.bf16.mxu0 0
    %6718 = vmatpush1.bf16.msra.mxu0 %v6698
    %6719 = vmatprep.subr.bf16.mxu0 0
    %6720 = vmatpush1.bf16.msra.mxu0 %v6699
    %6721 = vmatprep.subr.bf16.mxu0 0
    %6722 = vmatpush1.bf16.msra.mxu0 %v6700
    %6723 = vmatprep.subr.bf16.mxu0 0
    %6724 = vmatpush1.bf16.msra.mxu0 %v6701
    %6725 = vmatprep.subr.bf16.mxu0 0
    %6726 = vmatpush1.bf16.msra.mxu0 %v6702
    %6727 = vmatprep.subr.bf16.mxu0 0
    %6728 = vmatpush1.bf16.msra.mxu0 0
    %6729 = vmatprep.subr.bf16.mxu0 0
    %6730 = vmatpush1.bf16.msra.mxu0 0
    %6731 = vmatprep.subr.bf16.mxu0 0
    %6732 = vmatpush1.bf16.msra.mxu0 0
    %6733 = vmatprep.subr.bf16.mxu0 0
    %6734 = vmatpush1.bf16.msra.mxu0 0
    %6735 = vmatprep.subr.bf16.mxu0 0
    %6736 = vmatpush1.bf16.msra.mxu0 0
    %6737 = vmatprep.subr.bf16.mxu0 0
    %6738 = vmatpush1.bf16.msra.mxu0 0
    %6739 = vmatprep.subr.bf16.mxu0 0
    %6740 = vmatpush1.bf16.msra.mxu0 0
    %6741 = vmatprep.subr.bf16.mxu0 0
    %6742 = vmatpush1.bf16.msra.mxu0 0
    %6743 = vmatprep.mubr.bf16.mxu0 0
    %6744 = vmatmul.mubr.bf16.gmra.mrb[0].mxu0 %v6639
    %v6745 = vpop.f32.mrb[0].mxu0
    %v6746 = vadd.f32 %v6661, %v6745
    %v6747 = vpop.f32.mrb[0].mxu0
    %v6748 = vpop.f32.mrb[0].mxu0
    %v6749 = vpop.f32.mrb[0].mxu0
    %6750 = vdwg.mxu0
    %v6751 = vmax.f32 %v6746, 0.0
    %v6752 = vpack.c.bf16 %v6751, %v6751
    %v6753 = vld [vmem:[#allocation20] sm:$0xf]
    %v6754 = vld [vmem:[#allocation20 + $0x4] sm:$0xf]
    %v6755 = vld [vmem:[#allocation20 + $0x8] sm:$0xf]
    %v6756 = vld [vmem:[#allocation20 + $0xc] sm:$0xf]
    %v6757 = vld [vmem:[#allocation20 + $0x10] sm:$0xf]
    %v6758 = vld [vmem:[#allocation20 + $0x14] sm:$0xf]
    %v6759 = vld [vmem:[#allocation20 + $0x18] sm:$0xf]
    %v6760 = vld [vmem:[#allocation20 + $0x1c] sm:$0xf]
    %v6761 = vld [vmem:[#allocation20 + $0x20] sm:$0xf]
    %v6762 = vld [vmem:[#allocation20 + $0x24] sm:$0xf]
    %v6763 = vld [vmem:[#allocation20 + $0x28] sm:$0xf]
    %v6764 = vld [vmem:[#allocation20 + $0x2c] sm:$0xf]
    %v6765 = vld [vmem:[#allocation20 + $0x30] sm:$0xf]
    %v6766 = vld [vmem:[#allocation20 + $0x34] sm:$0xf]
    %v6767 = vld [vmem:[#allocation20 + $0x38] sm:$0xf]
    %v6768 = vld [vmem:[#allocation20 + $0x3c] sm:$0xf]
    %v6769 = vld [vmem:[#allocation22] sm:$0x1]
    %v6771 = vlaneseq
    %v6772 = vshrl.u32 %v6771, 7
    %v6773 = vsub.s32 0, %v6772
    %v6774 = vrot.slane %v6769, %v6773
    %v6792 = vunpack.c.l.b16 %v6753
    %v6793 = vunpack.c.l.b16 %v6754
    %v6794 = vunpack.c.l.b16 %v6755
    %v6795 = vunpack.c.l.b16 %v6756
    %v6796 = vunpack.c.l.b16 %v6757
    %v6797 = vunpack.c.l.b16 %v6758
    %v6798 = vunpack.c.l.b16 %v6759
    %v6799 = vunpack.c.l.b16 %v6760
    %v6800 = vunpack.c.l.b16 %v6761
    %v6801 = vunpack.c.l.b16 %v6762
    %v6802 = vunpack.c.l.b16 %v6763
    %v6803 = vunpack.c.l.b16 %v6764
    %v6804 = vunpack.c.l.b16 %v6765
    %v6805 = vunpack.c.l.b16 %v6766
    %v6806 = vunpack.c.l.b16 %v6767
    %v6807 = vunpack.c.l.b16 %v6768
    %v6808 = vpack.c.b16 %v6793, %v6792
    %v6809 = vpack.c.b16 %v6795, %v6794
    %v6810 = vpack.c.b16 %v6797, %v6796
    %v6811 = vpack.c.b16 %v6799, %v6798
    %v6812 = vpack.c.b16 %v6801, %v6800
    %v6813 = vpack.c.b16 %v6803, %v6802
    %v6814 = vpack.c.b16 %v6805, %v6804
    %v6815 = vpack.c.b16 %v6807, %v6806
    %6824 = vmatprep.subr.bf16.mxu0 0
    %6825 = vmatpush1.bf16.msra.mxu0 %v6808
    %6826 = vmatprep.subr.bf16.mxu0 0
    %6827 = vmatpush1.bf16.msra.mxu0 %v6809
    %6828 = vmatprep.subr.bf16.mxu0 0
    %6829 = vmatpush1.bf16.msra.mxu0 %v6810
    %6830 = vmatprep.subr.bf16.mxu0 0
    %6831 = vmatpush1.bf16.msra.mxu0 %v6811
    %6832 = vmatprep.subr.bf16.mxu0 0
    %6833 = vmatpush1.bf16.msra.mxu0 %v6812
    %6834 = vmatprep.subr.bf16.mxu0 0
    %6835 = vmatpush1.bf16.msra.mxu0 %v6813
    %6836 = vmatprep.subr.bf16.mxu0 0
    %6837 = vmatpush1.bf16.msra.mxu0 %v6814
    %6838 = vmatprep.subr.bf16.mxu0 0
    %6839 = vmatpush1.bf16.msra.mxu0 %v6815
    %6840 = vmatprep.subr.bf16.mxu0 0
    %6841 = vmatpush1.bf16.msra.mxu0 0
    %6842 = vmatprep.subr.bf16.mxu0 0
    %6843 = vmatpush1.bf16.msra.mxu0 0
    %6844 = vmatprep.subr.bf16.mxu0 0
    %6845 = vmatpush1.bf16.msra.mxu0 0
    %6846 = vmatprep.subr.bf16.mxu0 0
    %6847 = vmatpush1.bf16.msra.mxu0 0
    %6848 = vmatprep.subr.bf16.mxu0 0
    %6849 = vmatpush1.bf16.msra.mxu0 0
    %6850 = vmatprep.subr.bf16.mxu0 0
    %6851 = vmatpush1.bf16.msra.mxu0 0
    %6852 = vmatprep.subr.bf16.mxu0 0
    %6853 = vmatpush1.bf16.msra.mxu0 0
    %6854 = vmatprep.subr.bf16.mxu0 0
    %6855 = vmatpush1.bf16.msra.mxu0 0
    %6856 = vmatprep.mubr.bf16.mxu0 0
    %6857 = vmatmul.mubr.bf16.gmra.mrb[0].mxu0 %v6752
    %v6858 = vpop.f32.mrb[0].mxu0
    %v6859 = vadd.f32 %v6774, %v6858
    %v6860 = vpop.f32.mrb[0].mxu0
    %v6861 = vpop.f32.mrb[0].mxu0
    %v6862 = vpop.f32.mrb[0].mxu0
    %6863 = vdwg.mxu0
    %v6864 = vsub.f32 0.0, %v6859
    %v6865 = vmul.f32 %v6864, 1.442695
    %v6866 = vpow.pop %v6865
    %v6867 = vadd.f32 %v6866, 1.0
    %v6868 = vrcp.pop %v6867
    %6869 = vst [vmem:[#allocation23] sm:$0xff] %v6868
    // Predicated region
    $region106: #{tpu_custom_call.1} parent=1 // pred_check
      _
    $region107: #{tpu_custom_call.1} parent=1 // pred_check_branch
      %6871 = sbr.rel (0) target = $region109
    $region108: #{tpu_custom_call.1} parent=1 // pred_region
      %s6873 = ssub.s32 128, 128
      %6874 = vsyncadd [#allocation4], %s6873
      %s6876 = sshll.u32 [#allocation23], 4
      %s6877 = int_to_ptr.vmem [resolvable:$true] %s6876
      %6879 = dma.vmem_to_hbm [thread:$0]  %s6877, 128, %s13, [#allocation4]
    $region109: #{tpu_custom_call.1} parent=1 // pred_fallthru
      _
    // Predicated region
    $region110: #{tpu_custom_call.1} parent=1 // pred_check
      _
    $region111: #{tpu_custom_call.1} parent=1 // pred_check_branch
      %6881 = sbr.rel (0) target = $region113
    $region112: #{tpu_custom_call.1} parent=1 // pred_region
      %6882 = dma.done [#allocation4], 128
    $region113: #{tpu_custom_call.1} parent=1 // pred_fallthru
      _
    %6883 = vsyncpa [#allocation3], 1
    %6884 = vsyncpa [#allocation6], 1
    %6885 = vsyncpa [#allocation9], 1
    %6886 = vsyncpa [#allocation12], 1
    %6887 = vsyncpa [#allocation15], 1
    %6888 = vsyncpa [#allocation18], 1
    %6889 = vsyncpa [#allocation21], 1
    %6890 = vsyncpa [#allocation4], 1

</llo_original>
